<compile_context>
chip_gen: v7x
topology: tpu7x:2x2x1
jax: 0.10.0
libtpu: 0.0.40
codegen_flags: <defaults>
</compile_context>

<pallas_src>
import functools

import jax
import jax.numpy as jnp
from jax import lax
from jax.experimental import pallas as pl
from jax.experimental.pallas import tpu as pltpu


def _make_kernel(nt, inv_n):
    """Fused fc1 -> batch-stats -> BN -> ReLU -> fc2 -> L2-normalize kernel."""

    def kernel(x_ref, w1_ref, gamma_ref, beta_ref, w2_ref, b2_ref,
               out_ref, sum_ref, ssq_ref):
        i = pl.program_id(0)

        @pl.when(i == 0)
        def _init():
            sum_ref[...] = jnp.zeros_like(sum_ref)
            ssq_ref[...] = jnp.zeros_like(ssq_ref)

        # fc1 (bias dropped: exact no-op under training-mode BatchNorm).
        # Operands arrive pre-cast (f32 or bf16); accumulate in f32 on the MXU.
        h = jnp.dot(x_ref[...], w1_ref[...], preferred_element_type=jnp.float32)

        # Batch statistics on the MXU instead of a cross-sublane (XLU) sum:
        # sum += 1s @ h ; ssq += 1s @ (h*h).  Stats stay f32.
        ones_row = jnp.ones((1, h.shape[0]), jnp.float32)
        sum_ref[...] += jnp.dot(ones_row, h, preferred_element_type=jnp.float32)
        ssq_ref[...] += jnp.dot(ones_row, h * h,
                                preferred_element_type=jnp.float32)

        # Stash h (f32) into the VMEM-resident output block; HBM write-back
        # happens only once, after the final grid step.
        out_ref[i] = h

        @pl.when(i == nt - 1)
        def _finalize():
            # Fold training-mode BatchNorm (biased batch variance, eps=0.001)
            # into one per-feature scale/shift, entirely in-kernel.
            mean = sum_ref[...] * inv_n
            var = ssq_ref[...] * inv_n - mean * mean
            scale = gamma_ref[...] * lax.rsqrt(var + 0.001)
            shift = beta_ref[...] - mean * scale
            w2 = w2_ref[...]
            b2 = b2_ref[...]
            for j in range(nt):  # static unroll over the resident h tiles
                hj = jnp.maximum(out_ref[j] * scale + shift, 0.0)
                y = jnp.dot(hj.astype(w2.dtype), w2,
                            preferred_element_type=jnp.float32) + b2
                # F.normalize(y, p=2, dim=1, eps=1e-12)
                #   == y * rsqrt(max(sum(y^2), 1e-24))
                nrm = jnp.sum(y * y, axis=-1, keepdims=True)
                out_ref[j] = y * lax.rsqrt(jnp.maximum(nrm, 1e-24))

    return kernel


@functools.partial(jax.jit, static_argnames=("block_n", "matmul_dtype"))
def embed_branch(x, w1, b1, gamma, beta, w2, b2, *, block_n=256,
                 matmul_dtype=jnp.float32):
    """Fused EmbedBranch forward.  Weights are pre-transposed to (in, out)."""
    # fc1 bias cancels exactly under training-mode BatchNorm -> never loaded.
    del b1
    n, f = x.shape
    e = w1.shape[1]

    # Optional bf16 MXU operands (v6e/v7x fast path): halves x/W DMA bytes and
    # uses the native bf16 MXU.  BN / ReLU / normalize math stays f32.
    if matmul_dtype != jnp.float32:
        x = x.astype(matmul_dtype)
        w1 = w1.astype(matmul_dtype)
        w2 = w2.astype(matmul_dtype)

    # Batch tiling: sublane-aligned tile; pad N to a multiple of block_n.
    # Zero-pad rows give h == 0 (no fc1 bias), so sum/ssq are unaffected; the
    # stats divide by the true n and padded output rows are sliced off.
    block_n = max(8, (block_n // 8) * 8)
    block_n = min(block_n, ((n + 7) // 8) * 8)
    nt = int(pl.cdiv(n, block_n))
    n_pad = nt * block_n
    if n_pad != n:
        x = jnp.pad(x, ((0, n_pad - n), (0, 0)))

    # VMEM budget: double-buffered inputs + resident (nt, block_n, e) output,
    # capped at v7x's 64 MiB physical so one config works on v5e/v6e/v7x.
    isz = jnp.dtype(matmul_dtype).itemsize
    vmem_est = (2 * block_n * f * isz       # x tiles (double-buffered)
                + 2 * f * e * isz           # W1 (resident)
                + 2 * e * e * isz           # W2 (resident)
                + 2 * 3 * e * 4             # gamma / beta / b2
                + 2 * n_pad * e * 4         # resident h / output block
                + 2 * 2 * e * 4)            # sum / ssq scratch
    assert vmem_est <= (60 << 20), (
        "fused EmbedBranch needs the whole h block resident in VMEM; shrink "
        "block_n / use bf16, or fall back to a two-pass (h -> HBM) variant")
    vmem_limit = int(min(max(2 * vmem_est, 32 << 20), 64 << 20))

    kernel = _make_kernel(nt, 1.0 / float(n))

    out = pl.pallas_call(
        kernel,
        grid=(nt,),
        in_specs=[
            pl.BlockSpec((block_n, f), lambda i: (i, 0)),   # x batch tile
            pl.BlockSpec((f, e), lambda i: (0, 0)),         # W1 (resident)
            pl.BlockSpec((1, e), lambda i: (0, 0)),         # gamma
            pl.BlockSpec((1, e), lambda i: (0, 0)),         # beta
            pl.BlockSpec((e, e), lambda i: (0, 0)),         # W2 (resident)
            pl.BlockSpec((1, e), lambda i: (0, 0)),         # b2
        ],
        out_specs=pl.BlockSpec((nt, block_n, e), lambda i: (0, 0, 0)),
        out_shape=jax.ShapeDtypeStruct((nt, block_n, e), jnp.float32),
        scratch_shapes=[
            pltpu.VMEM((1, e), jnp.float32),    # per-feature sum
            pltpu.VMEM((1, e), jnp.float32),    # per-feature sum of squares
        ],
        compiler_params=pltpu.CompilerParams(
            dimension_semantics=("arbitrary",),   # batch axis is a reduction
            vmem_limit_bytes=vmem_limit),
    )(x, w1, gamma, beta, w2, b2)

    out = out.reshape(n_pad, e)
    return out[:n] if n_pad != n else out


def embed_branch_ref(x, w1, b1, gamma, beta, w2, b2):
    """Pure-JAX reference with the exact PyTorch forward semantics."""
    h = x @ w1 + b1
    mean = jnp.mean(h, axis=0, keepdims=True)
    var = jnp.mean((h - mean) ** 2, axis=0, keepdims=True)
    h = (h - mean) / jnp.sqrt(var + 0.001) * gamma + beta
    h = jnp.maximum(h, 0.0)
    y = h @ w2 + b2
    norm = jnp.sqrt(jnp.sum(y * y, axis=-1, keepdims=True))
    return y / jnp.maximum(norm, 1e-12)


if __name__ == "__main__":
    # Lane-dense dims (multiples of 128), 256-row tiles -> a 2-step grid.
    feat_dim, embedding_dim, batch = 256, 256, 512

    key = jax.random.PRNGKey(0)
    kx, kw1, kb1, kw2, kb2, kg, kbeta = jax.random.split(key, 7)

    x = jax.random.normal(kx, (batch, feat_dim), dtype=jnp.float32)

    # PyTorch Linear init: U(-1/sqrt(fan_in), 1/sqrt(fan_in)); weights stored
    # pre-transposed to (in, out) for the kernel.
    bound1 = 1.0 / float(feat_dim) ** 0.5
    w1 = jax.random.uniform(kw1, (feat_dim, embedding_dim),
                            minval=-bound1, maxval=bound1, dtype=jnp.float32)
    b1 = jax.random.uniform(kb1, (1, embedding_dim),
                            minval=-bound1, maxval=bound1, dtype=jnp.float32)

    bound2 = 1.0 / float(embedding_dim) ** 0.5
    w2 = jax.random.uniform(kw2, (embedding_dim, embedding_dim),
                            minval=-bound2, maxval=bound2, dtype=jnp.float32)
    b2 = jax.random.uniform(kb2, (1, embedding_dim),
                            minval=-bound2, maxval=bound2, dtype=jnp.float32)

    gamma = 1.0 + 0.1 * jax.random.normal(kg, (1, embedding_dim), dtype=jnp.float32)
    beta = 0.1 * jax.random.normal(kbeta, (1, embedding_dim), dtype=jnp.float32)

    ref = embed_branch_ref(x, w1, b1, gamma, beta, w2, b2)

    # 1) f32 MXU operands: tight check (covers one-pass variance / dropped b1).
    out = jax.block_until_ready(
        embed_branch(x, w1, b1, gamma, beta, w2, b2, block_n=256))
    assert out.shape == (batch, embedding_dim)
    err = float(jnp.max(jnp.abs(out - ref)))
    assert jnp.allclose(out, ref, atol=1e-4, rtol=1e-4), (
        "f32 max abs err = %e" % err)

    # 2) Non-divisible batch exercises the zero-pad + slice path.
    n_odd = 500
    out_odd = jax.block_until_ready(
        embed_branch(x[:n_odd], w1, b1, gamma, beta, w2, b2, block_n=256))
    ref_odd = embed_branch_ref(x[:n_odd], w1, b1, gamma, beta, w2, b2)
    assert out_odd.shape == (n_odd, embedding_dim)
    err = float(jnp.max(jnp.abs(out_odd - ref_odd)))
    assert jnp.allclose(out_odd, ref_odd, atol=1e-4, rtol=1e-4), (
        "padded-batch max abs err = %e" % err)

    # 3) bf16 MXU operands (v6e/v7x fast path), f32 stats/BN/norm: loose check.
    out_bf16 = jax.block_until_ready(
        embed_branch(x, w1, b1, gamma, beta, w2, b2, block_n=256,
                     matmul_dtype=jnp.bfloat16))
    err = float(jnp.max(jnp.abs(out_bf16 - ref)))
    assert jnp.allclose(out_bf16, ref, atol=2e-2, rtol=2e-2), (
        "bf16 max abs err = %e" % err)

    print("KERNEL_OK")
</pallas_src>

<mosaic_0001>
module attributes {stable_mosaic.version = 11 : i64} {
  func.func @kernel(%arg0: i32, %arg1: memref<256x256xf32, #tpu.memory_space<vmem>>, %arg2: memref<256x256xf32, #tpu.memory_space<vmem>>, %arg3: memref<1x256xf32, #tpu.memory_space<vmem>>, %arg4: memref<1x256xf32, #tpu.memory_space<vmem>>, %arg5: memref<256x256xf32, #tpu.memory_space<vmem>>, %arg6: memref<1x256xf32, #tpu.memory_space<vmem>>, %arg7: memref<2x256x256xf32, #tpu.memory_space<vmem>>, %arg8: memref<1x256xf32, #tpu.memory_space<vmem>>, %arg9: memref<1x256xf32, #tpu.memory_space<vmem>>) attributes {dimension_semantics = [#tpu.dimension_semantics<arbitrary>], iteration_bounds = array<i64: 2>, scalar_prefetch = 0 : i64, scratch_operands = 2 : i64, tpu.core_type = #tpu.core_type<tc>, window_params = [{transform_indices = @transform_0, window_bounds = array<i64: 256, 256>}, {pipeline_mode = #tpu.pipeline_mode<synchronous>, transform_indices = @transform_1, window_bounds = array<i64: 256, 256>}, {pipeline_mode = #tpu.pipeline_mode<synchronous>, transform_indices = @transform_2, window_bounds = array<i64: 1, 256>}, {pipeline_mode = #tpu.pipeline_mode<synchronous>, transform_indices = @transform_3, window_bounds = array<i64: 1, 256>}, {pipeline_mode = #tpu.pipeline_mode<synchronous>, transform_indices = @transform_4, window_bounds = array<i64: 256, 256>}, {pipeline_mode = #tpu.pipeline_mode<synchronous>, transform_indices = @transform_5, window_bounds = array<i64: 1, 256>}, {pipeline_mode = #tpu.pipeline_mode<synchronous>, transform_indices = @transform_6, window_bounds = array<i64: 2, 256, 256>}]} {
    %c0_i32 = arith.constant 0 : i32
    %0 = arith.cmpi eq, %arg0, %c0_i32 : i32
    %1 = arith.extui %0 : i1 to i32
    %c0_i32_0 = arith.constant 0 : i32
    %2 = arith.cmpi ne, %1, %c0_i32_0 : i32
    scf.if %2 {
      %cst_18 = arith.constant 0.000000e+00 : f32
      %23 = vector.broadcast %cst_18 : f32 to vector<1x256xf32>
      %c0_19 = arith.constant 0 : index
      %c0_20 = arith.constant 0 : index
      %24 = vector.load %arg8[%c0_19, %c0_20] : memref<1x256xf32, #tpu.memory_space<vmem>>, vector<1x256xf32>
      tpu.vector_store %arg8[%c0_19, %c0_20], %23 {strides = array<i32>} : memref<1x256xf32, #tpu.memory_space<vmem>>, vector<1x256xf32>,
      %cst_21 = arith.constant 0.000000e+00 : f32
      %25 = vector.broadcast %cst_21 : f32 to vector<1x256xf32>
      %c0_22 = arith.constant 0 : index
      %c0_23 = arith.constant 0 : index
      %26 = vector.load %arg9[%c0_22, %c0_23] : memref<1x256xf32, #tpu.memory_space<vmem>>, vector<1x256xf32>
      tpu.vector_store %arg9[%c0_22, %c0_23], %25 {strides = array<i32>} : memref<1x256xf32, #tpu.memory_space<vmem>>, vector<1x256xf32>,
    } else {
    }
    %c0 = arith.constant 0 : index
    %c0_1 = arith.constant 0 : index
    %3 = vector.load %arg1[%c0, %c0_1] : memref<256x256xf32, #tpu.memory_space<vmem>>, vector<256x256xf32>
    %c0_2 = arith.constant 0 : index
    %c0_3 = arith.constant 0 : index
    %4 = vector.load %arg2[%c0_2, %c0_3] : memref<256x256xf32, #tpu.memory_space<vmem>>, vector<256x256xf32>
    %cst = arith.constant dense<0.000000e+00> : vector<256x256xf32>
    %5 = tpu.matmul %3, %4, %cst {dimension_numbers = #tpu.dot_dimension_numbers<[1], [0], [0], [1], [0, 0, 1, 1], [], []>} : vector<256x256xf32>, vector<256x256xf32>, vector<256x256xf32> -> vector<256x256xf32>
    %cst_4 = arith.constant 1.000000e+00 : f32
    %6 = vector.broadcast %cst_4 : f32 to vector<1x256xf32>
    %c0_5 = arith.constant 0 : index
    %c0_6 = arith.constant 0 : index
    %7 = vector.load %arg8[%c0_5, %c0_6] : memref<1x256xf32, #tpu.memory_space<vmem>>, vector<1x256xf32>
    %cst_7 = arith.constant dense<0.000000e+00> : vector<1x256xf32>
    %8 = tpu.matmul %6, %5, %cst_7 {dimension_numbers = #tpu.dot_dimension_numbers<[1], [0], [0], [1], [0, 0, 1, 1], [], []>} : vector<1x256xf32>, vector<256x256xf32>, vector<1x256xf32> -> vector<1x256xf32>
    %9 = arith.addf %7, %8 : vector<1x256xf32>
    %c0_8 = arith.constant 0 : index
    %c0_9 = arith.constant 0 : index
    %10 = vector.load %arg8[%c0_8, %c0_9] : memref<1x256xf32, #tpu.memory_space<vmem>>, vector<1x256xf32>
    tpu.vector_store %arg8[%c0_8, %c0_9], %9 {strides = array<i32>} : memref<1x256xf32, #tpu.memory_space<vmem>>, vector<1x256xf32>,
    %c0_10 = arith.constant 0 : index
    %c0_11 = arith.constant 0 : index
    %11 = vector.load %arg9[%c0_10, %c0_11] : memref<1x256xf32, #tpu.memory_space<vmem>>, vector<1x256xf32>
    %12 = arith.mulf %5, %5 : vector<256x256xf32>
    %cst_12 = arith.constant dense<0.000000e+00> : vector<1x256xf32>
    %13 = tpu.matmul %6, %12, %cst_12 {dimension_numbers = #tpu.dot_dimension_numbers<[1], [0], [0], [1], [0, 0, 1, 1], [], []>} : vector<1x256xf32>, vector<256x256xf32>, vector<1x256xf32> -> vector<1x256xf32>
    %14 = arith.addf %11, %13 : vector<1x256xf32>
    %c0_13 = arith.constant 0 : index
    %c0_14 = arith.constant 0 : index
    %15 = vector.load %arg9[%c0_13, %c0_14] : memref<1x256xf32, #tpu.memory_space<vmem>>, vector<1x256xf32>
    tpu.vector_store %arg9[%c0_13, %c0_14], %14 {strides = array<i32>} : memref<1x256xf32, #tpu.memory_space<vmem>>, vector<1x256xf32>,
    %16 = arith.index_cast %arg0 : i32 to index
    %c0_15 = arith.constant 0 : index
    %c0_16 = arith.constant 0 : index
    %17 = vector.load %arg7[%16, %c0_15, %c0_16] : memref<2x256x256xf32, #tpu.memory_space<vmem>>, vector<1x256x256xf32>
    %18 = vector.shape_cast %17 : vector<1x256x256xf32> to vector<256x256xf32>
    %19 = vector.shape_cast %5 : vector<256x256xf32> to vector<1x256x256xf32>
    tpu.vector_store %arg7[%16, %c0_15, %c0_16], %19 {strides = array<i32>} : memref<2x256x256xf32, #tpu.memory_space<vmem>>, vector<1x256x256xf32>,
    %c1_i32 = arith.constant 1 : i32
    %20 = arith.cmpi eq, %arg0, %c1_i32 : i32
    %21 = arith.extui %20 : i1 to i32
    %c0_i32_17 = arith.constant 0 : i32
    %22 = arith.cmpi ne, %21, %c0_i32_17 : i32
    scf.if %22 {
      %c0_18 = arith.constant 0 : index
      %c0_19 = arith.constant 0 : index
      %23 = vector.load %arg8[%c0_18, %c0_19] : memref<1x256xf32, #tpu.memory_space<vmem>>, vector<1x256xf32>
      %cst_20 = arith.constant 0.001953125 : f32
      %24 = vector.broadcast %cst_20 : f32 to vector<1x256xf32>
      %25 = arith.mulf %23, %24 : vector<1x256xf32>
      %c0_21 = arith.constant 0 : index
      %c0_22 = arith.constant 0 : index
      %26 = vector.load %arg9[%c0_21, %c0_22] : memref<1x256xf32, #tpu.memory_space<vmem>>, vector<1x256xf32>
      %cst_23 = arith.constant 0.001953125 : f32
      %27 = vector.broadcast %cst_23 : f32 to vector<1x256xf32>
      %28 = arith.mulf %26, %27 : vector<1x256xf32>
      %29 = arith.mulf %25, %25 : vector<1x256xf32>
      %30 = arith.subf %28, %29 : vector<1x256xf32>
      %c0_24 = arith.constant 0 : index
      %c0_25 = arith.constant 0 : index
      %31 = vector.load %arg3[%c0_24, %c0_25] : memref<1x256xf32, #tpu.memory_space<vmem>>, vector<1x256xf32>
      %cst_26 = arith.constant 1.000000e-03 : f32
      %32 = vector.broadcast %cst_26 : f32 to vector<1x256xf32>
      %33 = arith.addf %30, %32 : vector<1x256xf32>
      %34 = math.rsqrt %33 : vector<1x256xf32>
      %35 = arith.mulf %31, %34 : vector<1x256xf32>
      %c0_27 = arith.constant 0 : index
      %c0_28 = arith.constant 0 : index
      %36 = vector.load %arg4[%c0_27, %c0_28] : memref<1x256xf32, #tpu.memory_space<vmem>>, vector<1x256xf32>
      %37 = arith.mulf %25, %35 : vector<1x256xf32>
      %38 = arith.subf %36, %37 : vector<1x256xf32>
      %c0_29 = arith.constant 0 : index
      %c0_30 = arith.constant 0 : index
      %39 = vector.load %arg5[%c0_29, %c0_30] : memref<256x256xf32, #tpu.memory_space<vmem>>, vector<256x256xf32>
      %c0_31 = arith.constant 0 : index
      %c0_32 = arith.constant 0 : index
      %40 = vector.load %arg6[%c0_31, %c0_32] : memref<1x256xf32, #tpu.memory_space<vmem>>, vector<1x256xf32>
      %c0_33 = arith.constant 0 : index
      %c0_34 = arith.constant 0 : index
      %c0_35 = arith.constant 0 : index
      %41 = vector.load %arg7[%c0_33, %c0_34, %c0_35] : memref<2x256x256xf32, #tpu.memory_space<vmem>>, vector<1x256x256xf32>
      %42 = vector.shape_cast %41 : vector<1x256x256xf32> to vector<256x256xf32>
      %43 = vector.broadcast %35 : vector<1x256xf32> to vector<256x256xf32>
      %44 = arith.mulf %42, %43 : vector<256x256xf32>
      %45 = vector.broadcast %38 : vector<1x256xf32> to vector<256x256xf32>
      %46 = arith.addf %44, %45 : vector<256x256xf32>
      %cst_36 = arith.constant 0.000000e+00 : f32
      %47 = vector.broadcast %cst_36 : f32 to vector<256x256xf32>
      %48 = arith.maximumf %46, %47 : vector<256x256xf32>
      %cst_37 = arith.constant dense<0.000000e+00> : vector<256x256xf32>
      %49 = tpu.matmul %48, %39, %cst_37 {dimension_numbers = #tpu.dot_dimension_numbers<[1], [0], [0], [1], [0, 0, 1, 1], [], []>} : vector<256x256xf32>, vector<256x256xf32>, vector<256x256xf32> -> vector<256x256xf32>
      %50 = vector.broadcast %40 : vector<1x256xf32> to vector<256x256xf32>
      %51 = arith.addf %49, %50 : vector<256x256xf32>
      %52 = arith.mulf %51, %51 : vector<256x256xf32>
      %cst_38 = arith.constant dense<0.000000e+00> : vector<256xf32>
      %53 = vector.multi_reduction <add>, %52, %cst_38 [1] : vector<256x256xf32> to vector<256xf32>
      %54 = vector.shape_cast %53 : vector<256xf32> to vector<256x1xf32>
      %cst_39 = arith.constant 1.000000e-24 : f32
      %55 = vector.broadcast %cst_39 : f32 to vector<256x1xf32>
      %56 = arith.maximumf %54, %55 : vector<256x1xf32>
      %57 = math.rsqrt %56 : vector<256x1xf32>
      %58 = vector.broadcast %57 : vector<256x1xf32> to vector<256x256xf32>
      %59 = arith.mulf %51, %58 : vector<256x256xf32>
      %c0_40 = arith.constant 0 : index
      %c0_41 = arith.constant 0 : index
      %c0_42 = arith.constant 0 : index
      %60 = vector.load %arg7[%c0_40, %c0_41, %c0_42] : memref<2x256x256xf32, #tpu.memory_space<vmem>>, vector<1x256x256xf32>
      %61 = vector.shape_cast %60 : vector<1x256x256xf32> to vector<256x256xf32>
      %62 = vector.shape_cast %59 : vector<256x256xf32> to vector<1x256x256xf32>
      tpu.vector_store %arg7[%c0_40, %c0_41, %c0_42], %62 {strides = array<i32>} : memref<2x256x256xf32, #tpu.memory_space<vmem>>, vector<1x256x256xf32>,
      %c1 = arith.constant 1 : index
      %c0_43 = arith.constant 0 : index
      %c0_44 = arith.constant 0 : index
      %63 = vector.load %arg7[%c1, %c0_43, %c0_44] : memref<2x256x256xf32, #tpu.memory_space<vmem>>, vector<1x256x256xf32>
      %64 = vector.shape_cast %63 : vector<1x256x256xf32> to vector<256x256xf32>
      %65 = vector.broadcast %35 : vector<1x256xf32> to vector<256x256xf32>
      %66 = arith.mulf %64, %65 : vector<256x256xf32>
      %67 = vector.broadcast %38 : vector<1x256xf32> to vector<256x256xf32>
      %68 = arith.addf %66, %67 : vector<256x256xf32>
      %cst_45 = arith.constant 0.000000e+00 : f32
      %69 = vector.broadcast %cst_45 : f32 to vector<256x256xf32>
      %70 = arith.maximumf %68, %69 : vector<256x256xf32>
      %cst_46 = arith.constant dense<0.000000e+00> : vector<256x256xf32>
      %71 = tpu.matmul %70, %39, %cst_46 {dimension_numbers = #tpu.dot_dimension_numbers<[1], [0], [0], [1], [0, 0, 1, 1], [], []>} : vector<256x256xf32>, vector<256x256xf32>, vector<256x256xf32> -> vector<256x256xf32>
      %72 = vector.broadcast %40 : vector<1x256xf32> to vector<256x256xf32>
      %73 = arith.addf %71, %72 : vector<256x256xf32>
      %74 = arith.mulf %73, %73 : vector<256x256xf32>
      %cst_47 = arith.constant dense<0.000000e+00> : vector<256xf32>
      %75 = vector.multi_reduction <add>, %74, %cst_47 [1] : vector<256x256xf32> to vector<256xf32>
      %76 = vector.shape_cast %75 : vector<256xf32> to vector<256x1xf32>
      %cst_48 = arith.constant 1.000000e-24 : f32
      %77 = vector.broadcast %cst_48 : f32 to vector<256x1xf32>
      %78 = arith.maximumf %76, %77 : vector<256x1xf32>
      %79 = math.rsqrt %78 : vector<256x1xf32>
      %80 = vector.broadcast %79 : vector<256x1xf32> to vector<256x256xf32>
      %81 = arith.mulf %73, %80 : vector<256x256xf32>
      %c1_49 = arith.constant 1 : index
      %c0_50 = arith.constant 0 : index
      %c0_51 = arith.constant 0 : index
      %82 = vector.load %arg7[%c1_49, %c0_50, %c0_51] : memref<2x256x256xf32, #tpu.memory_space<vmem>>, vector<1x256x256xf32>
      %83 = vector.shape_cast %82 : vector<1x256x256xf32> to vector<256x256xf32>
      %84 = vector.shape_cast %81 : vector<256x256xf32> to vector<1x256x256xf32>
      tpu.vector_store %arg7[%c1_49, %c0_50, %c0_51], %84 {strides = array<i32>} : memref<2x256x256xf32, #tpu.memory_space<vmem>>, vector<1x256x256xf32>,
    } else {
    }
    return
  }
  func.func @transform_0(%arg0: i32) -> (i32, i32) {
    %c0_i32 = arith.constant 0 : i32
    %c0_i32_0 = arith.constant 0 : i32
    return %arg0, %c0_i32 : i32, i32
  }
  func.func @transform_1(%arg0: i32) -> (i32, i32) {
    %c0_i32 = arith.constant 0 : i32
    %c0_i32_0 = arith.constant 0 : i32
    %c0_i32_1 = arith.constant 0 : i32
    return %c0_i32, %c0_i32_0 : i32, i32
  }
  func.func @transform_2(%arg0: i32) -> (i32, i32) {
    %c0_i32 = arith.constant 0 : i32
    %c0_i32_0 = arith.constant 0 : i32
    %c0_i32_1 = arith.constant 0 : i32
    return %c0_i32, %c0_i32_0 : i32, i32
  }
  func.func @transform_3(%arg0: i32) -> (i32, i32) {
    %c0_i32 = arith.constant 0 : i32
    %c0_i32_0 = arith.constant 0 : i32
    %c0_i32_1 = arith.constant 0 : i32
    return %c0_i32, %c0_i32_0 : i32, i32
  }
  func.func @transform_4(%arg0: i32) -> (i32, i32) {
    %c0_i32 = arith.constant 0 : i32
    %c0_i32_0 = arith.constant 0 : i32
    %c0_i32_1 = arith.constant 0 : i32
    return %c0_i32, %c0_i32_0 : i32, i32
  }
  func.func @transform_5(%arg0: i32) -> (i32, i32) {
    %c0_i32 = arith.constant 0 : i32
    %c0_i32_0 = arith.constant 0 : i32
    %c0_i32_1 = arith.constant 0 : i32
    return %c0_i32, %c0_i32_0 : i32, i32
  }
  func.func @transform_6(%arg0: i32) -> (i32, i32, i32) {
    %c0_i32 = arith.constant 0 : i32
    %c0_i32_0 = arith.constant 0 : i32
    %c0_i32_1 = arith.constant 0 : i32
    %c0_i32_2 = arith.constant 0 : i32
    return %c0_i32, %c0_i32_0, %c0_i32_1 : i32, i32, i32
  }
}

</mosaic_0001>

<llo_original>
// kernel: embed_branch.1
$region0: #{embed_branch.1}
  #allocation0 [shape = 'u32[]', space=smem, size = 0x4, offset = 0x4, fixed_abs, tag = 'smem constant byte address 0x4 - core index']
  #allocation1 [shape = 'u32[144,128]{1,0:T(1,128)}', space=vmem, size = 0x12000, scoped, tag = 'internal scratch']
  #allocation2 [shape = 'f32[1,256]{1,0:T(1,128)}', space=vmem, size = 0x400, scoped, tag = 'scratch operand']
  #allocation3 [shape = 'f32[1,256]{1,0:T(1,128)}', space=vmem, size = 0x400, scoped, tag = 'scratch operand']
  %s0 = inlined_call_operand.hbm [shape: f32[512,256], index: 0, kind: input, shape index: {}]
  %s1 = inlined_call_operand.hbm [shape: f32[256,256], index: 1, kind: input, shape index: {}]
  %s2 = inlined_call_operand.vmem [shape: f32[1,256], index: 2, kind: input, shape index: {}]
  %s3 = inlined_call_operand.vmem [shape: f32[1,256], index: 3, kind: input, shape index: {}]
  %s4 = inlined_call_operand.hbm [shape: f32[256,256], index: 4, kind: input, shape index: {}]
  %s5 = inlined_call_operand.vmem [shape: f32[1,256], index: 5, kind: input, shape index: {}]
  %s6 = inlined_call_operand.hbm [shape: f32[2,256,256], index: 6, kind: output, shape index: {}]
  %s7 = sld [smem:[#allocation0]]
  $region77: #{embed_branch.1} parent=0
    _
  %s9 = ssub.s32 1, %s7
  %s10 = scalar_select 0, %s9, %s7
  $region1: #{embed_branch.1} parent=0
    #allocation4 [shape = 'u8[524288]{0}', space=vmem, size = 0x80000, scoped, tag = 'input window, operand 0']
    #allocation5 [shape = 's32[2]{0}', space=sflag, size = 0x8, scoped, tag = 'scoped memory for embed_branch.1']
    #allocation6 [shape = 's32[2]{0}', space=sflag, size = 0x8, scoped, tag = 'scoped memory for embed_branch.1']
    #allocation7 [shape = 'u8[262144]{0}', space=vmem, size = 0x40000, scoped, tag = 'input window, operand 1, single buffered']
    #allocation8 [shape = 's32[1]{0}', space=sflag, size = 0x4, scoped, tag = 'scoped memory for embed_branch.1']
    #allocation9 [shape = 'u8[262144]{0}', space=vmem, size = 0x40000, scoped, tag = 'input window, operand 4, single buffered']
    #allocation10 [shape = 'u8[524288]{0}', space=vmem, size = 0x80000, scoped, tag = 'output window, operand 0, single buffered']
    %11 = vsyncpa [#allocation5], 0
    %s12 = scalar_lea.sflag [#allocation5], 1
    %13 = vsyncpa %s12, 0
    %14 = vsyncpa [#allocation8], 0
    %15 = vsyncpa [#allocation6], 0
    loop: start=0, step=1, limit=4
    $region2: #{embed_branch.1} parent=1 // loop_pre_header
      _
    $region3: #{embed_branch.1} parent=1 // loop_header
      %s17 = sphi 0, %s21
      %p18 = scmp.ge.s32.totalorder %s17, 4
      %s27 = sphi 0, %s29
      %s30 = sphi 0, %s27
      %s31 = sphi 0, %s30
      %s47 = sphi 0, %s31
      %s51 = sphi 0, %s51
      %s53 = sphi 0, %s51
      %s54 = sphi 0, %s53
      %s68 = sphi 0, %s54
      %s72 = sphi 0, %s72
      %s74 = sphi 0, %s72
      %s75 = sphi 0, %s74
      %s89 = sphi 0, %s75
      %s93 = sphi 0, %s93
      %s95 = sphi 0, %s93
      %s96 = sphi 0, %s95
      %s110 = sphi 0, %s96
      %s114 = sphi 0, %s114
      %s116 = sphi 0, %s114
      %s117 = sphi 0, %s116
      %s131 = sphi 0, %s117
      %s135 = sphi 0, %s135
      %s137 = sphi 0, %s135
      %s138 = sphi 0, %s137
      %s152 = sphi 0, %s138
      %s156 = sphi 0, %s156
      %s158 = sphi 0, %s156
      %s159 = sphi 0, %s158
      %s173 = sphi 0, %s159
    $region4: #{embed_branch.1} parent=1 // loop_header_branch
      %20 = sbr.rel (%p18) target = $region8
    $region5: #{embed_branch.1} parent=1 // loop_body
      %s22 = ssub.s32 %s17, 1
      %s23 = ssub.s32 %s17, 2
      %s24 = sadd.s32 %s17, 1
      %s25 = ssub.s32 %s17, %s24
      %p26 = scmp.eq.s32.totalorder %s25, 0
      %s28 = sadd.s32 %s27, 1
      %s29 = scalar_select %p26, %s27, %s28
      %p32 = pneg %p26
      %p33 = scmp.eq.s32.totalorder %s17, 1
      %p34 = por %p32, %p33
      %p35 = scmp.ne.s32.totalorder %s27, %s30
      %p36 = scmp.eq.s32.totalorder %s17, 0
      %p37 = por %p35, %p36
      %p38 = scmp.ne.s32.totalorder %s27, %s30
      %p39 = scmp.eq.s32.totalorder %s22, 1
      %p40 = por %p38, %p39
      %p41 = scmp.ne.s32.totalorder %s30, %s31
      %p42 = scmp.eq.s32.totalorder %s22, 0
      %p43 = por %p41, %p42
      %p44 = scmp.ne.s32.totalorder %s30, %s31
      %p45 = scmp.eq.s32.totalorder %s23, 1
      %p46 = por %p44, %p45
      %p48 = scmp.ne.s32.totalorder %s31, %s47
      %p49 = scmp.eq.s32.totalorder %s23, 0
      %p50 = por %p48, %p49
      %s52 = sadd.s32 %s51, 1
      %p55 = scmp.eq.s32.totalorder %s17, 1
      %p56 = scmp.ne.s32.totalorder %s51, %s53
      %p57 = scmp.eq.s32.totalorder %s17, 0
      %p58 = por %p56, %p57
      %p59 = scmp.ne.s32.totalorder %s51, %s53
      %p60 = scmp.eq.s32.totalorder %s22, 1
      %p61 = por %p59, %p60
      %p62 = scmp.ne.s32.totalorder %s53, %s54
      %p63 = scmp.eq.s32.totalorder %s22, 0
      %p64 = por %p62, %p63
      %p65 = scmp.ne.s32.totalorder %s53, %s54
      %p66 = scmp.eq.s32.totalorder %s23, 1
      %p67 = por %p65, %p66
      %p69 = scmp.ne.s32.totalorder %s54, %s68
      %p70 = scmp.eq.s32.totalorder %s23, 0
      %p71 = por %p69, %p70
      %s73 = sadd.s32 %s72, 1
      %p76 = scmp.eq.s32.totalorder %s17, 1
      %p77 = scmp.ne.s32.totalorder %s72, %s74
      %p78 = scmp.eq.s32.totalorder %s17, 0
      %p79 = por %p77, %p78
      %p80 = scmp.ne.s32.totalorder %s72, %s74
      %p81 = scmp.eq.s32.totalorder %s22, 1
      %p82 = por %p80, %p81
      %p83 = scmp.ne.s32.totalorder %s74, %s75
      %p84 = scmp.eq.s32.totalorder %s22, 0
      %p85 = por %p83, %p84
      %p86 = scmp.ne.s32.totalorder %s74, %s75
      %p87 = scmp.eq.s32.totalorder %s23, 1
      %p88 = por %p86, %p87
      %p90 = scmp.ne.s32.totalorder %s75, %s89
      %p91 = scmp.eq.s32.totalorder %s23, 0
      %p92 = por %p90, %p91
      %s94 = sadd.s32 %s93, 1
      %p97 = scmp.eq.s32.totalorder %s17, 1
      %p98 = scmp.ne.s32.totalorder %s93, %s95
      %p99 = scmp.eq.s32.totalorder %s17, 0
      %p100 = por %p98, %p99
      %p101 = scmp.ne.s32.totalorder %s93, %s95
      %p102 = scmp.eq.s32.totalorder %s22, 1
      %p103 = por %p101, %p102
      %p104 = scmp.ne.s32.totalorder %s95, %s96
      %p105 = scmp.eq.s32.totalorder %s22, 0
      %p106 = por %p104, %p105
      %p107 = scmp.ne.s32.totalorder %s95, %s96
      %p108 = scmp.eq.s32.totalorder %s23, 1
      %p109 = por %p107, %p108
      %p111 = scmp.ne.s32.totalorder %s96, %s110
      %p112 = scmp.eq.s32.totalorder %s23, 0
      %p113 = por %p111, %p112
      %s115 = sadd.s32 %s114, 1
      %p118 = scmp.eq.s32.totalorder %s17, 1
      %p119 = scmp.ne.s32.totalorder %s114, %s116
      %p120 = scmp.eq.s32.totalorder %s17, 0
      %p121 = por %p119, %p120
      %p122 = scmp.ne.s32.totalorder %s114, %s116
      %p123 = scmp.eq.s32.totalorder %s22, 1
      %p124 = por %p122, %p123
      %p125 = scmp.ne.s32.totalorder %s116, %s117
      %p126 = scmp.eq.s32.totalorder %s22, 0
      %p127 = por %p125, %p126
      %p128 = scmp.ne.s32.totalorder %s116, %s117
      %p129 = scmp.eq.s32.totalorder %s23, 1
      %p130 = por %p128, %p129
      %p132 = scmp.ne.s32.totalorder %s117, %s131
      %p133 = scmp.eq.s32.totalorder %s23, 0
      %p134 = por %p132, %p133
      %s136 = sadd.s32 %s135, 1
      %p139 = scmp.eq.s32.totalorder %s17, 1
      %p140 = scmp.ne.s32.totalorder %s135, %s137
      %p141 = scmp.eq.s32.totalorder %s17, 0
      %p142 = por %p140, %p141
      %p143 = scmp.ne.s32.totalorder %s135, %s137
      %p144 = scmp.eq.s32.totalorder %s22, 1
      %p145 = por %p143, %p144
      %p146 = scmp.ne.s32.totalorder %s137, %s138
      %p147 = scmp.eq.s32.totalorder %s22, 0
      %p148 = por %p146, %p147
      %p149 = scmp.ne.s32.totalorder %s137, %s138
      %p150 = scmp.eq.s32.totalorder %s23, 1
      %p151 = por %p149, %p150
      %p153 = scmp.ne.s32.totalorder %s138, %s152
      %p154 = scmp.eq.s32.totalorder %s23, 0
      %p155 = por %p153, %p154
      %s157 = sadd.s32 %s156, 1
      %p160 = scmp.eq.s32.totalorder %s17, 1
      %p161 = scmp.ne.s32.totalorder %s156, %s158
      %p162 = scmp.eq.s32.totalorder %s17, 0
      %p163 = por %p161, %p162
      %p164 = scmp.ne.s32.totalorder %s156, %s158
      %p165 = scmp.eq.s32.totalorder %s22, 1
      %p166 = por %p164, %p165
      %p167 = scmp.ne.s32.totalorder %s158, %s159
      %p168 = scmp.eq.s32.totalorder %s22, 0
      %p169 = por %p167, %p168
      %p170 = scmp.ne.s32.totalorder %s158, %s159
      %p171 = scmp.eq.s32.totalorder %s23, 1
      %p172 = por %p170, %p171
      %p174 = scmp.ne.s32.totalorder %s159, %s173
      %p175 = scmp.eq.s32.totalorder %s23, 0
      %p176 = por %p174, %p175
      %p177 = scmp.le.s32.totalorder 1, %s17
      %p178 = scmp.lt.s32.totalorder %s17, 3
      %p179 = pnand %p177, %p178
      %p180 = pneg %p179
      // Predicated region
      $region9: #{embed_branch.1} parent=5 // pred_check
        _
      $region10: #{embed_branch.1} parent=5 // pred_check_branch
        %182 = sbr.rel (%p179) target = $region12
      $region11: #{embed_branch.1} parent=5 // pred_region
        %s183 = ssub.s32 %s17, 1
        // Predicated region
        $region13: #{embed_branch.1} parent=11 // pred_check
          %p184 = pneg %p64
        $region14: #{embed_branch.1} parent=11 // pred_check_branch
          %186 = sbr.rel (%p184) target = $region16
        $region15: #{embed_branch.1} parent=11 // pred_region
          %s188 = ssub.s32 8192, 8192
          %189 = vsyncadd [#allocation8], %s188
          %s190 = sshll.u32 [#allocation7], 4
          %s191 = int_to_ptr.vmem [resolvable:$true] %s190
          %196 = dma.hbm_to_vmem [thread:$0]  %s1, 8192, %s191, [#allocation8], 256, 256, 16
        $region16: #{embed_branch.1} parent=11 // pred_fallthru
          _
        // Predicated region
        $region17: #{embed_branch.1} parent=11 // pred_check
          %p197 = pneg %p85
        $region18: #{embed_branch.1} parent=11 // pred_check_branch
          %199 = sbr.rel (%p197) target = $region20
        $region19: #{embed_branch.1} parent=11 // pred_region
          _
        $region20: #{embed_branch.1} parent=11 // pred_fallthru
          _
        // Predicated region
        $region21: #{embed_branch.1} parent=11 // pred_check
          %p200 = pneg %p106
        $region22: #{embed_branch.1} parent=11 // pred_check_branch
          %202 = sbr.rel (%p200) target = $region24
        $region23: #{embed_branch.1} parent=11 // pred_region
          _
        $region24: #{embed_branch.1} parent=11 // pred_fallthru
          _
        // Predicated region
        $region25: #{embed_branch.1} parent=11 // pred_check
          %p203 = pneg %p127
        $region26: #{embed_branch.1} parent=11 // pred_check_branch
          %205 = sbr.rel (%p203) target = $region28
        $region27: #{embed_branch.1} parent=11 // pred_region
          %s207 = ssub.s32 8192, 8192
          %208 = vsyncadd [#allocation8], %s207
          %s209 = sshll.u32 [#allocation9], 4
          %s210 = int_to_ptr.vmem [resolvable:$true] %s209
          %215 = dma.hbm_to_vmem [thread:$0]  %s4, 8192, %s210, [#allocation8], 256, 256, 16
        $region28: #{embed_branch.1} parent=11 // pred_fallthru
          _
        // Predicated region
        $region29: #{embed_branch.1} parent=11 // pred_check
          %p216 = pneg %p148
        $region30: #{embed_branch.1} parent=11 // pred_check_branch
          %218 = sbr.rel (%p216) target = $region32
        $region31: #{embed_branch.1} parent=11 // pred_region
          _
        $region32: #{embed_branch.1} parent=11 // pred_fallthru
          _
      $region12: #{embed_branch.1} parent=5 // pred_fallthru
        _
      %p219 = scmp.lt.s32.totalorder %s17, 2
      // Predicated region
      $region33: #{embed_branch.1} parent=5 // pred_check
        %p220 = pneg %p219
      $region34: #{embed_branch.1} parent=5 // pred_check_branch
        %222 = sbr.rel (%p220) target = $region36
      $region35: #{embed_branch.1} parent=5 // pred_region
        // Predicated region
        $region37: #{embed_branch.1} parent=35 // pred_check
          %p223 = pneg %p37
        $region38: #{embed_branch.1} parent=35 // pred_check_branch
          %225 = sbr.rel (%p223) target = $region40
        $region39: #{embed_branch.1} parent=35 // pred_region
          %s226 = sand.u32 %s27, 1
          %s227 = scalar_lea.sflag [#allocation5], %s226
          %s228 = sand.u32 %s27, 1
          %s229 = smul.addr %s228, 512
          %s230 = scalar_lea.vmem [#allocation4], %s229
          %s231 = smul.u32 32, %s17
          %s233 = ssub.s32 8192, 8192
          %234 = vsyncadd %s227, %s233
          %s235 = smul.addr %s231, 2
          %s236 = smul.addr %s235, 128
          %s237 = scalar_lea.hbm %s0, %s236
          %s238 = sshll.u32 %s230, 4
          %s239 = int_to_ptr.vmem [resolvable:$true] %s238
          %244 = dma.hbm_to_vmem [thread:$0]  %s237, 8192, %s239, %s227, 256, 256, 16
        $region40: #{embed_branch.1} parent=35 // pred_fallthru
          _
      $region36: #{embed_branch.1} parent=5 // pred_fallthru
        _
      %p245 = scmp.le.s32.totalorder 1, %s17
      %p246 = scmp.lt.s32.totalorder %s17, 3
      %p247 = pnand %p245, %p246
      %p248 = pneg %p247
      // Predicated region
      $region41: #{embed_branch.1} parent=5 // pred_check
        _
      $region42: #{embed_branch.1} parent=5 // pred_check_branch
        %250 = sbr.rel (%p247) target = $region44
      $region43: #{embed_branch.1} parent=5 // pred_region
        %s251 = ssub.s32 %s17, 1
        %s252 = sand.u32 %s30, 1
        %s253 = scalar_lea.sflag [#allocation5], %s252
        %s254 = sand.u32 %s30, 1
        %s255 = smul.addr %s254, 512
        %s256 = scalar_lea.vmem [#allocation4], %s255
        // Predicated region
        $region45: #{embed_branch.1} parent=43 // pred_check
          %p257 = pneg %p43
        $region46: #{embed_branch.1} parent=43 // pred_check_branch
          %259 = sbr.rel (%p257) target = $region48
        $region47: #{embed_branch.1} parent=43 // pred_region
          %260 = dma.done %s253, 8192
        $region48: #{embed_branch.1} parent=43 // pred_fallthru
          _
        // Predicated region
        $region49: #{embed_branch.1} parent=43 // pred_check
          %p261 = pneg %p64
        $region50: #{embed_branch.1} parent=43 // pred_check_branch
          %263 = sbr.rel (%p261) target = $region52
        $region51: #{embed_branch.1} parent=43 // pred_region
          %264 = dma.done [#allocation8], 8192
        $region52: #{embed_branch.1} parent=43 // pred_fallthru
          _
        // Predicated region
        $region53: #{embed_branch.1} parent=43 // pred_check
          %p265 = pneg %p127
        $region54: #{embed_branch.1} parent=43 // pred_check_branch
          %267 = sbr.rel (%p265) target = $region56
        $region55: #{embed_branch.1} parent=43 // pred_region
          %268 = dma.done [#allocation8], 8192
        $region56: #{embed_branch.1} parent=43 // pred_fallthru
          _
        %s269 = sand.u32 %s30, 1
        %s270 = scalar_lea.sflag [#allocation5], %s269
        %s271 = sand.u32 %s30, 1
        %s272 = smul.addr %s271, 512
        %s273 = scalar_lea.vmem [#allocation4], %s272
        %p274 = pneg %p43
        %p275 = pneg %p40
        %p276 = pneg %p64
        %p277 = pneg %p61
        %p278 = pneg %p85
        %p279 = pneg %p82
        %p280 = pneg %p106
        %p281 = pneg %p103
        %p282 = pneg %p127
        %p283 = pneg %p124
        %p284 = pneg %p148
        %p285 = pneg %p145
        %p286 = pneg %p169
        %p287 = pneg %p166
        %s288 = smul.u32 32, %s22
        %p289 = scmp.eq.s32.totalorder %s22, 0
        // Predicated region
        $region57: #{embed_branch.1} parent=43 // pred_check
          %p290 = pneg %p289
        $region58: #{embed_branch.1} parent=43 // pred_check_branch
          %292 = sbr.rel (%p290) target = $region60
        $region59: #{embed_branch.1} parent=43 // pred_region
          %v293 = vlaneseq
          %vm294 = vcmp.ge.s32.totalorder %v293, 0
          %vm295 = vcmp.lt.s32.totalorder %v293, 256
          %vm296 = vmand %vm294, %vm295
          %297 = vst.msk [vmem:[#allocation2] sm:$0x3] %vm296, 0.0
          %298 = vst.msk [vmem:[#allocation3] sm:$0x3] %vm296, 0.0
        $region60: #{embed_branch.1} parent=43 // pred_fallthru
          _
        %v299 = vld [vmem:[%s256] sm:$0xff]
        %v300 = vld [vmem:[%s256 + $0x8] sm:$0xff]
        %v301 = vld [vmem:[%s256 + $0x10] sm:$0xff]
        %v302 = vld [vmem:[%s256 + $0x18] sm:$0xff]
        %v303 = vld [vmem:[%s256 + $0x20] sm:$0xff]
        %v304 = vld [vmem:[%s256 + $0x28] sm:$0xff]
        %v305 = vld [vmem:[%s256 + $0x30] sm:$0xff]
        %v306 = vld [vmem:[%s256 + $0x38] sm:$0xff]
        %v307 = vld [vmem:[%s256 + $0x40] sm:$0xff]
        %v308 = vld [vmem:[%s256 + $0x48] sm:$0xff]
        %v309 = vld [vmem:[%s256 + $0x50] sm:$0xff]
        %v310 = vld [vmem:[%s256 + $0x58] sm:$0xff]
        %v311 = vld [vmem:[%s256 + $0x60] sm:$0xff]
        %v312 = vld [vmem:[%s256 + $0x68] sm:$0xff]
        %v313 = vld [vmem:[%s256 + $0x70] sm:$0xff]
        %v314 = vld [vmem:[%s256 + $0x78] sm:$0xff]
        %v315 = vld [vmem:[%s256 + $0x80] sm:$0xff]
        %v316 = vld [vmem:[%s256 + $0x88] sm:$0xff]
        %v317 = vld [vmem:[%s256 + $0x90] sm:$0xff]
        %v318 = vld [vmem:[%s256 + $0x98] sm:$0xff]
        %v319 = vld [vmem:[%s256 + $0xa0] sm:$0xff]
        %v320 = vld [vmem:[%s256 + $0xa8] sm:$0xff]
        %v321 = vld [vmem:[%s256 + $0xb0] sm:$0xff]
        %v322 = vld [vmem:[%s256 + $0xb8] sm:$0xff]
        %v323 = vld [vmem:[%s256 + $0xc0] sm:$0xff]
        %v324 = vld [vmem:[%s256 + $0xc8] sm:$0xff]
        %v325 = vld [vmem:[%s256 + $0xd0] sm:$0xff]
        %v326 = vld [vmem:[%s256 + $0xd8] sm:$0xff]
        %v327 = vld [vmem:[%s256 + $0xe0] sm:$0xff]
        %v328 = vld [vmem:[%s256 + $0xe8] sm:$0xff]
        %v329 = vld [vmem:[%s256 + $0xf0] sm:$0xff]
        %v330 = vld [vmem:[%s256 + $0xf8] sm:$0xff]
        %v331 = vld [vmem:[%s256 + $0x100] sm:$0xff]
        %v332 = vld [vmem:[%s256 + $0x108] sm:$0xff]
        %v333 = vld [vmem:[%s256 + $0x110] sm:$0xff]
        %v334 = vld [vmem:[%s256 + $0x118] sm:$0xff]
        %v335 = vld [vmem:[%s256 + $0x120] sm:$0xff]
        %v336 = vld [vmem:[%s256 + $0x128] sm:$0xff]
        %v337 = vld [vmem:[%s256 + $0x130] sm:$0xff]
        %v338 = vld [vmem:[%s256 + $0x138] sm:$0xff]
        %v339 = vld [vmem:[%s256 + $0x140] sm:$0xff]
        %v340 = vld [vmem:[%s256 + $0x148] sm:$0xff]
        %v341 = vld [vmem:[%s256 + $0x150] sm:$0xff]
        %v342 = vld [vmem:[%s256 + $0x158] sm:$0xff]
        %v343 = vld [vmem:[%s256 + $0x160] sm:$0xff]
        %v344 = vld [vmem:[%s256 + $0x168] sm:$0xff]
        %v345 = vld [vmem:[%s256 + $0x170] sm:$0xff]
        %v346 = vld [vmem:[%s256 + $0x178] sm:$0xff]
        %v347 = vld [vmem:[%s256 + $0x180] sm:$0xff]
        %v348 = vld [vmem:[%s256 + $0x188] sm:$0xff]
        %v349 = vld [vmem:[%s256 + $0x190] sm:$0xff]
        %v350 = vld [vmem:[%s256 + $0x198] sm:$0xff]
        %v351 = vld [vmem:[%s256 + $0x1a0] sm:$0xff]
        %v352 = vld [vmem:[%s256 + $0x1a8] sm:$0xff]
        %v353 = vld [vmem:[%s256 + $0x1b0] sm:$0xff]
        %v354 = vld [vmem:[%s256 + $0x1b8] sm:$0xff]
        %v355 = vld [vmem:[%s256 + $0x1c0] sm:$0xff]
        %v356 = vld [vmem:[%s256 + $0x1c8] sm:$0xff]
        %v357 = vld [vmem:[%s256 + $0x1d0] sm:$0xff]
        %v358 = vld [vmem:[%s256 + $0x1d8] sm:$0xff]
        %v359 = vld [vmem:[%s256 + $0x1e0] sm:$0xff]
        %v360 = vld [vmem:[%s256 + $0x1e8] sm:$0xff]
        %v361 = vld [vmem:[%s256 + $0x1f0] sm:$0xff]
        %v362 = vld [vmem:[%s256 + $0x1f8] sm:$0xff]
        %v363 = vld [vmem:[#allocation7] sm:$0xff]
        %v364 = vld [vmem:[#allocation7 + $0x8] sm:$0xff]
        %v365 = vld [vmem:[#allocation7 + $0x10] sm:$0xff]
        %v366 = vld [vmem:[#allocation7 + $0x18] sm:$0xff]
        %v367 = vld [vmem:[#allocation7 + $0x20] sm:$0xff]
        %v368 = vld [vmem:[#allocation7 + $0x28] sm:$0xff]
        %v369 = vld [vmem:[#allocation7 + $0x30] sm:$0xff]
        %v370 = vld [vmem:[#allocation7 + $0x38] sm:$0xff]
        %v371 = vld [vmem:[#allocation7 + $0x40] sm:$0xff]
        %v372 = vld [vmem:[#allocation7 + $0x48] sm:$0xff]
        %v373 = vld [vmem:[#allocation7 + $0x50] sm:$0xff]
        %v374 = vld [vmem:[#allocation7 + $0x58] sm:$0xff]
        %v375 = vld [vmem:[#allocation7 + $0x60] sm:$0xff]
        %v376 = vld [vmem:[#allocation7 + $0x68] sm:$0xff]
        %v377 = vld [vmem:[#allocation7 + $0x70] sm:$0xff]
        %v378 = vld [vmem:[#allocation7 + $0x78] sm:$0xff]
        %v379 = vld [vmem:[#allocation7 + $0x80] sm:$0xff]
        %v380 = vld [vmem:[#allocation7 + $0x88] sm:$0xff]
        %v381 = vld [vmem:[#allocation7 + $0x90] sm:$0xff]
        %v382 = vld [vmem:[#allocation7 + $0x98] sm:$0xff]
        %v383 = vld [vmem:[#allocation7 + $0xa0] sm:$0xff]
        %v384 = vld [vmem:[#allocation7 + $0xa8] sm:$0xff]
        %v385 = vld [vmem:[#allocation7 + $0xb0] sm:$0xff]
        %v386 = vld [vmem:[#allocation7 + $0xb8] sm:$0xff]
        %v387 = vld [vmem:[#allocation7 + $0xc0] sm:$0xff]
        %v388 = vld [vmem:[#allocation7 + $0xc8] sm:$0xff]
        %v389 = vld [vmem:[#allocation7 + $0xd0] sm:$0xff]
        %v390 = vld [vmem:[#allocation7 + $0xd8] sm:$0xff]
        %v391 = vld [vmem:[#allocation7 + $0xe0] sm:$0xff]
        %v392 = vld [vmem:[#allocation7 + $0xe8] sm:$0xff]
        %v393 = vld [vmem:[#allocation7 + $0xf0] sm:$0xff]
        %v394 = vld [vmem:[#allocation7 + $0xf8] sm:$0xff]
        %v395 = vld [vmem:[#allocation7 + $0x100] sm:$0xff]
        %v396 = vld [vmem:[#allocation7 + $0x108] sm:$0xff]
        %v397 = vld [vmem:[#allocation7 + $0x110] sm:$0xff]
        %v398 = vld [vmem:[#allocation7 + $0x118] sm:$0xff]
        %v399 = vld [vmem:[#allocation7 + $0x120] sm:$0xff]
        %v400 = vld [vmem:[#allocation7 + $0x128] sm:$0xff]
        %v401 = vld [vmem:[#allocation7 + $0x130] sm:$0xff]
        %v402 = vld [vmem:[#allocation7 + $0x138] sm:$0xff]
        %v403 = vld [vmem:[#allocation7 + $0x140] sm:$0xff]
        %v404 = vld [vmem:[#allocation7 + $0x148] sm:$0xff]
        %v405 = vld [vmem:[#allocation7 + $0x150] sm:$0xff]
        %v406 = vld [vmem:[#allocation7 + $0x158] sm:$0xff]
        %v407 = vld [vmem:[#allocation7 + $0x160] sm:$0xff]
        %v408 = vld [vmem:[#allocation7 + $0x168] sm:$0xff]
        %v409 = vld [vmem:[#allocation7 + $0x170] sm:$0xff]
        %v410 = vld [vmem:[#allocation7 + $0x178] sm:$0xff]
        %v411 = vld [vmem:[#allocation7 + $0x180] sm:$0xff]
        %v412 = vld [vmem:[#allocation7 + $0x188] sm:$0xff]
        %v413 = vld [vmem:[#allocation7 + $0x190] sm:$0xff]
        %v414 = vld [vmem:[#allocation7 + $0x198] sm:$0xff]
        %v415 = vld [vmem:[#allocation7 + $0x1a0] sm:$0xff]
        %v416 = vld [vmem:[#allocation7 + $0x1a8] sm:$0xff]
        %v417 = vld [vmem:[#allocation7 + $0x1b0] sm:$0xff]
        %v418 = vld [vmem:[#allocation7 + $0x1b8] sm:$0xff]
        %v419 = vld [vmem:[#allocation7 + $0x1c0] sm:$0xff]
        %v420 = vld [vmem:[#allocation7 + $0x1c8] sm:$0xff]
        %v421 = vld [vmem:[#allocation7 + $0x1d0] sm:$0xff]
        %v422 = vld [vmem:[#allocation7 + $0x1d8] sm:$0xff]
        %v423 = vld [vmem:[#allocation7 + $0x1e0] sm:$0xff]
        %v424 = vld [vmem:[#allocation7 + $0x1e8] sm:$0xff]
        %v425 = vld [vmem:[#allocation7 + $0x1f0] sm:$0xff]
        %v426 = vld [vmem:[#allocation7 + $0x1f8] sm:$0xff]
        %427 = vmatprep.subr.mxu0 %v364
        %428 = vmatpush1.msra.mxu0 %v363
        %429 = vmatprep.subr.mxu0 %v366
        %430 = vmatpush1.msra.mxu0 %v365
        %431 = vmatprep.subr.mxu0 %v368
        %432 = vmatpush1.msra.mxu0 %v367
        %433 = vmatprep.subr.mxu0 %v370
        %434 = vmatpush1.msra.mxu0 %v369
        %435 = vmatprep.subr.mxu0 %v372
        %436 = vmatpush1.msra.mxu0 %v371
        %437 = vmatprep.subr.mxu0 %v374
        %438 = vmatpush1.msra.mxu0 %v373
        %439 = vmatprep.subr.mxu0 %v376
        %440 = vmatpush1.msra.mxu0 %v375
        %441 = vmatprep.subr.mxu0 %v378
        %442 = vmatpush1.msra.mxu0 %v377
        %443 = vmatprep.subr.mxu0 %v380
        %444 = vmatpush1.msra.mxu0 %v379
        %445 = vmatprep.subr.mxu0 %v382
        %446 = vmatpush1.msra.mxu0 %v381
        %447 = vmatprep.subr.mxu0 %v384
        %448 = vmatpush1.msra.mxu0 %v383
        %449 = vmatprep.subr.mxu0 %v386
        %450 = vmatpush1.msra.mxu0 %v385
        %451 = vmatprep.subr.mxu0 %v388
        %452 = vmatpush1.msra.mxu0 %v387
        %453 = vmatprep.subr.mxu0 %v390
        %454 = vmatpush1.msra.mxu0 %v389
        %455 = vmatprep.subr.mxu0 %v392
        %456 = vmatpush1.msra.mxu0 %v391
        %457 = vmatprep.subr.mxu0 %v394
        %458 = vmatpush1.msra.mxu0 %v393
        %459 = vmatprep.subr.mxu0 %v396
        %460 = vmatpush1.msra.mxu0 %v395
        %461 = vmatprep.subr.mxu0 %v398
        %462 = vmatpush1.msra.mxu0 %v397
        %463 = vmatprep.subr.mxu0 %v400
        %464 = vmatpush1.msra.mxu0 %v399
        %465 = vmatprep.subr.mxu0 %v402
        %466 = vmatpush1.msra.mxu0 %v401
        %467 = vmatprep.subr.mxu0 %v404
        %468 = vmatpush1.msra.mxu0 %v403
        %469 = vmatprep.subr.mxu0 %v406
        %470 = vmatpush1.msra.mxu0 %v405
        %471 = vmatprep.subr.mxu0 %v408
        %472 = vmatpush1.msra.mxu0 %v407
        %473 = vmatprep.subr.mxu0 %v410
        %474 = vmatpush1.msra.mxu0 %v409
        %475 = vmatprep.subr.mxu0 %v412
        %476 = vmatpush1.msra.mxu0 %v411
        %477 = vmatprep.subr.mxu0 %v414
        %478 = vmatpush1.msra.mxu0 %v413
        %479 = vmatprep.subr.mxu0 %v416
        %480 = vmatpush1.msra.mxu0 %v415
        %481 = vmatprep.subr.mxu0 %v418
        %482 = vmatpush1.msra.mxu0 %v417
        %483 = vmatprep.subr.mxu0 %v420
        %484 = vmatpush1.msra.mxu0 %v419
        %485 = vmatprep.subr.mxu0 %v422
        %486 = vmatpush1.msra.mxu0 %v421
        %487 = vmatprep.subr.mxu0 %v424
        %488 = vmatpush1.msra.mxu0 %v423
        %489 = vmatprep.subr.mxu0 %v426
        %490 = vmatpush1.msra.mxu0 %v425
        %491 = vmatprep.mubr.f32.mxu0 %v300
        %492 = vmatmul.mubr.f32.gmra.mrb[0].mxu0 %v299
        %v493 = vpop.f32.mrb[0].mxu0
        %v494 = vadd.f32 0.0, %v493
        %v495 = vpop.f32.mrb[0].mxu0
        %v496 = vadd.f32 0.0, %v495
        %497 = vmatprep.mubr.f32.mxu0 %v302
        %498 = vmatmul.mubr.f32.gmra.mrb[0].mxu0 %v301
        %v499 = vpop.f32.mrb[0].mxu0
        %v500 = vadd.f32 0.0, %v499
        %v501 = vpop.f32.mrb[0].mxu0
        %v502 = vadd.f32 0.0, %v501
        %503 = vmatprep.mubr.f32.mxu0 %v304
        %504 = vmatmul.mubr.f32.gmra.mrb[0].mxu0 %v303
        %v505 = vpop.f32.mrb[0].mxu0
        %v506 = vadd.f32 0.0, %v505
        %v507 = vpop.f32.mrb[0].mxu0
        %v508 = vadd.f32 0.0, %v507
        %509 = vmatprep.mubr.f32.mxu0 %v306
        %510 = vmatmul.mubr.f32.gmra.mrb[0].mxu0 %v305
        %v511 = vpop.f32.mrb[0].mxu0
        %v512 = vadd.f32 0.0, %v511
        %v513 = vpop.f32.mrb[0].mxu0
        %v514 = vadd.f32 0.0, %v513
        %515 = vmatprep.mubr.f32.mxu0 %v308
        %516 = vmatmul.mubr.f32.gmra.mrb[0].mxu0 %v307
        %v517 = vpop.f32.mrb[0].mxu0
        %v518 = vadd.f32 0.0, %v517
        %v519 = vpop.f32.mrb[0].mxu0
        %v520 = vadd.f32 0.0, %v519
        %521 = vmatprep.mubr.f32.mxu0 %v310
        %522 = vmatmul.mubr.f32.gmra.mrb[0].mxu0 %v309
        %v523 = vpop.f32.mrb[0].mxu0
        %v524 = vadd.f32 0.0, %v523
        %v525 = vpop.f32.mrb[0].mxu0
        %v526 = vadd.f32 0.0, %v525
        %527 = vmatprep.mubr.f32.mxu0 %v312
        %528 = vmatmul.mubr.f32.gmra.mrb[0].mxu0 %v311
        %v529 = vpop.f32.mrb[0].mxu0
        %v530 = vadd.f32 0.0, %v529
        %v531 = vpop.f32.mrb[0].mxu0
        %v532 = vadd.f32 0.0, %v531
        %533 = vmatprep.mubr.f32.mxu0 %v314
        %534 = vmatmul.mubr.f32.gmra.mrb[0].mxu0 %v313
        %v535 = vpop.f32.mrb[0].mxu0
        %v536 = vadd.f32 0.0, %v535
        %v537 = vpop.f32.mrb[0].mxu0
        %v538 = vadd.f32 0.0, %v537
        %539 = vmatprep.mubr.f32.mxu0 %v316
        %540 = vmatmul.mubr.f32.gmra.mrb[0].mxu0 %v315
        %v541 = vpop.f32.mrb[0].mxu0
        %v542 = vadd.f32 0.0, %v541
        %v543 = vpop.f32.mrb[0].mxu0
        %v544 = vadd.f32 0.0, %v543
        %545 = vmatprep.mubr.f32.mxu0 %v318
        %546 = vmatmul.mubr.f32.gmra.mrb[0].mxu0 %v317
        %v547 = vpop.f32.mrb[0].mxu0
        %v548 = vadd.f32 0.0, %v547
        %v549 = vpop.f32.mrb[0].mxu0
        %v550 = vadd.f32 0.0, %v549
        %551 = vmatprep.mubr.f32.mxu0 %v320
        %552 = vmatmul.mubr.f32.gmra.mrb[0].mxu0 %v319
        %v553 = vpop.f32.mrb[0].mxu0
        %v554 = vadd.f32 0.0, %v553
        %v555 = vpop.f32.mrb[0].mxu0
        %v556 = vadd.f32 0.0, %v555
        %557 = vmatprep.mubr.f32.mxu0 %v322
        %558 = vmatmul.mubr.f32.gmra.mrb[0].mxu0 %v321
        %v559 = vpop.f32.mrb[0].mxu0
        %v560 = vadd.f32 0.0, %v559
        %v561 = vpop.f32.mrb[0].mxu0
        %v562 = vadd.f32 0.0, %v561
        %563 = vmatprep.mubr.f32.mxu0 %v324
        %564 = vmatmul.mubr.f32.gmra.mrb[0].mxu0 %v323
        %v565 = vpop.f32.mrb[0].mxu0
        %v566 = vadd.f32 0.0, %v565
        %v567 = vpop.f32.mrb[0].mxu0
        %v568 = vadd.f32 0.0, %v567
        %569 = vmatprep.mubr.f32.mxu0 %v326
        %570 = vmatmul.mubr.f32.gmra.mrb[0].mxu0 %v325
        %v571 = vpop.f32.mrb[0].mxu0
        %v572 = vadd.f32 0.0, %v571
        %v573 = vpop.f32.mrb[0].mxu0
        %v574 = vadd.f32 0.0, %v573
        %575 = vmatprep.mubr.f32.mxu0 %v328
        %576 = vmatmul.mubr.f32.gmra.mrb[0].mxu0 %v327
        %v577 = vpop.f32.mrb[0].mxu0
        %v578 = vadd.f32 0.0, %v577
        %v579 = vpop.f32.mrb[0].mxu0
        %v580 = vadd.f32 0.0, %v579
        %581 = vmatprep.mubr.f32.mxu0 %v330
        %582 = vmatmul.mubr.f32.gmra.mrb[0].mxu0 %v329
        %v583 = vpop.f32.mrb[0].mxu0
        %v584 = vadd.f32 0.0, %v583
        %v585 = vpop.f32.mrb[0].mxu0
        %v586 = vadd.f32 0.0, %v585
        %587 = vmatprep.mubr.f32.mxu0 %v332
        %588 = vmatmul.mubr.f32.gmra.mrb[0].mxu0 %v331
        %v589 = vpop.f32.mrb[0].mxu0
        %v590 = vadd.f32 0.0, %v589
        %v591 = vpop.f32.mrb[0].mxu0
        %v592 = vadd.f32 0.0, %v591
        %593 = vmatprep.mubr.f32.mxu0 %v334
        %594 = vmatmul.mubr.f32.gmra.mrb[0].mxu0 %v333
        %v595 = vpop.f32.mrb[0].mxu0
        %v596 = vadd.f32 0.0, %v595
        %v597 = vpop.f32.mrb[0].mxu0
        %v598 = vadd.f32 0.0, %v597
        %599 = vmatprep.mubr.f32.mxu0 %v336
        %600 = vmatmul.mubr.f32.gmra.mrb[0].mxu0 %v335
        %v601 = vpop.f32.mrb[0].mxu0
        %v602 = vadd.f32 0.0, %v601
        %v603 = vpop.f32.mrb[0].mxu0
        %v604 = vadd.f32 0.0, %v603
        %605 = vmatprep.mubr.f32.mxu0 %v338
        %606 = vmatmul.mubr.f32.gmra.mrb[0].mxu0 %v337
        %v607 = vpop.f32.mrb[0].mxu0
        %v608 = vadd.f32 0.0, %v607
        %v609 = vpop.f32.mrb[0].mxu0
        %v610 = vadd.f32 0.0, %v609
        %611 = vmatprep.mubr.f32.mxu0 %v340
        %612 = vmatmul.mubr.f32.gmra.mrb[0].mxu0 %v339
        %v613 = vpop.f32.mrb[0].mxu0
        %v614 = vadd.f32 0.0, %v613
        %v615 = vpop.f32.mrb[0].mxu0
        %v616 = vadd.f32 0.0, %v615
        %617 = vmatprep.mubr.f32.mxu0 %v342
        %618 = vmatmul.mubr.f32.gmra.mrb[0].mxu0 %v341
        %v619 = vpop.f32.mrb[0].mxu0
        %v620 = vadd.f32 0.0, %v619
        %v621 = vpop.f32.mrb[0].mxu0
        %v622 = vadd.f32 0.0, %v621
        %623 = vmatprep.mubr.f32.mxu0 %v344
        %624 = vmatmul.mubr.f32.gmra.mrb[0].mxu0 %v343
        %v625 = vpop.f32.mrb[0].mxu0
        %v626 = vadd.f32 0.0, %v625
        %v627 = vpop.f32.mrb[0].mxu0
        %v628 = vadd.f32 0.0, %v627
        %629 = vmatprep.mubr.f32.mxu0 %v346
        %630 = vmatmul.mubr.f32.gmra.mrb[0].mxu0 %v345
        %v631 = vpop.f32.mrb[0].mxu0
        %v632 = vadd.f32 0.0, %v631
        %v633 = vpop.f32.mrb[0].mxu0
        %v634 = vadd.f32 0.0, %v633
        %635 = vmatprep.mubr.f32.mxu0 %v348
        %636 = vmatmul.mubr.f32.gmra.mrb[0].mxu0 %v347
        %v637 = vpop.f32.mrb[0].mxu0
        %v638 = vadd.f32 0.0, %v637
        %v639 = vpop.f32.mrb[0].mxu0
        %v640 = vadd.f32 0.0, %v639
        %641 = vmatprep.mubr.f32.mxu0 %v350
        %642 = vmatmul.mubr.f32.gmra.mrb[0].mxu0 %v349
        %v643 = vpop.f32.mrb[0].mxu0
        %v644 = vadd.f32 0.0, %v643
        %v645 = vpop.f32.mrb[0].mxu0
        %v646 = vadd.f32 0.0, %v645
        %647 = vmatprep.mubr.f32.mxu0 %v352
        %648 = vmatmul.mubr.f32.gmra.mrb[0].mxu0 %v351
        %v649 = vpop.f32.mrb[0].mxu0
        %v650 = vadd.f32 0.0, %v649
        %v651 = vpop.f32.mrb[0].mxu0
        %v652 = vadd.f32 0.0, %v651
        %653 = vmatprep.mubr.f32.mxu0 %v354
        %654 = vmatmul.mubr.f32.gmra.mrb[0].mxu0 %v353
        %v655 = vpop.f32.mrb[0].mxu0
        %v656 = vadd.f32 0.0, %v655
        %v657 = vpop.f32.mrb[0].mxu0
        %v658 = vadd.f32 0.0, %v657
        %659 = vmatprep.mubr.f32.mxu0 %v356
        %660 = vmatmul.mubr.f32.gmra.mrb[0].mxu0 %v355
        %v661 = vpop.f32.mrb[0].mxu0
        %v662 = vadd.f32 0.0, %v661
        %v663 = vpop.f32.mrb[0].mxu0
        %v664 = vadd.f32 0.0, %v663
        %665 = vmatprep.mubr.f32.mxu0 %v358
        %666 = vmatmul.mubr.f32.gmra.mrb[0].mxu0 %v357
        %v667 = vpop.f32.mrb[0].mxu0
        %v668 = vadd.f32 0.0, %v667
        %v669 = vpop.f32.mrb[0].mxu0
        %v670 = vadd.f32 0.0, %v669
        %671 = vmatprep.mubr.f32.mxu0 %v360
        %672 = vmatmul.mubr.f32.gmra.mrb[0].mxu0 %v359
        %v673 = vpop.f32.mrb[0].mxu0
        %v674 = vadd.f32 0.0, %v673
        %v675 = vpop.f32.mrb[0].mxu0
        %v676 = vadd.f32 0.0, %v675
        %677 = vmatprep.mubr.f32.mxu0 %v362
        %678 = vmatmul.mubr.f32.gmra.mrb[0].mxu0 %v361
        %v679 = vpop.f32.mrb[0].mxu0
        %v680 = vadd.f32 0.0, %v679
        %v681 = vpop.f32.mrb[0].mxu0
        %v682 = vadd.f32 0.0, %v681
        %683 = vdwg.mxu0
        %v684 = vld [vmem:[#allocation2] sm:$0x3]
        %685 = vmatprep.subr.mxu0 %v496
        %686 = vmatpush1.msra.mxu0 %v494
        %687 = vmatprep.subr.mxu0 %v502
        %688 = vmatpush1.msra.mxu0 %v500
        %689 = vmatprep.subr.mxu0 %v508
        %690 = vmatpush1.msra.mxu0 %v506
        %691 = vmatprep.subr.mxu0 %v514
        %692 = vmatpush1.msra.mxu0 %v512
        %693 = vmatprep.subr.mxu0 %v520
        %694 = vmatpush1.msra.mxu0 %v518
        %695 = vmatprep.subr.mxu0 %v526
        %696 = vmatpush1.msra.mxu0 %v524
        %697 = vmatprep.subr.mxu0 %v532
        %698 = vmatpush1.msra.mxu0 %v530
        %699 = vmatprep.subr.mxu0 %v538
        %700 = vmatpush1.msra.mxu0 %v536
        %701 = vmatprep.subr.mxu0 %v544
        %702 = vmatpush1.msra.mxu0 %v542
        %703 = vmatprep.subr.mxu0 %v550
        %704 = vmatpush1.msra.mxu0 %v548
        %705 = vmatprep.subr.mxu0 %v556
        %706 = vmatpush1.msra.mxu0 %v554
        %707 = vmatprep.subr.mxu0 %v562
        %708 = vmatpush1.msra.mxu0 %v560
        %709 = vmatprep.subr.mxu0 %v568
        %710 = vmatpush1.msra.mxu0 %v566
        %711 = vmatprep.subr.mxu0 %v574
        %712 = vmatpush1.msra.mxu0 %v572
        %713 = vmatprep.subr.mxu0 %v580
        %714 = vmatpush1.msra.mxu0 %v578
        %715 = vmatprep.subr.mxu0 %v586
        %716 = vmatpush1.msra.mxu0 %v584
        %717 = vmatprep.subr.mxu0 %v592
        %718 = vmatpush1.msra.mxu0 %v590
        %719 = vmatprep.subr.mxu0 %v598
        %720 = vmatpush1.msra.mxu0 %v596
        %721 = vmatprep.subr.mxu0 %v604
        %722 = vmatpush1.msra.mxu0 %v602
        %723 = vmatprep.subr.mxu0 %v610
        %724 = vmatpush1.msra.mxu0 %v608
        %725 = vmatprep.subr.mxu0 %v616
        %726 = vmatpush1.msra.mxu0 %v614
        %727 = vmatprep.subr.mxu0 %v622
        %728 = vmatpush1.msra.mxu0 %v620
        %729 = vmatprep.subr.mxu0 %v628
        %730 = vmatpush1.msra.mxu0 %v626
        %731 = vmatprep.subr.mxu0 %v634
        %732 = vmatpush1.msra.mxu0 %v632
        %733 = vmatprep.subr.mxu0 %v640
        %734 = vmatpush1.msra.mxu0 %v638
        %735 = vmatprep.subr.mxu0 %v646
        %736 = vmatpush1.msra.mxu0 %v644
        %737 = vmatprep.subr.mxu0 %v652
        %738 = vmatpush1.msra.mxu0 %v650
        %739 = vmatprep.subr.mxu0 %v658
        %740 = vmatpush1.msra.mxu0 %v656
        %741 = vmatprep.subr.mxu0 %v664
        %742 = vmatpush1.msra.mxu0 %v662
        %743 = vmatprep.subr.mxu0 %v670
        %744 = vmatpush1.msra.mxu0 %v668
        %745 = vmatprep.subr.mxu0 %v676
        %746 = vmatpush1.msra.mxu0 %v674
        %747 = vmatprep.subr.mxu0 %v682
        %748 = vmatpush1.msra.mxu0 %v680
        %749 = vmatprep.mubr.f32.mxu0 1.0
        %750 = vmatmul.mubr.f32.gmra.mrb[0].mxu0 1.0
        %v751 = vpop.f32.mrb[0].mxu0
        %v752 = vadd.f32 0.0, %v751
        %v753 = vpop.f32.mrb[0].mxu0
        %v754 = vadd.f32 0.0, %v753
        %755 = vdwg.mxu0
        %v758 = vcombine.low %v752, %v754
        %v760 = vunpack.c.l.s4 1966171168
        %v761 = vunpack.c.0.s8 %v760
        %v762 = vlaneseq
        %v763 = vshrl.u32 %v762, 7
        %v764 = vsub.s32 %v761, %v763
        %v765 = vrot.slane %v758, %v764
        %v767 = vunpack.c.l.s4 1966171168
        %v768 = vunpack.c.0.s8 %v767
        %v769 = vlaneseq
        %v770 = vshrl.u32 %v769, 7
        %v771 = vsub.s32 %v768, %v770
        %v772 = vrot.slane %v765, %v771
        %v774 = vadd.f32 %v684, %v772
        %v775 = vlaneseq
        %vm776 = vcmp.ge.s32.totalorder %v775, 0
        %vm777 = vcmp.lt.s32.totalorder %v775, 256
        %vm778 = vmand %vm776, %vm777
        %779 = vst.msk [vmem:[#allocation2] sm:$0x3] %vm778, %v774
        %v780 = vld [vmem:[#allocation3] sm:$0x3]
        %v781 = vmul.f32 %v494, %v494
        %v782 = vmul.f32 %v496, %v496
        %v783 = vmul.f32 %v500, %v500
        %v784 = vmul.f32 %v502, %v502
        %v785 = vmul.f32 %v506, %v506
        %v786 = vmul.f32 %v508, %v508
        %v787 = vmul.f32 %v512, %v512
        %v788 = vmul.f32 %v514, %v514
        %v789 = vmul.f32 %v518, %v518
        %v790 = vmul.f32 %v520, %v520
        %v791 = vmul.f32 %v524, %v524
        %v792 = vmul.f32 %v526, %v526
        %v793 = vmul.f32 %v530, %v530
        %v794 = vmul.f32 %v532, %v532
        %v795 = vmul.f32 %v536, %v536
        %v796 = vmul.f32 %v538, %v538
        %v797 = vmul.f32 %v542, %v542
        %v798 = vmul.f32 %v544, %v544
        %v799 = vmul.f32 %v548, %v548
        %v800 = vmul.f32 %v550, %v550
        %v801 = vmul.f32 %v554, %v554
        %v802 = vmul.f32 %v556, %v556
        %v803 = vmul.f32 %v560, %v560
        %v804 = vmul.f32 %v562, %v562
        %v805 = vmul.f32 %v566, %v566
        %v806 = vmul.f32 %v568, %v568
        %v807 = vmul.f32 %v572, %v572
        %v808 = vmul.f32 %v574, %v574
        %v809 = vmul.f32 %v578, %v578
        %v810 = vmul.f32 %v580, %v580
        %v811 = vmul.f32 %v584, %v584
        %v812 = vmul.f32 %v586, %v586
        %v813 = vmul.f32 %v590, %v590
        %v814 = vmul.f32 %v592, %v592
        %v815 = vmul.f32 %v596, %v596
        %v816 = vmul.f32 %v598, %v598
        %v817 = vmul.f32 %v602, %v602
        %v818 = vmul.f32 %v604, %v604
        %v819 = vmul.f32 %v608, %v608
        %v820 = vmul.f32 %v610, %v610
        %v821 = vmul.f32 %v614, %v614
        %v822 = vmul.f32 %v616, %v616
        %v823 = vmul.f32 %v620, %v620
        %v824 = vmul.f32 %v622, %v622
        %v825 = vmul.f32 %v626, %v626
        %v826 = vmul.f32 %v628, %v628
        %v827 = vmul.f32 %v632, %v632
        %v828 = vmul.f32 %v634, %v634
        %v829 = vmul.f32 %v638, %v638
        %v830 = vmul.f32 %v640, %v640
        %v831 = vmul.f32 %v644, %v644
        %v832 = vmul.f32 %v646, %v646
        %v833 = vmul.f32 %v650, %v650
        %v834 = vmul.f32 %v652, %v652
        %v835 = vmul.f32 %v656, %v656
        %v836 = vmul.f32 %v658, %v658
        %v837 = vmul.f32 %v662, %v662
        %v838 = vmul.f32 %v664, %v664
        %v839 = vmul.f32 %v668, %v668
        %v840 = vmul.f32 %v670, %v670
        %v841 = vmul.f32 %v674, %v674
        %v842 = vmul.f32 %v676, %v676
        %v843 = vmul.f32 %v680, %v680
        %v844 = vmul.f32 %v682, %v682
        %845 = vmatprep.subr.mxu0 %v782
        %846 = vmatpush1.msra.mxu0 %v781
        %847 = vmatprep.subr.mxu0 %v784
        %848 = vmatpush1.msra.mxu0 %v783
        %849 = vmatprep.subr.mxu0 %v786
        %850 = vmatpush1.msra.mxu0 %v785
        %851 = vmatprep.subr.mxu0 %v788
        %852 = vmatpush1.msra.mxu0 %v787
        %853 = vmatprep.subr.mxu0 %v790
        %854 = vmatpush1.msra.mxu0 %v789
        %855 = vmatprep.subr.mxu0 %v792
        %856 = vmatpush1.msra.mxu0 %v791
        %857 = vmatprep.subr.mxu0 %v794
        %858 = vmatpush1.msra.mxu0 %v793
        %859 = vmatprep.subr.mxu0 %v796
        %860 = vmatpush1.msra.mxu0 %v795
        %861 = vmatprep.subr.mxu0 %v798
        %862 = vmatpush1.msra.mxu0 %v797
        %863 = vmatprep.subr.mxu0 %v800
        %864 = vmatpush1.msra.mxu0 %v799
        %865 = vmatprep.subr.mxu0 %v802
        %866 = vmatpush1.msra.mxu0 %v801
        %867 = vmatprep.subr.mxu0 %v804
        %868 = vmatpush1.msra.mxu0 %v803
        %869 = vmatprep.subr.mxu0 %v806
        %870 = vmatpush1.msra.mxu0 %v805
        %871 = vmatprep.subr.mxu0 %v808
        %872 = vmatpush1.msra.mxu0 %v807
        %873 = vmatprep.subr.mxu0 %v810
        %874 = vmatpush1.msra.mxu0 %v809
        %875 = vmatprep.subr.mxu0 %v812
        %876 = vmatpush1.msra.mxu0 %v811
        %877 = vmatprep.subr.mxu0 %v814
        %878 = vmatpush1.msra.mxu0 %v813
        %879 = vmatprep.subr.mxu0 %v816
        %880 = vmatpush1.msra.mxu0 %v815
        %881 = vmatprep.subr.mxu0 %v818
        %882 = vmatpush1.msra.mxu0 %v817
        %883 = vmatprep.subr.mxu0 %v820
        %884 = vmatpush1.msra.mxu0 %v819
        %885 = vmatprep.subr.mxu0 %v822
        %886 = vmatpush1.msra.mxu0 %v821
        %887 = vmatprep.subr.mxu0 %v824
        %888 = vmatpush1.msra.mxu0 %v823
        %889 = vmatprep.subr.mxu0 %v826
        %890 = vmatpush1.msra.mxu0 %v825
        %891 = vmatprep.subr.mxu0 %v828
        %892 = vmatpush1.msra.mxu0 %v827
        %893 = vmatprep.subr.mxu0 %v830
        %894 = vmatpush1.msra.mxu0 %v829
        %895 = vmatprep.subr.mxu0 %v832
        %896 = vmatpush1.msra.mxu0 %v831
        %897 = vmatprep.subr.mxu0 %v834
        %898 = vmatpush1.msra.mxu0 %v833
        %899 = vmatprep.subr.mxu0 %v836
        %900 = vmatpush1.msra.mxu0 %v835
        %901 = vmatprep.subr.mxu0 %v838
        %902 = vmatpush1.msra.mxu0 %v837
        %903 = vmatprep.subr.mxu0 %v840
        %904 = vmatpush1.msra.mxu0 %v839
        %905 = vmatprep.subr.mxu0 %v842
        %906 = vmatpush1.msra.mxu0 %v841
        %907 = vmatprep.subr.mxu0 %v844
        %908 = vmatpush1.msra.mxu0 %v843
        %909 = vmatprep.mubr.f32.mxu0 1.0
        %910 = vmatmul.mubr.f32.gmra.mrb[0].mxu0 1.0
        %v911 = vpop.f32.mrb[0].mxu0
        %v912 = vadd.f32 0.0, %v911
        %v913 = vpop.f32.mrb[0].mxu0
        %v914 = vadd.f32 0.0, %v913
        %915 = vdwg.mxu0
        %v918 = vcombine.low %v912, %v914
        %v920 = vunpack.c.l.s4 1966171168
        %v921 = vunpack.c.0.s8 %v920
        %v922 = vlaneseq
        %v923 = vshrl.u32 %v922, 7
        %v924 = vsub.s32 %v921, %v923
        %v925 = vrot.slane %v918, %v924
        %v927 = vunpack.c.l.s4 1966171168
        %v928 = vunpack.c.0.s8 %v927
        %v929 = vlaneseq
        %v930 = vshrl.u32 %v929, 7
        %v931 = vsub.s32 %v928, %v930
        %v932 = vrot.slane %v925, %v931
        %v934 = vadd.f32 %v780, %v932
        %935 = vst.msk [vmem:[#allocation3] sm:$0x3] %vm778, %v934
        %s936 = smul.u32 %s22, 64
        %s937 = smul.addr %s936, 8
        %s938 = scalar_lea.vmem [#allocation10], %s937
        %939 = vst [vmem:[%s938] sm:$0xff] %v494
        %940 = vst [vmem:[%s938 + $0x8] sm:$0xff] %v496
        %941 = vst [vmem:[%s938 + $0x10] sm:$0xff] %v500
        %942 = vst [vmem:[%s938 + $0x18] sm:$0xff] %v502
        %943 = vst [vmem:[%s938 + $0x20] sm:$0xff] %v506
        %944 = vst [vmem:[%s938 + $0x28] sm:$0xff] %v508
        %945 = vst [vmem:[%s938 + $0x30] sm:$0xff] %v512
        %946 = vst [vmem:[%s938 + $0x38] sm:$0xff] %v514
        %947 = vst [vmem:[%s938 + $0x40] sm:$0xff] %v518
        %948 = vst [vmem:[%s938 + $0x48] sm:$0xff] %v520
        %949 = vst [vmem:[%s938 + $0x50] sm:$0xff] %v524
        %950 = vst [vmem:[%s938 + $0x58] sm:$0xff] %v526
        %951 = vst [vmem:[%s938 + $0x60] sm:$0xff] %v530
        %952 = vst [vmem:[%s938 + $0x68] sm:$0xff] %v532
        %953 = vst [vmem:[%s938 + $0x70] sm:$0xff] %v536
        %954 = vst [vmem:[%s938 + $0x78] sm:$0xff] %v538
        %955 = vst [vmem:[%s938 + $0x80] sm:$0xff] %v542
        %956 = vst [vmem:[%s938 + $0x88] sm:$0xff] %v544
        %957 = vst [vmem:[%s938 + $0x90] sm:$0xff] %v548
        %958 = vst [vmem:[%s938 + $0x98] sm:$0xff] %v550
        %959 = vst [vmem:[%s938 + $0xa0] sm:$0xff] %v554
        %960 = vst [vmem:[%s938 + $0xa8] sm:$0xff] %v556
        %961 = vst [vmem:[%s938 + $0xb0] sm:$0xff] %v560
        %962 = vst [vmem:[%s938 + $0xb8] sm:$0xff] %v562
        %963 = vst [vmem:[%s938 + $0xc0] sm:$0xff] %v566
        %964 = vst [vmem:[%s938 + $0xc8] sm:$0xff] %v568
        %965 = vst [vmem:[%s938 + $0xd0] sm:$0xff] %v572
        %966 = vst [vmem:[%s938 + $0xd8] sm:$0xff] %v574
        %967 = vst [vmem:[%s938 + $0xe0] sm:$0xff] %v578
        %968 = vst [vmem:[%s938 + $0xe8] sm:$0xff] %v580
        %969 = vst [vmem:[%s938 + $0xf0] sm:$0xff] %v584
        %970 = vst [vmem:[%s938 + $0xf8] sm:$0xff] %v586
        %971 = vst [vmem:[%s938 + $0x100] sm:$0xff] %v590
        %972 = vst [vmem:[%s938 + $0x108] sm:$0xff] %v592
        %973 = vst [vmem:[%s938 + $0x110] sm:$0xff] %v596
        %974 = vst [vmem:[%s938 + $0x118] sm:$0xff] %v598
        %975 = vst [vmem:[%s938 + $0x120] sm:$0xff] %v602
        %976 = vst [vmem:[%s938 + $0x128] sm:$0xff] %v604
        %977 = vst [vmem:[%s938 + $0x130] sm:$0xff] %v608
        %978 = vst [vmem:[%s938 + $0x138] sm:$0xff] %v610
        %979 = vst [vmem:[%s938 + $0x140] sm:$0xff] %v614
        %980 = vst [vmem:[%s938 + $0x148] sm:$0xff] %v616
        %981 = vst [vmem:[%s938 + $0x150] sm:$0xff] %v620
        %982 = vst [vmem:[%s938 + $0x158] sm:$0xff] %v622
        %983 = vst [vmem:[%s938 + $0x160] sm:$0xff] %v626
        %984 = vst [vmem:[%s938 + $0x168] sm:$0xff] %v628
        %985 = vst [vmem:[%s938 + $0x170] sm:$0xff] %v632
        %986 = vst [vmem:[%s938 + $0x178] sm:$0xff] %v634
        %987 = vst [vmem:[%s938 + $0x180] sm:$0xff] %v638
        %988 = vst [vmem:[%s938 + $0x188] sm:$0xff] %v640
        %989 = vst [vmem:[%s938 + $0x190] sm:$0xff] %v644
        %990 = vst [vmem:[%s938 + $0x198] sm:$0xff] %v646
        %991 = vst [vmem:[%s938 + $0x1a0] sm:$0xff] %v650
        %992 = vst [vmem:[%s938 + $0x1a8] sm:$0xff] %v652
        %993 = vst [vmem:[%s938 + $0x1b0] sm:$0xff] %v656
        %994 = vst [vmem:[%s938 + $0x1b8] sm:$0xff] %v658
        %995 = vst [vmem:[%s938 + $0x1c0] sm:$0xff] %v662
        %996 = vst [vmem:[%s938 + $0x1c8] sm:$0xff] %v664
        %997 = vst [vmem:[%s938 + $0x1d0] sm:$0xff] %v668
        %998 = vst [vmem:[%s938 + $0x1d8] sm:$0xff] %v670
        %999 = vst [vmem:[%s938 + $0x1e0] sm:$0xff] %v674
        %1000 = vst [vmem:[%s938 + $0x1e8] sm:$0xff] %v676
        %1001 = vst [vmem:[%s938 + $0x1f0] sm:$0xff] %v680
        %1002 = vst [vmem:[%s938 + $0x1f8] sm:$0xff] %v682
        %p1003 = scmp.eq.s32.totalorder %s22, 1
        // Predicated region
        $region61: #{embed_branch.1} parent=43 // pred_check
          %p1004 = pneg %p1003
        $region62: #{embed_branch.1} parent=43 // pred_check_branch
          %1006 = sbr.rel (%p1004) target = $region64
        $region63: #{embed_branch.1} parent=43 // pred_region
          %v1007 = vld [vmem:[#allocation2] sm:$0x3]
          %v1008 = vmul.f32 %v1007, 0.001953125
          %v1009 = vld [vmem:[#allocation3] sm:$0x3]
          %v1010 = vmul.f32 %v1009, 0.001953125
          %v1011 = vmul.f32 %v1008, %v1008
          %v1012 = vsub.f32 %v1010, %v1011
          %v1013 = vld [vmem:[%s2] sm:$0x3]
          %v1014 = vadd.f32 %v1012, 0.001
          %v1015 = vrsqrt.pop %v1014
          %v1016 = vmul.f32 %v1013, %v1015
          %v1017 = vld [vmem:[%s3] sm:$0x3]
          %v1018 = vmul.f32 %v1008, %v1016
          %v1019 = vsub.f32 %v1017, %v1018
          %v1020 = vld [vmem:[#allocation9] sm:$0xff]
          %v1021 = vld [vmem:[#allocation9 + $0x8] sm:$0xff]
          %v1022 = vld [vmem:[#allocation9 + $0x10] sm:$0xff]
          %v1023 = vld [vmem:[#allocation9 + $0x18] sm:$0xff]
          %v1024 = vld [vmem:[#allocation9 + $0x20] sm:$0xff]
          %v1025 = vld [vmem:[#allocation9 + $0x28] sm:$0xff]
          %v1026 = vld [vmem:[#allocation9 + $0x30] sm:$0xff]
          %v1027 = vld [vmem:[#allocation9 + $0x38] sm:$0xff]
          %v1028 = vld [vmem:[#allocation9 + $0x40] sm:$0xff]
          %v1029 = vld [vmem:[#allocation9 + $0x48] sm:$0xff]
          %v1030 = vld [vmem:[#allocation9 + $0x50] sm:$0xff]
          %v1031 = vld [vmem:[#allocation9 + $0x58] sm:$0xff]
          %v1032 = vld [vmem:[#allocation9 + $0x60] sm:$0xff]
          %v1033 = vld [vmem:[#allocation9 + $0x68] sm:$0xff]
          %v1034 = vld [vmem:[#allocation9 + $0x70] sm:$0xff]
          %v1035 = vld [vmem:[#allocation9 + $0x78] sm:$0xff]
          %v1036 = vld [vmem:[#allocation9 + $0x80] sm:$0xff]
          %v1037 = vld [vmem:[#allocation9 + $0x88] sm:$0xff]
          %v1038 = vld [vmem:[#allocation9 + $0x90] sm:$0xff]
          %v1039 = vld [vmem:[#allocation9 + $0x98] sm:$0xff]
          %v1040 = vld [vmem:[#allocation9 + $0xa0] sm:$0xff]
          %v1041 = vld [vmem:[#allocation9 + $0xa8] sm:$0xff]
          %v1042 = vld [vmem:[#allocation9 + $0xb0] sm:$0xff]
          %v1043 = vld [vmem:[#allocation9 + $0xb8] sm:$0xff]
          %v1044 = vld [vmem:[#allocation9 + $0xc0] sm:$0xff]
          %v1045 = vld [vmem:[#allocation9 + $0xc8] sm:$0xff]
          %v1046 = vld [vmem:[#allocation9 + $0xd0] sm:$0xff]
          %v1047 = vld [vmem:[#allocation9 + $0xd8] sm:$0xff]
          %v1048 = vld [vmem:[#allocation9 + $0xe0] sm:$0xff]
          %v1049 = vld [vmem:[#allocation9 + $0xe8] sm:$0xff]
          %v1050 = vld [vmem:[#allocation9 + $0xf0] sm:$0xff]
          %v1051 = vld [vmem:[#allocation9 + $0xf8] sm:$0xff]
          %v1052 = vld [vmem:[#allocation9 + $0x100] sm:$0xff]
          %v1053 = vld [vmem:[#allocation9 + $0x108] sm:$0xff]
          %v1054 = vld [vmem:[#allocation9 + $0x110] sm:$0xff]
          %v1055 = vld [vmem:[#allocation9 + $0x118] sm:$0xff]
          %v1056 = vld [vmem:[#allocation9 + $0x120] sm:$0xff]
          %v1057 = vld [vmem:[#allocation9 + $0x128] sm:$0xff]
          %v1058 = vld [vmem:[#allocation9 + $0x130] sm:$0xff]
          %v1059 = vld [vmem:[#allocation9 + $0x138] sm:$0xff]
          %v1060 = vld [vmem:[#allocation9 + $0x140] sm:$0xff]
          %v1061 = vld [vmem:[#allocation9 + $0x148] sm:$0xff]
          %v1062 = vld [vmem:[#allocation9 + $0x150] sm:$0xff]
          %v1063 = vld [vmem:[#allocation9 + $0x158] sm:$0xff]
          %v1064 = vld [vmem:[#allocation9 + $0x160] sm:$0xff]
          %v1065 = vld [vmem:[#allocation9 + $0x168] sm:$0xff]
          %v1066 = vld [vmem:[#allocation9 + $0x170] sm:$0xff]
          %v1067 = vld [vmem:[#allocation9 + $0x178] sm:$0xff]
          %v1068 = vld [vmem:[#allocation9 + $0x180] sm:$0xff]
          %v1069 = vld [vmem:[#allocation9 + $0x188] sm:$0xff]
          %v1070 = vld [vmem:[#allocation9 + $0x190] sm:$0xff]
          %v1071 = vld [vmem:[#allocation9 + $0x198] sm:$0xff]
          %v1072 = vld [vmem:[#allocation9 + $0x1a0] sm:$0xff]
          %v1073 = vld [vmem:[#allocation9 + $0x1a8] sm:$0xff]
          %v1074 = vld [vmem:[#allocation9 + $0x1b0] sm:$0xff]
          %v1075 = vld [vmem:[#allocation9 + $0x1b8] sm:$0xff]
          %v1076 = vld [vmem:[#allocation9 + $0x1c0] sm:$0xff]
          %v1077 = vld [vmem:[#allocation9 + $0x1c8] sm:$0xff]
          %v1078 = vld [vmem:[#allocation9 + $0x1d0] sm:$0xff]
          %v1079 = vld [vmem:[#allocation9 + $0x1d8] sm:$0xff]
          %v1080 = vld [vmem:[#allocation9 + $0x1e0] sm:$0xff]
          %v1081 = vld [vmem:[#allocation9 + $0x1e8] sm:$0xff]
          %v1082 = vld [vmem:[#allocation9 + $0x1f0] sm:$0xff]
          %v1083 = vld [vmem:[#allocation9 + $0x1f8] sm:$0xff]
          %v1084 = vld [vmem:[%s5] sm:$0x3]
          %v1085 = vld [vmem:[#allocation10] sm:$0xff]
          %v1086 = vld [vmem:[#allocation10 + $0x8] sm:$0xff]
          %v1087 = vld [vmem:[#allocation10 + $0x10] sm:$0xff]
          %v1088 = vld [vmem:[#allocation10 + $0x18] sm:$0xff]
          %v1089 = vld [vmem:[#allocation10 + $0x20] sm:$0xff]
          %v1090 = vld [vmem:[#allocation10 + $0x28] sm:$0xff]
          %v1091 = vld [vmem:[#allocation10 + $0x30] sm:$0xff]
          %v1092 = vld [vmem:[#allocation10 + $0x38] sm:$0xff]
          %v1093 = vld [vmem:[#allocation10 + $0x40] sm:$0xff]
          %v1094 = vld [vmem:[#allocation10 + $0x48] sm:$0xff]
          %v1095 = vld [vmem:[#allocation10 + $0x50] sm:$0xff]
          %v1096 = vld [vmem:[#allocation10 + $0x58] sm:$0xff]
          %v1097 = vld [vmem:[#allocation10 + $0x60] sm:$0xff]
          %v1098 = vld [vmem:[#allocation10 + $0x68] sm:$0xff]
          %v1099 = vld [vmem:[#allocation10 + $0x70] sm:$0xff]
          %v1100 = vld [vmem:[#allocation10 + $0x78] sm:$0xff]
          %v1101 = vld [vmem:[#allocation10 + $0x80] sm:$0xff]
          %v1102 = vld [vmem:[#allocation10 + $0x88] sm:$0xff]
          %v1103 = vld [vmem:[#allocation10 + $0x90] sm:$0xff]
          %v1104 = vld [vmem:[#allocation10 + $0x98] sm:$0xff]
          %v1105 = vld [vmem:[#allocation10 + $0xa0] sm:$0xff]
          %v1106 = vld [vmem:[#allocation10 + $0xa8] sm:$0xff]
          %v1107 = vld [vmem:[#allocation10 + $0xb0] sm:$0xff]
          %v1108 = vld [vmem:[#allocation10 + $0xb8] sm:$0xff]
          %v1109 = vld [vmem:[#allocation10 + $0xc0] sm:$0xff]
          %v1110 = vld [vmem:[#allocation10 + $0xc8] sm:$0xff]
          %v1111 = vld [vmem:[#allocation10 + $0xd0] sm:$0xff]
          %v1112 = vld [vmem:[#allocation10 + $0xd8] sm:$0xff]
          %v1113 = vld [vmem:[#allocation10 + $0xe0] sm:$0xff]
          %v1114 = vld [vmem:[#allocation10 + $0xe8] sm:$0xff]
          %v1115 = vld [vmem:[#allocation10 + $0xf0] sm:$0xff]
          %v1116 = vld [vmem:[#allocation10 + $0xf8] sm:$0xff]
          %v1117 = vld [vmem:[#allocation10 + $0x100] sm:$0xff]
          %v1118 = vld [vmem:[#allocation10 + $0x108] sm:$0xff]
          %v1119 = vld [vmem:[#allocation10 + $0x110] sm:$0xff]
          %v1120 = vld [vmem:[#allocation10 + $0x118] sm:$0xff]
          %v1121 = vld [vmem:[#allocation10 + $0x120] sm:$0xff]
          %v1122 = vld [vmem:[#allocation10 + $0x128] sm:$0xff]
          %v1123 = vld [vmem:[#allocation10 + $0x130] sm:$0xff]
          %v1124 = vld [vmem:[#allocation10 + $0x138] sm:$0xff]
          %v1125 = vld [vmem:[#allocation10 + $0x140] sm:$0xff]
          %v1126 = vld [vmem:[#allocation10 + $0x148] sm:$0xff]
          %v1127 = vld [vmem:[#allocation10 + $0x150] sm:$0xff]
          %v1128 = vld [vmem:[#allocation10 + $0x158] sm:$0xff]
          %v1129 = vld [vmem:[#allocation10 + $0x160] sm:$0xff]
          %v1130 = vld [vmem:[#allocation10 + $0x168] sm:$0xff]
          %v1131 = vld [vmem:[#allocation10 + $0x170] sm:$0xff]
          %v1132 = vld [vmem:[#allocation10 + $0x178] sm:$0xff]
          %v1133 = vld [vmem:[#allocation10 + $0x180] sm:$0xff]
          %v1134 = vld [vmem:[#allocation10 + $0x188] sm:$0xff]
          %v1135 = vld [vmem:[#allocation10 + $0x190] sm:$0xff]
          %v1136 = vld [vmem:[#allocation10 + $0x198] sm:$0xff]
          %v1137 = vld [vmem:[#allocation10 + $0x1a0] sm:$0xff]
          %v1138 = vld [vmem:[#allocation10 + $0x1a8] sm:$0xff]
          %v1139 = vld [vmem:[#allocation10 + $0x1b0] sm:$0xff]
          %v1140 = vld [vmem:[#allocation10 + $0x1b8] sm:$0xff]
          %v1141 = vld [vmem:[#allocation10 + $0x1c0] sm:$0xff]
          %v1142 = vld [vmem:[#allocation10 + $0x1c8] sm:$0xff]
          %v1143 = vld [vmem:[#allocation10 + $0x1d0] sm:$0xff]
          %v1144 = vld [vmem:[#allocation10 + $0x1d8] sm:$0xff]
          %v1145 = vld [vmem:[#allocation10 + $0x1e0] sm:$0xff]
          %v1146 = vld [vmem:[#allocation10 + $0x1e8] sm:$0xff]
          %v1147 = vld [vmem:[#allocation10 + $0x1f0] sm:$0xff]
          %v1148 = vld [vmem:[#allocation10 + $0x1f8] sm:$0xff]
          %v1150 = vlaneseq
          %v1151 = vshrl.u32 %v1150, 7
          %v1152 = vsub.s32 0, %v1151
          %v1153 = vrot.slane %v1016, %v1152
          %v1154 = vlaneseq
          %v1155 = vshrl.u32 %v1154, 7
          %v1156 = vsub.s32 1, %v1155
          %v1157 = vrot.slane %v1016, %v1156
          %v1160 = vmul.f32 %v1085, %v1153
          %v1161 = vmul.f32 %v1086, %v1157
          %v1162 = vmul.f32 %v1087, %v1153
          %v1163 = vmul.f32 %v1088, %v1157
          %v1164 = vmul.f32 %v1089, %v1153
          %v1165 = vmul.f32 %v1090, %v1157
          %v1166 = vmul.f32 %v1091, %v1153
          %v1167 = vmul.f32 %v1092, %v1157
          %v1168 = vmul.f32 %v1093, %v1153
          %v1169 = vmul.f32 %v1094, %v1157
          %v1170 = vmul.f32 %v1095, %v1153
          %v1171 = vmul.f32 %v1096, %v1157
          %v1172 = vmul.f32 %v1097, %v1153
          %v1173 = vmul.f32 %v1098, %v1157
          %v1174 = vmul.f32 %v1099, %v1153
          %v1175 = vmul.f32 %v1100, %v1157
          %v1176 = vmul.f32 %v1101, %v1153
          %v1177 = vmul.f32 %v1102, %v1157
          %v1178 = vmul.f32 %v1103, %v1153
          %v1179 = vmul.f32 %v1104, %v1157
          %v1180 = vmul.f32 %v1105, %v1153
          %v1181 = vmul.f32 %v1106, %v1157
          %v1182 = vmul.f32 %v1107, %v1153
          %v1183 = vmul.f32 %v1108, %v1157
          %v1184 = vmul.f32 %v1109, %v1153
          %v1185 = vmul.f32 %v1110, %v1157
          %v1186 = vmul.f32 %v1111, %v1153
          %v1187 = vmul.f32 %v1112, %v1157
          %v1188 = vmul.f32 %v1113, %v1153
          %v1189 = vmul.f32 %v1114, %v1157
          %v1190 = vmul.f32 %v1115, %v1153
          %v1191 = vmul.f32 %v1116, %v1157
          %v1192 = vmul.f32 %v1117, %v1153
          %v1193 = vmul.f32 %v1118, %v1157
          %v1194 = vmul.f32 %v1119, %v1153
          %v1195 = vmul.f32 %v1120, %v1157
          %v1196 = vmul.f32 %v1121, %v1153
          %v1197 = vmul.f32 %v1122, %v1157
          %v1198 = vmul.f32 %v1123, %v1153
          %v1199 = vmul.f32 %v1124, %v1157
          %v1200 = vmul.f32 %v1125, %v1153
          %v1201 = vmul.f32 %v1126, %v1157
          %v1202 = vmul.f32 %v1127, %v1153
          %v1203 = vmul.f32 %v1128, %v1157
          %v1204 = vmul.f32 %v1129, %v1153
          %v1205 = vmul.f32 %v1130, %v1157
          %v1206 = vmul.f32 %v1131, %v1153
          %v1207 = vmul.f32 %v1132, %v1157
          %v1208 = vmul.f32 %v1133, %v1153
          %v1209 = vmul.f32 %v1134, %v1157
          %v1210 = vmul.f32 %v1135, %v1153
          %v1211 = vmul.f32 %v1136, %v1157
          %v1212 = vmul.f32 %v1137, %v1153
          %v1213 = vmul.f32 %v1138, %v1157
          %v1214 = vmul.f32 %v1139, %v1153
          %v1215 = vmul.f32 %v1140, %v1157
          %v1216 = vmul.f32 %v1141, %v1153
          %v1217 = vmul.f32 %v1142, %v1157
          %v1218 = vmul.f32 %v1143, %v1153
          %v1219 = vmul.f32 %v1144, %v1157
          %v1220 = vmul.f32 %v1145, %v1153
          %v1221 = vmul.f32 %v1146, %v1157
          %v1222 = vmul.f32 %v1147, %v1153
          %v1223 = vmul.f32 %v1148, %v1157
          %v1225 = vlaneseq
          %v1226 = vshrl.u32 %v1225, 7
          %v1227 = vsub.s32 0, %v1226
          %v1228 = vrot.slane %v1019, %v1227
          %v1229 = vlaneseq
          %v1230 = vshrl.u32 %v1229, 7
          %v1231 = vsub.s32 1, %v1230
          %v1232 = vrot.slane %v1019, %v1231
          %v1235 = vadd.f32 %v1160, %v1228
          %v1236 = vadd.f32 %v1161, %v1232
          %v1237 = vadd.f32 %v1162, %v1228
          %v1238 = vadd.f32 %v1163, %v1232
          %v1239 = vadd.f32 %v1164, %v1228
          %v1240 = vadd.f32 %v1165, %v1232
          %v1241 = vadd.f32 %v1166, %v1228
          %v1242 = vadd.f32 %v1167, %v1232
          %v1243 = vadd.f32 %v1168, %v1228
          %v1244 = vadd.f32 %v1169, %v1232
          %v1245 = vadd.f32 %v1170, %v1228
          %v1246 = vadd.f32 %v1171, %v1232
          %v1247 = vadd.f32 %v1172, %v1228
          %v1248 = vadd.f32 %v1173, %v1232
          %v1249 = vadd.f32 %v1174, %v1228
          %v1250 = vadd.f32 %v1175, %v1232
          %v1251 = vadd.f32 %v1176, %v1228
          %v1252 = vadd.f32 %v1177, %v1232
          %v1253 = vadd.f32 %v1178, %v1228
          %v1254 = vadd.f32 %v1179, %v1232
          %v1255 = vadd.f32 %v1180, %v1228
          %v1256 = vadd.f32 %v1181, %v1232
          %v1257 = vadd.f32 %v1182, %v1228
          %v1258 = vadd.f32 %v1183, %v1232
          %v1259 = vadd.f32 %v1184, %v1228
          %v1260 = vadd.f32 %v1185, %v1232
          %v1261 = vadd.f32 %v1186, %v1228
          %v1262 = vadd.f32 %v1187, %v1232
          %v1263 = vadd.f32 %v1188, %v1228
          %v1264 = vadd.f32 %v1189, %v1232
          %v1265 = vadd.f32 %v1190, %v1228
          %v1266 = vadd.f32 %v1191, %v1232
          %v1267 = vadd.f32 %v1192, %v1228
          %v1268 = vadd.f32 %v1193, %v1232
          %v1269 = vadd.f32 %v1194, %v1228
          %v1270 = vadd.f32 %v1195, %v1232
          %v1271 = vadd.f32 %v1196, %v1228
          %v1272 = vadd.f32 %v1197, %v1232
          %v1273 = vadd.f32 %v1198, %v1228
          %v1274 = vadd.f32 %v1199, %v1232
          %v1275 = vadd.f32 %v1200, %v1228
          %v1276 = vadd.f32 %v1201, %v1232
          %v1277 = vadd.f32 %v1202, %v1228
          %v1278 = vadd.f32 %v1203, %v1232
          %v1279 = vadd.f32 %v1204, %v1228
          %v1280 = vadd.f32 %v1205, %v1232
          %v1281 = vadd.f32 %v1206, %v1228
          %v1282 = vadd.f32 %v1207, %v1232
          %v1283 = vadd.f32 %v1208, %v1228
          %v1284 = vadd.f32 %v1209, %v1232
          %v1285 = vadd.f32 %v1210, %v1228
          %v1286 = vadd.f32 %v1211, %v1232
          %v1287 = vadd.f32 %v1212, %v1228
          %v1288 = vadd.f32 %v1213, %v1232
          %v1289 = vadd.f32 %v1214, %v1228
          %v1290 = vadd.f32 %v1215, %v1232
          %v1291 = vadd.f32 %v1216, %v1228
          %v1292 = vadd.f32 %v1217, %v1232
          %v1293 = vadd.f32 %v1218, %v1228
          %v1294 = vadd.f32 %v1219, %v1232
          %v1295 = vadd.f32 %v1220, %v1228
          %v1296 = vadd.f32 %v1221, %v1232
          %v1297 = vadd.f32 %v1222, %v1228
          %v1298 = vadd.f32 %v1223, %v1232
          %v1299 = vmax.f32 %v1235, 0.0
          %v1300 = vmax.f32 %v1236, 0.0
          %v1301 = vmax.f32 %v1237, 0.0
          %v1302 = vmax.f32 %v1238, 0.0
          %v1303 = vmax.f32 %v1239, 0.0
          %v1304 = vmax.f32 %v1240, 0.0
          %v1305 = vmax.f32 %v1241, 0.0
          %v1306 = vmax.f32 %v1242, 0.0
          %v1307 = vmax.f32 %v1243, 0.0
          %v1308 = vmax.f32 %v1244, 0.0
          %v1309 = vmax.f32 %v1245, 0.0
          %v1310 = vmax.f32 %v1246, 0.0
          %v1311 = vmax.f32 %v1247, 0.0
          %v1312 = vmax.f32 %v1248, 0.0
          %v1313 = vmax.f32 %v1249, 0.0
          %v1314 = vmax.f32 %v1250, 0.0
          %v1315 = vmax.f32 %v1251, 0.0
          %v1316 = vmax.f32 %v1252, 0.0
          %v1317 = vmax.f32 %v1253, 0.0
          %v1318 = vmax.f32 %v1254, 0.0
          %v1319 = vmax.f32 %v1255, 0.0
          %v1320 = vmax.f32 %v1256, 0.0
          %v1321 = vmax.f32 %v1257, 0.0
          %v1322 = vmax.f32 %v1258, 0.0
          %v1323 = vmax.f32 %v1259, 0.0
          %v1324 = vmax.f32 %v1260, 0.0
          %v1325 = vmax.f32 %v1261, 0.0
          %v1326 = vmax.f32 %v1262, 0.0
          %v1327 = vmax.f32 %v1263, 0.0
          %v1328 = vmax.f32 %v1264, 0.0
          %v1329 = vmax.f32 %v1265, 0.0
          %v1330 = vmax.f32 %v1266, 0.0
          %v1331 = vmax.f32 %v1267, 0.0
          %v1332 = vmax.f32 %v1268, 0.0
          %v1333 = vmax.f32 %v1269, 0.0
          %v1334 = vmax.f32 %v1270, 0.0
          %v1335 = vmax.f32 %v1271, 0.0
          %v1336 = vmax.f32 %v1272, 0.0
          %v1337 = vmax.f32 %v1273, 0.0
          %v1338 = vmax.f32 %v1274, 0.0
          %v1339 = vmax.f32 %v1275, 0.0
          %v1340 = vmax.f32 %v1276, 0.0
          %v1341 = vmax.f32 %v1277, 0.0
          %v1342 = vmax.f32 %v1278, 0.0
          %v1343 = vmax.f32 %v1279, 0.0
          %v1344 = vmax.f32 %v1280, 0.0
          %v1345 = vmax.f32 %v1281, 0.0
          %v1346 = vmax.f32 %v1282, 0.0
          %v1347 = vmax.f32 %v1283, 0.0
          %v1348 = vmax.f32 %v1284, 0.0
          %v1349 = vmax.f32 %v1285, 0.0
          %v1350 = vmax.f32 %v1286, 0.0
          %v1351 = vmax.f32 %v1287, 0.0
          %v1352 = vmax.f32 %v1288, 0.0
          %v1353 = vmax.f32 %v1289, 0.0
          %v1354 = vmax.f32 %v1290, 0.0
          %v1355 = vmax.f32 %v1291, 0.0
          %v1356 = vmax.f32 %v1292, 0.0
          %v1357 = vmax.f32 %v1293, 0.0
          %v1358 = vmax.f32 %v1294, 0.0
          %v1359 = vmax.f32 %v1295, 0.0
          %v1360 = vmax.f32 %v1296, 0.0
          %v1361 = vmax.f32 %v1297, 0.0
          %v1362 = vmax.f32 %v1298, 0.0
          %v1364 = vlaneseq
          %v1365 = vshrl.u32 %v1364, 7
          %v1366 = vsub.s32 0, %v1365
          %v1367 = vrot.slane %v1084, %v1366
          %v1368 = vlaneseq
          %v1369 = vshrl.u32 %v1368, 7
          %v1370 = vsub.s32 1, %v1369
          %v1371 = vrot.slane %v1084, %v1370
          %1374 = vmatprep.subr.mxu0 %v1021
          %1375 = vmatpush1.msra.mxu0 %v1020
          %1376 = vmatprep.subr.mxu0 %v1023
          %1377 = vmatpush1.msra.mxu0 %v1022
          %1378 = vmatprep.subr.mxu0 %v1025
          %1379 = vmatpush1.msra.mxu0 %v1024
          %1380 = vmatprep.subr.mxu0 %v1027
          %1381 = vmatpush1.msra.mxu0 %v1026
          %1382 = vmatprep.subr.mxu0 %v1029
          %1383 = vmatpush1.msra.mxu0 %v1028
          %1384 = vmatprep.subr.mxu0 %v1031
          %1385 = vmatpush1.msra.mxu0 %v1030
          %1386 = vmatprep.subr.mxu0 %v1033
          %1387 = vmatpush1.msra.mxu0 %v1032
          %1388 = vmatprep.subr.mxu0 %v1035
          %1389 = vmatpush1.msra.mxu0 %v1034
          %1390 = vmatprep.subr.mxu0 %v1037
          %1391 = vmatpush1.msra.mxu0 %v1036
          %1392 = vmatprep.subr.mxu0 %v1039
          %1393 = vmatpush1.msra.mxu0 %v1038
          %1394 = vmatprep.subr.mxu0 %v1041
          %1395 = vmatpush1.msra.mxu0 %v1040
          %1396 = vmatprep.subr.mxu0 %v1043
          %1397 = vmatpush1.msra.mxu0 %v1042
          %1398 = vmatprep.subr.mxu0 %v1045
          %1399 = vmatpush1.msra.mxu0 %v1044
          %1400 = vmatprep.subr.mxu0 %v1047
          %1401 = vmatpush1.msra.mxu0 %v1046
          %1402 = vmatprep.subr.mxu0 %v1049
          %1403 = vmatpush1.msra.mxu0 %v1048
          %1404 = vmatprep.subr.mxu0 %v1051
          %1405 = vmatpush1.msra.mxu0 %v1050
          %1406 = vmatprep.subr.mxu0 %v1053
          %1407 = vmatpush1.msra.mxu0 %v1052
          %1408 = vmatprep.subr.mxu0 %v1055
          %1409 = vmatpush1.msra.mxu0 %v1054
          %1410 = vmatprep.subr.mxu0 %v1057
          %1411 = vmatpush1.msra.mxu0 %v1056
          %1412 = vmatprep.subr.mxu0 %v1059
          %1413 = vmatpush1.msra.mxu0 %v1058
          %1414 = vmatprep.subr.mxu0 %v1061
          %1415 = vmatpush1.msra.mxu0 %v1060
          %1416 = vmatprep.subr.mxu0 %v1063
          %1417 = vmatpush1.msra.mxu0 %v1062
          %1418 = vmatprep.subr.mxu0 %v1065
          %1419 = vmatpush1.msra.mxu0 %v1064
          %1420 = vmatprep.subr.mxu0 %v1067
          %1421 = vmatpush1.msra.mxu0 %v1066
          %1422 = vmatprep.subr.mxu0 %v1069
          %1423 = vmatpush1.msra.mxu0 %v1068
          %1424 = vmatprep.subr.mxu0 %v1071
          %1425 = vmatpush1.msra.mxu0 %v1070
          %1426 = vmatprep.subr.mxu0 %v1073
          %1427 = vmatpush1.msra.mxu0 %v1072
          %1428 = vmatprep.subr.mxu0 %v1075
          %1429 = vmatpush1.msra.mxu0 %v1074
          %1430 = vmatprep.subr.mxu0 %v1077
          %1431 = vmatpush1.msra.mxu0 %v1076
          %1432 = vmatprep.subr.mxu0 %v1079
          %1433 = vmatpush1.msra.mxu0 %v1078
          %1434 = vmatprep.subr.mxu0 %v1081
          %1435 = vmatpush1.msra.mxu0 %v1080
          %1436 = vmatprep.subr.mxu0 %v1083
          %1437 = vmatpush1.msra.mxu0 %v1082
          %1438 = vmatprep.mubr.f32.mxu0 %v1300
          %1439 = vmatmul.mubr.f32.gmra.mrb[0].mxu0 %v1299
          %v1440 = vpop.f32.mrb[0].mxu0
          %v1441 = vadd.f32 %v1367, %v1440
          %v1442 = vpop.f32.mrb[0].mxu0
          %v1443 = vadd.f32 %v1371, %v1442
          %1444 = vmatprep.mubr.f32.mxu0 %v1302
          %1445 = vmatmul.mubr.f32.gmra.mrb[0].mxu0 %v1301
          %v1446 = vpop.f32.mrb[0].mxu0
          %v1447 = vadd.f32 %v1367, %v1446
          %v1448 = vpop.f32.mrb[0].mxu0
          %v1449 = vadd.f32 %v1371, %v1448
          %1450 = vmatprep.mubr.f32.mxu0 %v1304
          %1451 = vmatmul.mubr.f32.gmra.mrb[0].mxu0 %v1303
          %v1452 = vpop.f32.mrb[0].mxu0
          %v1453 = vadd.f32 %v1367, %v1452
          %v1454 = vpop.f32.mrb[0].mxu0
          %v1455 = vadd.f32 %v1371, %v1454
          %1456 = vmatprep.mubr.f32.mxu0 %v1306
          %1457 = vmatmul.mubr.f32.gmra.mrb[0].mxu0 %v1305
          %v1458 = vpop.f32.mrb[0].mxu0
          %v1459 = vadd.f32 %v1367, %v1458
          %v1460 = vpop.f32.mrb[0].mxu0
          %v1461 = vadd.f32 %v1371, %v1460
          %1462 = vmatprep.mubr.f32.mxu0 %v1308
          %1463 = vmatmul.mubr.f32.gmra.mrb[0].mxu0 %v1307
          %v1464 = vpop.f32.mrb[0].mxu0
          %v1465 = vadd.f32 %v1367, %v1464
          %v1466 = vpop.f32.mrb[0].mxu0
          %v1467 = vadd.f32 %v1371, %v1466
          %1468 = vmatprep.mubr.f32.mxu0 %v1310
          %1469 = vmatmul.mubr.f32.gmra.mrb[0].mxu0 %v1309
          %v1470 = vpop.f32.mrb[0].mxu0
          %v1471 = vadd.f32 %v1367, %v1470
          %v1472 = vpop.f32.mrb[0].mxu0
          %v1473 = vadd.f32 %v1371, %v1472
          %1474 = vmatprep.mubr.f32.mxu0 %v1312
          %1475 = vmatmul.mubr.f32.gmra.mrb[0].mxu0 %v1311
          %v1476 = vpop.f32.mrb[0].mxu0
          %v1477 = vadd.f32 %v1367, %v1476
          %v1478 = vpop.f32.mrb[0].mxu0
          %v1479 = vadd.f32 %v1371, %v1478
          %1480 = vmatprep.mubr.f32.mxu0 %v1314
          %1481 = vmatmul.mubr.f32.gmra.mrb[0].mxu0 %v1313
          %v1482 = vpop.f32.mrb[0].mxu0
          %v1483 = vadd.f32 %v1367, %v1482
          %v1484 = vpop.f32.mrb[0].mxu0
          %v1485 = vadd.f32 %v1371, %v1484
          %1486 = vmatprep.mubr.f32.mxu0 %v1316
          %1487 = vmatmul.mubr.f32.gmra.mrb[0].mxu0 %v1315
          %v1488 = vpop.f32.mrb[0].mxu0
          %v1489 = vadd.f32 %v1367, %v1488
          %v1490 = vpop.f32.mrb[0].mxu0
          %v1491 = vadd.f32 %v1371, %v1490
          %1492 = vmatprep.mubr.f32.mxu0 %v1318
          %1493 = vmatmul.mubr.f32.gmra.mrb[0].mxu0 %v1317
          %v1494 = vpop.f32.mrb[0].mxu0
          %v1495 = vadd.f32 %v1367, %v1494
          %v1496 = vpop.f32.mrb[0].mxu0
          %v1497 = vadd.f32 %v1371, %v1496
          %1498 = vmatprep.mubr.f32.mxu0 %v1320
          %1499 = vmatmul.mubr.f32.gmra.mrb[0].mxu0 %v1319
          %v1500 = vpop.f32.mrb[0].mxu0
          %v1501 = vadd.f32 %v1367, %v1500
          %v1502 = vpop.f32.mrb[0].mxu0
          %v1503 = vadd.f32 %v1371, %v1502
          %1504 = vmatprep.mubr.f32.mxu0 %v1322
          %1505 = vmatmul.mubr.f32.gmra.mrb[0].mxu0 %v1321
          %v1506 = vpop.f32.mrb[0].mxu0
          %v1507 = vadd.f32 %v1367, %v1506
          %v1508 = vpop.f32.mrb[0].mxu0
          %v1509 = vadd.f32 %v1371, %v1508
          %1510 = vmatprep.mubr.f32.mxu0 %v1324
          %1511 = vmatmul.mubr.f32.gmra.mrb[0].mxu0 %v1323
          %v1512 = vpop.f32.mrb[0].mxu0
          %v1513 = vadd.f32 %v1367, %v1512
          %v1514 = vpop.f32.mrb[0].mxu0
          %v1515 = vadd.f32 %v1371, %v1514
          %1516 = vmatprep.mubr.f32.mxu0 %v1326
          %1517 = vmatmul.mubr.f32.gmra.mrb[0].mxu0 %v1325
          %v1518 = vpop.f32.mrb[0].mxu0
          %v1519 = vadd.f32 %v1367, %v1518
          %v1520 = vpop.f32.mrb[0].mxu0
          %v1521 = vadd.f32 %v1371, %v1520
          %1522 = vmatprep.mubr.f32.mxu0 %v1328
          %1523 = vmatmul.mubr.f32.gmra.mrb[0].mxu0 %v1327
          %v1524 = vpop.f32.mrb[0].mxu0
          %v1525 = vadd.f32 %v1367, %v1524
          %v1526 = vpop.f32.mrb[0].mxu0
          %v1527 = vadd.f32 %v1371, %v1526
          %1528 = vmatprep.mubr.f32.mxu0 %v1330
          %1529 = vmatmul.mubr.f32.gmra.mrb[0].mxu0 %v1329
          %v1530 = vpop.f32.mrb[0].mxu0
          %v1531 = vadd.f32 %v1367, %v1530
          %v1532 = vpop.f32.mrb[0].mxu0
          %v1533 = vadd.f32 %v1371, %v1532
          %1534 = vmatprep.mubr.f32.mxu0 %v1332
          %1535 = vmatmul.mubr.f32.gmra.mrb[0].mxu0 %v1331
          %v1536 = vpop.f32.mrb[0].mxu0
          %v1537 = vadd.f32 %v1367, %v1536
          %v1538 = vpop.f32.mrb[0].mxu0
          %v1539 = vadd.f32 %v1371, %v1538
          %1540 = vmatprep.mubr.f32.mxu0 %v1334
          %1541 = vmatmul.mubr.f32.gmra.mrb[0].mxu0 %v1333
          %v1542 = vpop.f32.mrb[0].mxu0
          %v1543 = vadd.f32 %v1367, %v1542
          %v1544 = vpop.f32.mrb[0].mxu0
          %v1545 = vadd.f32 %v1371, %v1544
          %1546 = vmatprep.mubr.f32.mxu0 %v1336
          %1547 = vmatmul.mubr.f32.gmra.mrb[0].mxu0 %v1335
          %v1548 = vpop.f32.mrb[0].mxu0
          %v1549 = vadd.f32 %v1367, %v1548
          %v1550 = vpop.f32.mrb[0].mxu0
          %v1551 = vadd.f32 %v1371, %v1550
          %1552 = vmatprep.mubr.f32.mxu0 %v1338
          %1553 = vmatmul.mubr.f32.gmra.mrb[0].mxu0 %v1337
          %v1554 = vpop.f32.mrb[0].mxu0
          %v1555 = vadd.f32 %v1367, %v1554
          %v1556 = vpop.f32.mrb[0].mxu0
          %v1557 = vadd.f32 %v1371, %v1556
          %1558 = vmatprep.mubr.f32.mxu0 %v1340
          %1559 = vmatmul.mubr.f32.gmra.mrb[0].mxu0 %v1339
          %v1560 = vpop.f32.mrb[0].mxu0
          %v1561 = vadd.f32 %v1367, %v1560
          %v1562 = vpop.f32.mrb[0].mxu0
          %v1563 = vadd.f32 %v1371, %v1562
          %1564 = vmatprep.mubr.f32.mxu0 %v1342
          %1565 = vmatmul.mubr.f32.gmra.mrb[0].mxu0 %v1341
          %v1566 = vpop.f32.mrb[0].mxu0
          %v1567 = vadd.f32 %v1367, %v1566
          %v1568 = vpop.f32.mrb[0].mxu0
          %v1569 = vadd.f32 %v1371, %v1568
          %1570 = vmatprep.mubr.f32.mxu0 %v1344
          %1571 = vmatmul.mubr.f32.gmra.mrb[0].mxu0 %v1343
          %v1572 = vpop.f32.mrb[0].mxu0
          %v1573 = vadd.f32 %v1367, %v1572
          %v1574 = vpop.f32.mrb[0].mxu0
          %v1575 = vadd.f32 %v1371, %v1574
          %1576 = vmatprep.mubr.f32.mxu0 %v1346
          %1577 = vmatmul.mubr.f32.gmra.mrb[0].mxu0 %v1345
          %v1578 = vpop.f32.mrb[0].mxu0
          %v1579 = vadd.f32 %v1367, %v1578
          %v1580 = vpop.f32.mrb[0].mxu0
          %v1581 = vadd.f32 %v1371, %v1580
          %1582 = vmatprep.mubr.f32.mxu0 %v1348
          %1583 = vmatmul.mubr.f32.gmra.mrb[0].mxu0 %v1347
          %v1584 = vpop.f32.mrb[0].mxu0
          %v1585 = vadd.f32 %v1367, %v1584
          %v1586 = vpop.f32.mrb[0].mxu0
          %v1587 = vadd.f32 %v1371, %v1586
          %1588 = vmatprep.mubr.f32.mxu0 %v1350
          %1589 = vmatmul.mubr.f32.gmra.mrb[0].mxu0 %v1349
          %v1590 = vpop.f32.mrb[0].mxu0
          %v1591 = vadd.f32 %v1367, %v1590
          %v1592 = vpop.f32.mrb[0].mxu0
          %v1593 = vadd.f32 %v1371, %v1592
          %1594 = vmatprep.mubr.f32.mxu0 %v1352
          %1595 = vmatmul.mubr.f32.gmra.mrb[0].mxu0 %v1351
          %v1596 = vpop.f32.mrb[0].mxu0
          %v1597 = vadd.f32 %v1367, %v1596
          %v1598 = vpop.f32.mrb[0].mxu0
          %v1599 = vadd.f32 %v1371, %v1598
          %1600 = vmatprep.mubr.f32.mxu0 %v1354
          %1601 = vmatmul.mubr.f32.gmra.mrb[0].mxu0 %v1353
          %v1602 = vpop.f32.mrb[0].mxu0
          %v1603 = vadd.f32 %v1367, %v1602
          %v1604 = vpop.f32.mrb[0].mxu0
          %v1605 = vadd.f32 %v1371, %v1604
          %1606 = vmatprep.mubr.f32.mxu0 %v1356
          %1607 = vmatmul.mubr.f32.gmra.mrb[0].mxu0 %v1355
          %v1608 = vpop.f32.mrb[0].mxu0
          %v1609 = vadd.f32 %v1367, %v1608
          %v1610 = vpop.f32.mrb[0].mxu0
          %v1611 = vadd.f32 %v1371, %v1610
          %1612 = vmatprep.mubr.f32.mxu0 %v1358
          %1613 = vmatmul.mubr.f32.gmra.mrb[0].mxu0 %v1357
          %v1614 = vpop.f32.mrb[0].mxu0
          %v1615 = vadd.f32 %v1367, %v1614
          %v1616 = vpop.f32.mrb[0].mxu0
          %v1617 = vadd.f32 %v1371, %v1616
          %1618 = vmatprep.mubr.f32.mxu0 %v1360
          %1619 = vmatmul.mubr.f32.gmra.mrb[0].mxu0 %v1359
          %v1620 = vpop.f32.mrb[0].mxu0
          %v1621 = vadd.f32 %v1367, %v1620
          %v1622 = vpop.f32.mrb[0].mxu0
          %v1623 = vadd.f32 %v1371, %v1622
          %1624 = vmatprep.mubr.f32.mxu0 %v1362
          %1625 = vmatmul.mubr.f32.gmra.mrb[0].mxu0 %v1361
          %v1626 = vpop.f32.mrb[0].mxu0
          %v1627 = vadd.f32 %v1367, %v1626
          %v1628 = vpop.f32.mrb[0].mxu0
          %v1629 = vadd.f32 %v1371, %v1628
          %1630 = vdwg.mxu0
          %v1631 = vmul.f32 %v1441, %v1441
          %v1632 = vmul.f32 %v1443, %v1443
          %v1633 = vmul.f32 %v1447, %v1447
          %v1634 = vmul.f32 %v1449, %v1449
          %v1635 = vmul.f32 %v1453, %v1453
          %v1636 = vmul.f32 %v1455, %v1455
          %v1637 = vmul.f32 %v1459, %v1459
          %v1638 = vmul.f32 %v1461, %v1461
          %v1639 = vmul.f32 %v1465, %v1465
          %v1640 = vmul.f32 %v1467, %v1467
          %v1641 = vmul.f32 %v1471, %v1471
          %v1642 = vmul.f32 %v1473, %v1473
          %v1643 = vmul.f32 %v1477, %v1477
          %v1644 = vmul.f32 %v1479, %v1479
          %v1645 = vmul.f32 %v1483, %v1483
          %v1646 = vmul.f32 %v1485, %v1485
          %v1647 = vmul.f32 %v1489, %v1489
          %v1648 = vmul.f32 %v1491, %v1491
          %v1649 = vmul.f32 %v1495, %v1495
          %v1650 = vmul.f32 %v1497, %v1497
          %v1651 = vmul.f32 %v1501, %v1501
          %v1652 = vmul.f32 %v1503, %v1503
          %v1653 = vmul.f32 %v1507, %v1507
          %v1654 = vmul.f32 %v1509, %v1509
          %v1655 = vmul.f32 %v1513, %v1513
          %v1656 = vmul.f32 %v1515, %v1515
          %v1657 = vmul.f32 %v1519, %v1519
          %v1658 = vmul.f32 %v1521, %v1521
          %v1659 = vmul.f32 %v1525, %v1525
          %v1660 = vmul.f32 %v1527, %v1527
          %v1661 = vmul.f32 %v1531, %v1531
          %v1662 = vmul.f32 %v1533, %v1533
          %v1663 = vmul.f32 %v1537, %v1537
          %v1664 = vmul.f32 %v1539, %v1539
          %v1665 = vmul.f32 %v1543, %v1543
          %v1666 = vmul.f32 %v1545, %v1545
          %v1667 = vmul.f32 %v1549, %v1549
          %v1668 = vmul.f32 %v1551, %v1551
          %v1669 = vmul.f32 %v1555, %v1555
          %v1670 = vmul.f32 %v1557, %v1557
          %v1671 = vmul.f32 %v1561, %v1561
          %v1672 = vmul.f32 %v1563, %v1563
          %v1673 = vmul.f32 %v1567, %v1567
          %v1674 = vmul.f32 %v1569, %v1569
          %v1675 = vmul.f32 %v1573, %v1573
          %v1676 = vmul.f32 %v1575, %v1575
          %v1677 = vmul.f32 %v1579, %v1579
          %v1678 = vmul.f32 %v1581, %v1581
          %v1679 = vmul.f32 %v1585, %v1585
          %v1680 = vmul.f32 %v1587, %v1587
          %v1681 = vmul.f32 %v1591, %v1591
          %v1682 = vmul.f32 %v1593, %v1593
          %v1683 = vmul.f32 %v1597, %v1597
          %v1684 = vmul.f32 %v1599, %v1599
          %v1685 = vmul.f32 %v1603, %v1603
          %v1686 = vmul.f32 %v1605, %v1605
          %v1687 = vmul.f32 %v1609, %v1609
          %v1688 = vmul.f32 %v1611, %v1611
          %v1689 = vmul.f32 %v1615, %v1615
          %v1690 = vmul.f32 %v1617, %v1617
          %v1691 = vmul.f32 %v1621, %v1621
          %v1692 = vmul.f32 %v1623, %v1623
          %v1693 = vmul.f32 %v1627, %v1627
          %v1694 = vmul.f32 %v1629, %v1629
          %v1695 = vadd.f32 %v1631, %v1632
          %1696 = vadd.xlane.f32.xlu0 %v1695
          %v1697 = vpop.xlane.xlu0 %1696
          %v1698 = vadd.f32 %v1633, %v1634
          %1699 = vadd.xlane.f32.xlu0 %v1698
          %v1700 = vpop.xlane.xlu0 %1699
          %v1701 = vadd.f32 %v1635, %v1636
          %1702 = vadd.xlane.f32.xlu0 %v1701
          %v1703 = vpop.xlane.xlu0 %1702
          %v1704 = vadd.f32 %v1637, %v1638
          %1705 = vadd.xlane.f32.xlu0 %v1704
          %v1706 = vpop.xlane.xlu0 %1705
          %v1707 = vadd.f32 %v1639, %v1640
          %1708 = vadd.xlane.f32.xlu0 %v1707
          %v1709 = vpop.xlane.xlu0 %1708
          %v1710 = vadd.f32 %v1641, %v1642
          %1711 = vadd.xlane.f32.xlu0 %v1710
          %v1712 = vpop.xlane.xlu0 %1711
          %v1713 = vadd.f32 %v1643, %v1644
          %1714 = vadd.xlane.f32.xlu0 %v1713
          %v1715 = vpop.xlane.xlu0 %1714
          %v1716 = vadd.f32 %v1645, %v1646
          %1717 = vadd.xlane.f32.xlu0 %v1716
          %v1718 = vpop.xlane.xlu0 %1717
          %v1719 = vadd.f32 %v1647, %v1648
          %1720 = vadd.xlane.f32.xlu0 %v1719
          %v1721 = vpop.xlane.xlu0 %1720
          %v1722 = vadd.f32 %v1649, %v1650
          %1723 = vadd.xlane.f32.xlu0 %v1722
          %v1724 = vpop.xlane.xlu0 %1723
          %v1725 = vadd.f32 %v1651, %v1652
          %1726 = vadd.xlane.f32.xlu0 %v1725
          %v1727 = vpop.xlane.xlu0 %1726
          %v1728 = vadd.f32 %v1653, %v1654
          %1729 = vadd.xlane.f32.xlu0 %v1728
          %v1730 = vpop.xlane.xlu0 %1729
          %v1731 = vadd.f32 %v1655, %v1656
          %1732 = vadd.xlane.f32.xlu0 %v1731
          %v1733 = vpop.xlane.xlu0 %1732
          %v1734 = vadd.f32 %v1657, %v1658
          %1735 = vadd.xlane.f32.xlu0 %v1734
          %v1736 = vpop.xlane.xlu0 %1735
          %v1737 = vadd.f32 %v1659, %v1660
          %1738 = vadd.xlane.f32.xlu0 %v1737
          %v1739 = vpop.xlane.xlu0 %1738
          %v1740 = vadd.f32 %v1661, %v1662
          %1741 = vadd.xlane.f32.xlu0 %v1740
          %v1742 = vpop.xlane.xlu0 %1741
          %v1743 = vadd.f32 %v1663, %v1664
          %1744 = vadd.xlane.f32.xlu0 %v1743
          %v1745 = vpop.xlane.xlu0 %1744
          %v1746 = vadd.f32 %v1665, %v1666
          %1747 = vadd.xlane.f32.xlu0 %v1746
          %v1748 = vpop.xlane.xlu0 %1747
          %v1749 = vadd.f32 %v1667, %v1668
          %1750 = vadd.xlane.f32.xlu0 %v1749
          %v1751 = vpop.xlane.xlu0 %1750
          %v1752 = vadd.f32 %v1669, %v1670
          %1753 = vadd.xlane.f32.xlu0 %v1752
          %v1754 = vpop.xlane.xlu0 %1753
          %v1755 = vadd.f32 %v1671, %v1672
          %1756 = vadd.xlane.f32.xlu0 %v1755
          %v1757 = vpop.xlane.xlu0 %1756
          %v1758 = vadd.f32 %v1673, %v1674
          %1759 = vadd.xlane.f32.xlu0 %v1758
          %v1760 = vpop.xlane.xlu0 %1759
          %v1761 = vadd.f32 %v1675, %v1676
          %1762 = vadd.xlane.f32.xlu0 %v1761
          %v1763 = vpop.xlane.xlu0 %1762
          %v1764 = vadd.f32 %v1677, %v1678
          %1765 = vadd.xlane.f32.xlu0 %v1764
          %v1766 = vpop.xlane.xlu0 %1765
          %v1767 = vadd.f32 %v1679, %v1680
          %1768 = vadd.xlane.f32.xlu0 %v1767
          %v1769 = vpop.xlane.xlu0 %1768
          %v1770 = vadd.f32 %v1681, %v1682
          %1771 = vadd.xlane.f32.xlu0 %v1770
          %v1772 = vpop.xlane.xlu0 %1771
          %v1773 = vadd.f32 %v1683, %v1684
          %1774 = vadd.xlane.f32.xlu0 %v1773
          %v1775 = vpop.xlane.xlu0 %1774
          %v1776 = vadd.f32 %v1685, %v1686
          %1777 = vadd.xlane.f32.xlu0 %v1776
          %v1778 = vpop.xlane.xlu0 %1777
          %v1779 = vadd.f32 %v1687, %v1688
          %1780 = vadd.xlane.f32.xlu0 %v1779
          %v1781 = vpop.xlane.xlu0 %1780
          %v1782 = vadd.f32 %v1689, %v1690
          %1783 = vadd.xlane.f32.xlu0 %v1782
          %v1784 = vpop.xlane.xlu0 %1783
          %v1785 = vadd.f32 %v1691, %v1692
          %1786 = vadd.xlane.f32.xlu0 %v1785
          %v1787 = vpop.xlane.xlu0 %1786
          %v1788 = vadd.f32 %v1693, %v1694
          %1789 = vadd.xlane.f32.xlu0 %v1788
          %v1790 = vpop.xlane.xlu0 %1789
          %v1791 = vmax.f32 %v1697, 1e-24
          %v1792 = vmax.f32 %v1700, 1e-24
          %v1793 = vmax.f32 %v1703, 1e-24
          %v1794 = vmax.f32 %v1706, 1e-24
          %v1795 = vmax.f32 %v1709, 1e-24
          %v1796 = vmax.f32 %v1712, 1e-24
          %v1797 = vmax.f32 %v1715, 1e-24
          %v1798 = vmax.f32 %v1718, 1e-24
          %v1799 = vmax.f32 %v1721, 1e-24
          %v1800 = vmax.f32 %v1724, 1e-24
          %v1801 = vmax.f32 %v1727, 1e-24
          %v1802 = vmax.f32 %v1730, 1e-24
          %v1803 = vmax.f32 %v1733, 1e-24
          %v1804 = vmax.f32 %v1736, 1e-24
          %v1805 = vmax.f32 %v1739, 1e-24
          %v1806 = vmax.f32 %v1742, 1e-24
          %v1807 = vmax.f32 %v1745, 1e-24
          %v1808 = vmax.f32 %v1748, 1e-24
          %v1809 = vmax.f32 %v1751, 1e-24
          %v1810 = vmax.f32 %v1754, 1e-24
          %v1811 = vmax.f32 %v1757, 1e-24
          %v1812 = vmax.f32 %v1760, 1e-24
          %v1813 = vmax.f32 %v1763, 1e-24
          %v1814 = vmax.f32 %v1766, 1e-24
          %v1815 = vmax.f32 %v1769, 1e-24
          %v1816 = vmax.f32 %v1772, 1e-24
          %v1817 = vmax.f32 %v1775, 1e-24
          %v1818 = vmax.f32 %v1778, 1e-24
          %v1819 = vmax.f32 %v1781, 1e-24
          %v1820 = vmax.f32 %v1784, 1e-24
          %v1821 = vmax.f32 %v1787, 1e-24
          %v1822 = vmax.f32 %v1790, 1e-24
          %v1823 = vrsqrt.pop %v1791
          %v1824 = vrsqrt.pop %v1792
          %v1825 = vrsqrt.pop %v1793
          %v1826 = vrsqrt.pop %v1794
          %v1827 = vrsqrt.pop %v1795
          %v1828 = vrsqrt.pop %v1796
          %v1829 = vrsqrt.pop %v1797
          %v1830 = vrsqrt.pop %v1798
          %v1831 = vrsqrt.pop %v1799
          %v1832 = vrsqrt.pop %v1800
          %v1833 = vrsqrt.pop %v1801
          %v1834 = vrsqrt.pop %v1802
          %v1835 = vrsqrt.pop %v1803
          %v1836 = vrsqrt.pop %v1804
          %v1837 = vrsqrt.pop %v1805
          %v1838 = vrsqrt.pop %v1806
          %v1839 = vrsqrt.pop %v1807
          %v1840 = vrsqrt.pop %v1808
          %v1841 = vrsqrt.pop %v1809
          %v1842 = vrsqrt.pop %v1810
          %v1843 = vrsqrt.pop %v1811
          %v1844 = vrsqrt.pop %v1812
          %v1845 = vrsqrt.pop %v1813
          %v1846 = vrsqrt.pop %v1814
          %v1847 = vrsqrt.pop %v1815
          %v1848 = vrsqrt.pop %v1816
          %v1849 = vrsqrt.pop %v1817
          %v1850 = vrsqrt.pop %v1818
          %v1851 = vrsqrt.pop %v1819
          %v1852 = vrsqrt.pop %v1820
          %v1853 = vrsqrt.pop %v1821
          %v1854 = vrsqrt.pop %v1822
          %v1855 = vmul.f32 %v1441, %v1823
          %v1856 = vmul.f32 %v1443, %v1823
          %v1857 = vmul.f32 %v1447, %v1824
          %v1858 = vmul.f32 %v1449, %v1824
          %v1859 = vmul.f32 %v1453, %v1825
          %v1860 = vmul.f32 %v1455, %v1825
          %v1861 = vmul.f32 %v1459, %v1826
          %v1862 = vmul.f32 %v1461, %v1826
          %v1863 = vmul.f32 %v1465, %v1827
          %v1864 = vmul.f32 %v1467, %v1827
          %v1865 = vmul.f32 %v1471, %v1828
          %v1866 = vmul.f32 %v1473, %v1828
          %v1867 = vmul.f32 %v1477, %v1829
          %v1868 = vmul.f32 %v1479, %v1829
          %v1869 = vmul.f32 %v1483, %v1830
          %v1870 = vmul.f32 %v1485, %v1830
          %v1871 = vmul.f32 %v1489, %v1831
          %v1872 = vmul.f32 %v1491, %v1831
          %v1873 = vmul.f32 %v1495, %v1832
          %v1874 = vmul.f32 %v1497, %v1832
          %v1875 = vmul.f32 %v1501, %v1833
          %v1876 = vmul.f32 %v1503, %v1833
          %v1877 = vmul.f32 %v1507, %v1834
          %v1878 = vmul.f32 %v1509, %v1834
          %v1879 = vmul.f32 %v1513, %v1835
          %v1880 = vmul.f32 %v1515, %v1835
          %v1881 = vmul.f32 %v1519, %v1836
          %v1882 = vmul.f32 %v1521, %v1836
          %v1883 = vmul.f32 %v1525, %v1837
          %v1884 = vmul.f32 %v1527, %v1837
          %v1885 = vmul.f32 %v1531, %v1838
          %v1886 = vmul.f32 %v1533, %v1838
          %v1887 = vmul.f32 %v1537, %v1839
          %v1888 = vmul.f32 %v1539, %v1839
          %v1889 = vmul.f32 %v1543, %v1840
          %v1890 = vmul.f32 %v1545, %v1840
          %v1891 = vmul.f32 %v1549, %v1841
          %v1892 = vmul.f32 %v1551, %v1841
          %v1893 = vmul.f32 %v1555, %v1842
          %v1894 = vmul.f32 %v1557, %v1842
          %v1895 = vmul.f32 %v1561, %v1843
          %v1896 = vmul.f32 %v1563, %v1843
          %v1897 = vmul.f32 %v1567, %v1844
          %v1898 = vmul.f32 %v1569, %v1844
          %v1899 = vmul.f32 %v1573, %v1845
          %v1900 = vmul.f32 %v1575, %v1845
          %v1901 = vmul.f32 %v1579, %v1846
          %v1902 = vmul.f32 %v1581, %v1846
          %v1903 = vmul.f32 %v1585, %v1847
          %v1904 = vmul.f32 %v1587, %v1847
          %v1905 = vmul.f32 %v1591, %v1848
          %v1906 = vmul.f32 %v1593, %v1848
          %v1907 = vmul.f32 %v1597, %v1849
          %v1908 = vmul.f32 %v1599, %v1849
          %v1909 = vmul.f32 %v1603, %v1850
          %v1910 = vmul.f32 %v1605, %v1850
          %v1911 = vmul.f32 %v1609, %v1851
          %v1912 = vmul.f32 %v1611, %v1851
          %v1913 = vmul.f32 %v1615, %v1852
          %v1914 = vmul.f32 %v1617, %v1852
          %v1915 = vmul.f32 %v1621, %v1853
          %v1916 = vmul.f32 %v1623, %v1853
          %v1917 = vmul.f32 %v1627, %v1854
          %v1918 = vmul.f32 %v1629, %v1854
          %1919 = vst [vmem:[#allocation10] sm:$0xff] %v1855
          %1920 = vst [vmem:[#allocation10 + $0x8] sm:$0xff] %v1856
          %1921 = vst [vmem:[#allocation10 + $0x10] sm:$0xff] %v1857
          %1922 = vst [vmem:[#allocation10 + $0x18] sm:$0xff] %v1858
          %1923 = vst [vmem:[#allocation10 + $0x20] sm:$0xff] %v1859
          %1924 = vst [vmem:[#allocation10 + $0x28] sm:$0xff] %v1860
          %1925 = vst [vmem:[#allocation10 + $0x30] sm:$0xff] %v1861
          %1926 = vst [vmem:[#allocation10 + $0x38] sm:$0xff] %v1862
          %1927 = vst [vmem:[#allocation10 + $0x40] sm:$0xff] %v1863
          %1928 = vst [vmem:[#allocation10 + $0x48] sm:$0xff] %v1864
          %1929 = vst [vmem:[#allocation10 + $0x50] sm:$0xff] %v1865
          %1930 = vst [vmem:[#allocation10 + $0x58] sm:$0xff] %v1866
          %1931 = vst [vmem:[#allocation10 + $0x60] sm:$0xff] %v1867
          %1932 = vst [vmem:[#allocation10 + $0x68] sm:$0xff] %v1868
          %1933 = vst [vmem:[#allocation10 + $0x70] sm:$0xff] %v1869
          %1934 = vst [vmem:[#allocation10 + $0x78] sm:$0xff] %v1870
          %1935 = vst [vmem:[#allocation10 + $0x80] sm:$0xff] %v1871
          %1936 = vst [vmem:[#allocation10 + $0x88] sm:$0xff] %v1872
          %1937 = vst [vmem:[#allocation10 + $0x90] sm:$0xff] %v1873
          %1938 = vst [vmem:[#allocation10 + $0x98] sm:$0xff] %v1874
          %1939 = vst [vmem:[#allocation10 + $0xa0] sm:$0xff] %v1875
          %1940 = vst [vmem:[#allocation10 + $0xa8] sm:$0xff] %v1876
          %1941 = vst [vmem:[#allocation10 + $0xb0] sm:$0xff] %v1877
          %1942 = vst [vmem:[#allocation10 + $0xb8] sm:$0xff] %v1878
          %1943 = vst [vmem:[#allocation10 + $0xc0] sm:$0xff] %v1879
          %1944 = vst [vmem:[#allocation10 + $0xc8] sm:$0xff] %v1880
          %1945 = vst [vmem:[#allocation10 + $0xd0] sm:$0xff] %v1881
          %1946 = vst [vmem:[#allocation10 + $0xd8] sm:$0xff] %v1882
          %1947 = vst [vmem:[#allocation10 + $0xe0] sm:$0xff] %v1883
          %1948 = vst [vmem:[#allocation10 + $0xe8] sm:$0xff] %v1884
          %1949 = vst [vmem:[#allocation10 + $0xf0] sm:$0xff] %v1885
          %1950 = vst [vmem:[#allocation10 + $0xf8] sm:$0xff] %v1886
          %1951 = vst [vmem:[#allocation10 + $0x100] sm:$0xff] %v1887
          %1952 = vst [vmem:[#allocation10 + $0x108] sm:$0xff] %v1888
          %1953 = vst [vmem:[#allocation10 + $0x110] sm:$0xff] %v1889
          %1954 = vst [vmem:[#allocation10 + $0x118] sm:$0xff] %v1890
          %1955 = vst [vmem:[#allocation10 + $0x120] sm:$0xff] %v1891
          %1956 = vst [vmem:[#allocation10 + $0x128] sm:$0xff] %v1892
          %1957 = vst [vmem:[#allocation10 + $0x130] sm:$0xff] %v1893
          %1958 = vst [vmem:[#allocation10 + $0x138] sm:$0xff] %v1894
          %1959 = vst [vmem:[#allocation10 + $0x140] sm:$0xff] %v1895
          %1960 = vst [vmem:[#allocation10 + $0x148] sm:$0xff] %v1896
          %1961 = vst [vmem:[#allocation10 + $0x150] sm:$0xff] %v1897
          %1962 = vst [vmem:[#allocation10 + $0x158] sm:$0xff] %v1898
          %1963 = vst [vmem:[#allocation10 + $0x160] sm:$0xff] %v1899
          %1964 = vst [vmem:[#allocation10 + $0x168] sm:$0xff] %v1900
          %1965 = vst [vmem:[#allocation10 + $0x170] sm:$0xff] %v1901
          %1966 = vst [vmem:[#allocation10 + $0x178] sm:$0xff] %v1902
          %1967 = vst [vmem:[#allocation10 + $0x180] sm:$0xff] %v1903
          %1968 = vst [vmem:[#allocation10 + $0x188] sm:$0xff] %v1904
          %1969 = vst [vmem:[#allocation10 + $0x190] sm:$0xff] %v1905
          %1970 = vst [vmem:[#allocation10 + $0x198] sm:$0xff] %v1906
          %1971 = vst [vmem:[#allocation10 + $0x1a0] sm:$0xff] %v1907
          %1972 = vst [vmem:[#allocation10 + $0x1a8] sm:$0xff] %v1908
          %1973 = vst [vmem:[#allocation10 + $0x1b0] sm:$0xff] %v1909
          %1974 = vst [vmem:[#allocation10 + $0x1b8] sm:$0xff] %v1910
          %1975 = vst [vmem:[#allocation10 + $0x1c0] sm:$0xff] %v1911
          %1976 = vst [vmem:[#allocation10 + $0x1c8] sm:$0xff] %v1912
          %1977 = vst [vmem:[#allocation10 + $0x1d0] sm:$0xff] %v1913
          %1978 = vst [vmem:[#allocation10 + $0x1d8] sm:$0xff] %v1914
          %1979 = vst [vmem:[#allocation10 + $0x1e0] sm:$0xff] %v1915
          %1980 = vst [vmem:[#allocation10 + $0x1e8] sm:$0xff] %v1916
          %1981 = vst [vmem:[#allocation10 + $0x1f0] sm:$0xff] %v1917
          %1982 = vst [vmem:[#allocation10 + $0x1f8] sm:$0xff] %v1918
          %s1983 = scalar_lea.vmem [#allocation10], 512
          %v1984 = vld [vmem:[%s1983] sm:$0xff]
          %v1985 = vld [vmem:[%s1983 + $0x8] sm:$0xff]
          %v1986 = vld [vmem:[%s1983 + $0x10] sm:$0xff]
          %v1987 = vld [vmem:[%s1983 + $0x18] sm:$0xff]
          %v1988 = vld [vmem:[%s1983 + $0x20] sm:$0xff]
          %v1989 = vld [vmem:[%s1983 + $0x28] sm:$0xff]
          %v1990 = vld [vmem:[%s1983 + $0x30] sm:$0xff]
          %v1991 = vld [vmem:[%s1983 + $0x38] sm:$0xff]
          %v1992 = vld [vmem:[%s1983 + $0x40] sm:$0xff]
          %v1993 = vld [vmem:[%s1983 + $0x48] sm:$0xff]
          %v1994 = vld [vmem:[%s1983 + $0x50] sm:$0xff]
          %v1995 = vld [vmem:[%s1983 + $0x58] sm:$0xff]
          %v1996 = vld [vmem:[%s1983 + $0x60] sm:$0xff]
          %v1997 = vld [vmem:[%s1983 + $0x68] sm:$0xff]
          %v1998 = vld [vmem:[%s1983 + $0x70] sm:$0xff]
          %v1999 = vld [vmem:[%s1983 + $0x78] sm:$0xff]
          %v2000 = vld [vmem:[%s1983 + $0x80] sm:$0xff]
          %v2001 = vld [vmem:[%s1983 + $0x88] sm:$0xff]
          %v2002 = vld [vmem:[%s1983 + $0x90] sm:$0xff]
          %v2003 = vld [vmem:[%s1983 + $0x98] sm:$0xff]
          %v2004 = vld [vmem:[%s1983 + $0xa0] sm:$0xff]
          %v2005 = vld [vmem:[%s1983 + $0xa8] sm:$0xff]
          %v2006 = vld [vmem:[%s1983 + $0xb0] sm:$0xff]
          %v2007 = vld [vmem:[%s1983 + $0xb8] sm:$0xff]
          %v2008 = vld [vmem:[%s1983 + $0xc0] sm:$0xff]
          %v2009 = vld [vmem:[%s1983 + $0xc8] sm:$0xff]
          %v2010 = vld [vmem:[%s1983 + $0xd0] sm:$0xff]
          %v2011 = vld [vmem:[%s1983 + $0xd8] sm:$0xff]
          %v2012 = vld [vmem:[%s1983 + $0xe0] sm:$0xff]
          %v2013 = vld [vmem:[%s1983 + $0xe8] sm:$0xff]
          %v2014 = vld [vmem:[%s1983 + $0xf0] sm:$0xff]
          %v2015 = vld [vmem:[%s1983 + $0xf8] sm:$0xff]
          %v2016 = vld [vmem:[%s1983 + $0x100] sm:$0xff]
          %v2017 = vld [vmem:[%s1983 + $0x108] sm:$0xff]
          %v2018 = vld [vmem:[%s1983 + $0x110] sm:$0xff]
          %v2019 = vld [vmem:[%s1983 + $0x118] sm:$0xff]
          %v2020 = vld [vmem:[%s1983 + $0x120] sm:$0xff]
          %v2021 = vld [vmem:[%s1983 + $0x128] sm:$0xff]
          %v2022 = vld [vmem:[%s1983 + $0x130] sm:$0xff]
          %v2023 = vld [vmem:[%s1983 + $0x138] sm:$0xff]
          %v2024 = vld [vmem:[%s1983 + $0x140] sm:$0xff]
          %v2025 = vld [vmem:[%s1983 + $0x148] sm:$0xff]
          %v2026 = vld [vmem:[%s1983 + $0x150] sm:$0xff]
          %v2027 = vld [vmem:[%s1983 + $0x158] sm:$0xff]
          %v2028 = vld [vmem:[%s1983 + $0x160] sm:$0xff]
          %v2029 = vld [vmem:[%s1983 + $0x168] sm:$0xff]
          %v2030 = vld [vmem:[%s1983 + $0x170] sm:$0xff]
          %v2031 = vld [vmem:[%s1983 + $0x178] sm:$0xff]
          %v2032 = vld [vmem:[%s1983 + $0x180] sm:$0xff]
          %v2033 = vld [vmem:[%s1983 + $0x188] sm:$0xff]
          %v2034 = vld [vmem:[%s1983 + $0x190] sm:$0xff]
          %v2035 = vld [vmem:[%s1983 + $0x198] sm:$0xff]
          %v2036 = vld [vmem:[%s1983 + $0x1a0] sm:$0xff]
          %v2037 = vld [vmem:[%s1983 + $0x1a8] sm:$0xff]
          %v2038 = vld [vmem:[%s1983 + $0x1b0] sm:$0xff]
          %v2039 = vld [vmem:[%s1983 + $0x1b8] sm:$0xff]
          %v2040 = vld [vmem:[%s1983 + $0x1c0] sm:$0xff]
          %v2041 = vld [vmem:[%s1983 + $0x1c8] sm:$0xff]
          %v2042 = vld [vmem:[%s1983 + $0x1d0] sm:$0xff]
          %v2043 = vld [vmem:[%s1983 + $0x1d8] sm:$0xff]
          %v2044 = vld [vmem:[%s1983 + $0x1e0] sm:$0xff]
          %v2045 = vld [vmem:[%s1983 + $0x1e8] sm:$0xff]
          %v2046 = vld [vmem:[%s1983 + $0x1f0] sm:$0xff]
          %v2047 = vld [vmem:[%s1983 + $0x1f8] sm:$0xff]
          %v2048 = vmul.f32 %v1984, %v1153
          %v2049 = vmul.f32 %v1985, %v1157
          %v2050 = vmul.f32 %v1986, %v1153
          %v2051 = vmul.f32 %v1987, %v1157
          %v2052 = vmul.f32 %v1988, %v1153
          %v2053 = vmul.f32 %v1989, %v1157
          %v2054 = vmul.f32 %v1990, %v1153
          %v2055 = vmul.f32 %v1991, %v1157
          %v2056 = vmul.f32 %v1992, %v1153
          %v2057 = vmul.f32 %v1993, %v1157
          %v2058 = vmul.f32 %v1994, %v1153
          %v2059 = vmul.f32 %v1995, %v1157
          %v2060 = vmul.f32 %v1996, %v1153
          %v2061 = vmul.f32 %v1997, %v1157
          %v2062 = vmul.f32 %v1998, %v1153
          %v2063 = vmul.f32 %v1999, %v1157
          %v2064 = vmul.f32 %v2000, %v1153
          %v2065 = vmul.f32 %v2001, %v1157
          %v2066 = vmul.f32 %v2002, %v1153
          %v2067 = vmul.f32 %v2003, %v1157
          %v2068 = vmul.f32 %v2004, %v1153
          %v2069 = vmul.f32 %v2005, %v1157
          %v2070 = vmul.f32 %v2006, %v1153
          %v2071 = vmul.f32 %v2007, %v1157
          %v2072 = vmul.f32 %v2008, %v1153
          %v2073 = vmul.f32 %v2009, %v1157
          %v2074 = vmul.f32 %v2010, %v1153
          %v2075 = vmul.f32 %v2011, %v1157
          %v2076 = vmul.f32 %v2012, %v1153
          %v2077 = vmul.f32 %v2013, %v1157
          %v2078 = vmul.f32 %v2014, %v1153
          %v2079 = vmul.f32 %v2015, %v1157
          %v2080 = vmul.f32 %v2016, %v1153
          %v2081 = vmul.f32 %v2017, %v1157
          %v2082 = vmul.f32 %v2018, %v1153
          %v2083 = vmul.f32 %v2019, %v1157
          %v2084 = vmul.f32 %v2020, %v1153
          %v2085 = vmul.f32 %v2021, %v1157
          %v2086 = vmul.f32 %v2022, %v1153
          %v2087 = vmul.f32 %v2023, %v1157
          %v2088 = vmul.f32 %v2024, %v1153
          %v2089 = vmul.f32 %v2025, %v1157
          %v2090 = vmul.f32 %v2026, %v1153
          %v2091 = vmul.f32 %v2027, %v1157
          %v2092 = vmul.f32 %v2028, %v1153
          %v2093 = vmul.f32 %v2029, %v1157
          %v2094 = vmul.f32 %v2030, %v1153
          %v2095 = vmul.f32 %v2031, %v1157
          %v2096 = vmul.f32 %v2032, %v1153
          %v2097 = vmul.f32 %v2033, %v1157
          %v2098 = vmul.f32 %v2034, %v1153
          %v2099 = vmul.f32 %v2035, %v1157
          %v2100 = vmul.f32 %v2036, %v1153
          %v2101 = vmul.f32 %v2037, %v1157
          %v2102 = vmul.f32 %v2038, %v1153
          %v2103 = vmul.f32 %v2039, %v1157
          %v2104 = vmul.f32 %v2040, %v1153
          %v2105 = vmul.f32 %v2041, %v1157
          %v2106 = vmul.f32 %v2042, %v1153
          %v2107 = vmul.f32 %v2043, %v1157
          %v2108 = vmul.f32 %v2044, %v1153
          %v2109 = vmul.f32 %v2045, %v1157
          %v2110 = vmul.f32 %v2046, %v1153
          %v2111 = vmul.f32 %v2047, %v1157
          %v2112 = vadd.f32 %v2048, %v1228
          %v2113 = vadd.f32 %v2049, %v1232
          %v2114 = vadd.f32 %v2050, %v1228
          %v2115 = vadd.f32 %v2051, %v1232
          %v2116 = vadd.f32 %v2052, %v1228
          %v2117 = vadd.f32 %v2053, %v1232
          %v2118 = vadd.f32 %v2054, %v1228
          %v2119 = vadd.f32 %v2055, %v1232
          %v2120 = vadd.f32 %v2056, %v1228
          %v2121 = vadd.f32 %v2057, %v1232
          %v2122 = vadd.f32 %v2058, %v1228
          %v2123 = vadd.f32 %v2059, %v1232
          %v2124 = vadd.f32 %v2060, %v1228
          %v2125 = vadd.f32 %v2061, %v1232
          %v2126 = vadd.f32 %v2062, %v1228
          %v2127 = vadd.f32 %v2063, %v1232
          %v2128 = vadd.f32 %v2064, %v1228
          %v2129 = vadd.f32 %v2065, %v1232
          %v2130 = vadd.f32 %v2066, %v1228
          %v2131 = vadd.f32 %v2067, %v1232
          %v2132 = vadd.f32 %v2068, %v1228
          %v2133 = vadd.f32 %v2069, %v1232
          %v2134 = vadd.f32 %v2070, %v1228
          %v2135 = vadd.f32 %v2071, %v1232
          %v2136 = vadd.f32 %v2072, %v1228
          %v2137 = vadd.f32 %v2073, %v1232
          %v2138 = vadd.f32 %v2074, %v1228
          %v2139 = vadd.f32 %v2075, %v1232
          %v2140 = vadd.f32 %v2076, %v1228
          %v2141 = vadd.f32 %v2077, %v1232
          %v2142 = vadd.f32 %v2078, %v1228
          %v2143 = vadd.f32 %v2079, %v1232
          %v2144 = vadd.f32 %v2080, %v1228
          %v2145 = vadd.f32 %v2081, %v1232
          %v2146 = vadd.f32 %v2082, %v1228
          %v2147 = vadd.f32 %v2083, %v1232
          %v2148 = vadd.f32 %v2084, %v1228
          %v2149 = vadd.f32 %v2085, %v1232
          %v2150 = vadd.f32 %v2086, %v1228
          %v2151 = vadd.f32 %v2087, %v1232
          %v2152 = vadd.f32 %v2088, %v1228
          %v2153 = vadd.f32 %v2089, %v1232
          %v2154 = vadd.f32 %v2090, %v1228
          %v2155 = vadd.f32 %v2091, %v1232
          %v2156 = vadd.f32 %v2092, %v1228
          %v2157 = vadd.f32 %v2093, %v1232
          %v2158 = vadd.f32 %v2094, %v1228
          %v2159 = vadd.f32 %v2095, %v1232
          %v2160 = vadd.f32 %v2096, %v1228
          %v2161 = vadd.f32 %v2097, %v1232
          %v2162 = vadd.f32 %v2098, %v1228
          %v2163 = vadd.f32 %v2099, %v1232
          %v2164 = vadd.f32 %v2100, %v1228
          %v2165 = vadd.f32 %v2101, %v1232
          %v2166 = vadd.f32 %v2102, %v1228
          %v2167 = vadd.f32 %v2103, %v1232
          %v2168 = vadd.f32 %v2104, %v1228
          %v2169 = vadd.f32 %v2105, %v1232
          %v2170 = vadd.f32 %v2106, %v1228
          %v2171 = vadd.f32 %v2107, %v1232
          %v2172 = vadd.f32 %v2108, %v1228
          %v2173 = vadd.f32 %v2109, %v1232
          %v2174 = vadd.f32 %v2110, %v1228
          %v2175 = vadd.f32 %v2111, %v1232
          %v2176 = vmax.f32 %v2112, 0.0
          %v2177 = vmax.f32 %v2113, 0.0
          %v2178 = vmax.f32 %v2114, 0.0
          %v2179 = vmax.f32 %v2115, 0.0
          %v2180 = vmax.f32 %v2116, 0.0
          %v2181 = vmax.f32 %v2117, 0.0
          %v2182 = vmax.f32 %v2118, 0.0
          %v2183 = vmax.f32 %v2119, 0.0
          %v2184 = vmax.f32 %v2120, 0.0
          %v2185 = vmax.f32 %v2121, 0.0
          %v2186 = vmax.f32 %v2122, 0.0
          %v2187 = vmax.f32 %v2123, 0.0
          %v2188 = vmax.f32 %v2124, 0.0
          %v2189 = vmax.f32 %v2125, 0.0
          %v2190 = vmax.f32 %v2126, 0.0
          %v2191 = vmax.f32 %v2127, 0.0
          %v2192 = vmax.f32 %v2128, 0.0
          %v2193 = vmax.f32 %v2129, 0.0
          %v2194 = vmax.f32 %v2130, 0.0
          %v2195 = vmax.f32 %v2131, 0.0
          %v2196 = vmax.f32 %v2132, 0.0
          %v2197 = vmax.f32 %v2133, 0.0
          %v2198 = vmax.f32 %v2134, 0.0
          %v2199 = vmax.f32 %v2135, 0.0
          %v2200 = vmax.f32 %v2136, 0.0
          %v2201 = vmax.f32 %v2137, 0.0
          %v2202 = vmax.f32 %v2138, 0.0
          %v2203 = vmax.f32 %v2139, 0.0
          %v2204 = vmax.f32 %v2140, 0.0
          %v2205 = vmax.f32 %v2141, 0.0
          %v2206 = vmax.f32 %v2142, 0.0
          %v2207 = vmax.f32 %v2143, 0.0
          %v2208 = vmax.f32 %v2144, 0.0
          %v2209 = vmax.f32 %v2145, 0.0
          %v2210 = vmax.f32 %v2146, 0.0
          %v2211 = vmax.f32 %v2147, 0.0
          %v2212 = vmax.f32 %v2148, 0.0
          %v2213 = vmax.f32 %v2149, 0.0
          %v2214 = vmax.f32 %v2150, 0.0
          %v2215 = vmax.f32 %v2151, 0.0
          %v2216 = vmax.f32 %v2152, 0.0
          %v2217 = vmax.f32 %v2153, 0.0
          %v2218 = vmax.f32 %v2154, 0.0
          %v2219 = vmax.f32 %v2155, 0.0
          %v2220 = vmax.f32 %v2156, 0.0
          %v2221 = vmax.f32 %v2157, 0.0
          %v2222 = vmax.f32 %v2158, 0.0
          %v2223 = vmax.f32 %v2159, 0.0
          %v2224 = vmax.f32 %v2160, 0.0
          %v2225 = vmax.f32 %v2161, 0.0
          %v2226 = vmax.f32 %v2162, 0.0
          %v2227 = vmax.f32 %v2163, 0.0
          %v2228 = vmax.f32 %v2164, 0.0
          %v2229 = vmax.f32 %v2165, 0.0
          %v2230 = vmax.f32 %v2166, 0.0
          %v2231 = vmax.f32 %v2167, 0.0
          %v2232 = vmax.f32 %v2168, 0.0
          %v2233 = vmax.f32 %v2169, 0.0
          %v2234 = vmax.f32 %v2170, 0.0
          %v2235 = vmax.f32 %v2171, 0.0
          %v2236 = vmax.f32 %v2172, 0.0
          %v2237 = vmax.f32 %v2173, 0.0
          %v2238 = vmax.f32 %v2174, 0.0
          %v2239 = vmax.f32 %v2175, 0.0
          %2240 = vmatprep.subr.mxu0 %v1021
          %2241 = vmatpush1.msra.mxu0 %v1020
          %2242 = vmatprep.subr.mxu0 %v1023
          %2243 = vmatpush1.msra.mxu0 %v1022
          %2244 = vmatprep.subr.mxu0 %v1025
          %2245 = vmatpush1.msra.mxu0 %v1024
          %2246 = vmatprep.subr.mxu0 %v1027
          %2247 = vmatpush1.msra.mxu0 %v1026
          %2248 = vmatprep.subr.mxu0 %v1029
          %2249 = vmatpush1.msra.mxu0 %v1028
          %2250 = vmatprep.subr.mxu0 %v1031
          %2251 = vmatpush1.msra.mxu0 %v1030
          %2252 = vmatprep.subr.mxu0 %v1033
          %2253 = vmatpush1.msra.mxu0 %v1032
          %2254 = vmatprep.subr.mxu0 %v1035
          %2255 = vmatpush1.msra.mxu0 %v1034
          %2256 = vmatprep.subr.mxu0 %v1037
          %2257 = vmatpush1.msra.mxu0 %v1036
          %2258 = vmatprep.subr.mxu0 %v1039
          %2259 = vmatpush1.msra.mxu0 %v1038
          %2260 = vmatprep.subr.mxu0 %v1041
          %2261 = vmatpush1.msra.mxu0 %v1040
          %2262 = vmatprep.subr.mxu0 %v1043
          %2263 = vmatpush1.msra.mxu0 %v1042
          %2264 = vmatprep.subr.mxu0 %v1045
          %2265 = vmatpush1.msra.mxu0 %v1044
          %2266 = vmatprep.subr.mxu0 %v1047
          %2267 = vmatpush1.msra.mxu0 %v1046
          %2268 = vmatprep.subr.mxu0 %v1049
          %2269 = vmatpush1.msra.mxu0 %v1048
          %2270 = vmatprep.subr.mxu0 %v1051
          %2271 = vmatpush1.msra.mxu0 %v1050
          %2272 = vmatprep.subr.mxu0 %v1053
          %2273 = vmatpush1.msra.mxu0 %v1052
          %2274 = vmatprep.subr.mxu0 %v1055
          %2275 = vmatpush1.msra.mxu0 %v1054
          %2276 = vmatprep.subr.mxu0 %v1057
          %2277 = vmatpush1.msra.mxu0 %v1056
          %2278 = vmatprep.subr.mxu0 %v1059
          %2279 = vmatpush1.msra.mxu0 %v1058
          %2280 = vmatprep.subr.mxu0 %v1061
          %2281 = vmatpush1.msra.mxu0 %v1060
          %2282 = vmatprep.subr.mxu0 %v1063
          %2283 = vmatpush1.msra.mxu0 %v1062
          %2284 = vmatprep.subr.mxu0 %v1065
          %2285 = vmatpush1.msra.mxu0 %v1064
          %2286 = vmatprep.subr.mxu0 %v1067
          %2287 = vmatpush1.msra.mxu0 %v1066
          %2288 = vmatprep.subr.mxu0 %v1069
          %2289 = vmatpush1.msra.mxu0 %v1068
          %2290 = vmatprep.subr.mxu0 %v1071
          %2291 = vmatpush1.msra.mxu0 %v1070
          %2292 = vmatprep.subr.mxu0 %v1073
          %2293 = vmatpush1.msra.mxu0 %v1072
          %2294 = vmatprep.subr.mxu0 %v1075
          %2295 = vmatpush1.msra.mxu0 %v1074
          %2296 = vmatprep.subr.mxu0 %v1077
          %2297 = vmatpush1.msra.mxu0 %v1076
          %2298 = vmatprep.subr.mxu0 %v1079
          %2299 = vmatpush1.msra.mxu0 %v1078
          %2300 = vmatprep.subr.mxu0 %v1081
          %2301 = vmatpush1.msra.mxu0 %v1080
          %2302 = vmatprep.subr.mxu0 %v1083
          %2303 = vmatpush1.msra.mxu0 %v1082
          %2304 = vmatprep.mubr.f32.mxu0 %v2177
          %2305 = vmatmul.mubr.f32.gmra.mrb[0].mxu0 %v2176
          %v2306 = vpop.f32.mrb[0].mxu0
          %v2307 = vadd.f32 %v1367, %v2306
          %v2308 = vpop.f32.mrb[0].mxu0
          %v2309 = vadd.f32 %v1371, %v2308
          %2310 = vmatprep.mubr.f32.mxu0 %v2179
          %2311 = vmatmul.mubr.f32.gmra.mrb[0].mxu0 %v2178
          %v2312 = vpop.f32.mrb[0].mxu0
          %v2313 = vadd.f32 %v1367, %v2312
          %v2314 = vpop.f32.mrb[0].mxu0
          %v2315 = vadd.f32 %v1371, %v2314
          %2316 = vmatprep.mubr.f32.mxu0 %v2181
          %2317 = vmatmul.mubr.f32.gmra.mrb[0].mxu0 %v2180
          %v2318 = vpop.f32.mrb[0].mxu0
          %v2319 = vadd.f32 %v1367, %v2318
          %v2320 = vpop.f32.mrb[0].mxu0
          %v2321 = vadd.f32 %v1371, %v2320
          %2322 = vmatprep.mubr.f32.mxu0 %v2183
          %2323 = vmatmul.mubr.f32.gmra.mrb[0].mxu0 %v2182
          %v2324 = vpop.f32.mrb[0].mxu0
          %v2325 = vadd.f32 %v1367, %v2324
          %v2326 = vpop.f32.mrb[0].mxu0
          %v2327 = vadd.f32 %v1371, %v2326
          %2328 = vmatprep.mubr.f32.mxu0 %v2185
          %2329 = vmatmul.mubr.f32.gmra.mrb[0].mxu0 %v2184
          %v2330 = vpop.f32.mrb[0].mxu0
          %v2331 = vadd.f32 %v1367, %v2330
          %v2332 = vpop.f32.mrb[0].mxu0
          %v2333 = vadd.f32 %v1371, %v2332
          %2334 = vmatprep.mubr.f32.mxu0 %v2187
          %2335 = vmatmul.mubr.f32.gmra.mrb[0].mxu0 %v2186
          %v2336 = vpop.f32.mrb[0].mxu0
          %v2337 = vadd.f32 %v1367, %v2336
          %v2338 = vpop.f32.mrb[0].mxu0
          %v2339 = vadd.f32 %v1371, %v2338
          %2340 = vmatprep.mubr.f32.mxu0 %v2189
          %2341 = vmatmul.mubr.f32.gmra.mrb[0].mxu0 %v2188
          %v2342 = vpop.f32.mrb[0].mxu0
          %v2343 = vadd.f32 %v1367, %v2342
          %v2344 = vpop.f32.mrb[0].mxu0
          %v2345 = vadd.f32 %v1371, %v2344
          %2346 = vmatprep.mubr.f32.mxu0 %v2191
          %2347 = vmatmul.mubr.f32.gmra.mrb[0].mxu0 %v2190
          %v2348 = vpop.f32.mrb[0].mxu0
          %v2349 = vadd.f32 %v1367, %v2348
          %v2350 = vpop.f32.mrb[0].mxu0
          %v2351 = vadd.f32 %v1371, %v2350
          %2352 = vmatprep.mubr.f32.mxu0 %v2193
          %2353 = vmatmul.mubr.f32.gmra.mrb[0].mxu0 %v2192
          %v2354 = vpop.f32.mrb[0].mxu0
          %v2355 = vadd.f32 %v1367, %v2354
          %v2356 = vpop.f32.mrb[0].mxu0
          %v2357 = vadd.f32 %v1371, %v2356
          %2358 = vmatprep.mubr.f32.mxu0 %v2195
          %2359 = vmatmul.mubr.f32.gmra.mrb[0].mxu0 %v2194
          %v2360 = vpop.f32.mrb[0].mxu0
          %v2361 = vadd.f32 %v1367, %v2360
          %v2362 = vpop.f32.mrb[0].mxu0
          %v2363 = vadd.f32 %v1371, %v2362
          %2364 = vmatprep.mubr.f32.mxu0 %v2197
          %2365 = vmatmul.mubr.f32.gmra.mrb[0].mxu0 %v2196
          %v2366 = vpop.f32.mrb[0].mxu0
          %v2367 = vadd.f32 %v1367, %v2366
          %v2368 = vpop.f32.mrb[0].mxu0
          %v2369 = vadd.f32 %v1371, %v2368
          %2370 = vmatprep.mubr.f32.mxu0 %v2199
          %2371 = vmatmul.mubr.f32.gmra.mrb[0].mxu0 %v2198
          %v2372 = vpop.f32.mrb[0].mxu0
          %v2373 = vadd.f32 %v1367, %v2372
          %v2374 = vpop.f32.mrb[0].mxu0
          %v2375 = vadd.f32 %v1371, %v2374
          %2376 = vmatprep.mubr.f32.mxu0 %v2201
          %2377 = vmatmul.mubr.f32.gmra.mrb[0].mxu0 %v2200
          %v2378 = vpop.f32.mrb[0].mxu0
          %v2379 = vadd.f32 %v1367, %v2378
          %v2380 = vpop.f32.mrb[0].mxu0
          %v2381 = vadd.f32 %v1371, %v2380
          %2382 = vmatprep.mubr.f32.mxu0 %v2203
          %2383 = vmatmul.mubr.f32.gmra.mrb[0].mxu0 %v2202
          %v2384 = vpop.f32.mrb[0].mxu0
          %v2385 = vadd.f32 %v1367, %v2384
          %v2386 = vpop.f32.mrb[0].mxu0
          %v2387 = vadd.f32 %v1371, %v2386
          %2388 = vmatprep.mubr.f32.mxu0 %v2205
          %2389 = vmatmul.mubr.f32.gmra.mrb[0].mxu0 %v2204
          %v2390 = vpop.f32.mrb[0].mxu0
          %v2391 = vadd.f32 %v1367, %v2390
          %v2392 = vpop.f32.mrb[0].mxu0
          %v2393 = vadd.f32 %v1371, %v2392
          %2394 = vmatprep.mubr.f32.mxu0 %v2207
          %2395 = vmatmul.mubr.f32.gmra.mrb[0].mxu0 %v2206
          %v2396 = vpop.f32.mrb[0].mxu0
          %v2397 = vadd.f32 %v1367, %v2396
          %v2398 = vpop.f32.mrb[0].mxu0
          %v2399 = vadd.f32 %v1371, %v2398
          %2400 = vmatprep.mubr.f32.mxu0 %v2209
          %2401 = vmatmul.mubr.f32.gmra.mrb[0].mxu0 %v2208
          %v2402 = vpop.f32.mrb[0].mxu0
          %v2403 = vadd.f32 %v1367, %v2402
          %v2404 = vpop.f32.mrb[0].mxu0
          %v2405 = vadd.f32 %v1371, %v2404
          %2406 = vmatprep.mubr.f32.mxu0 %v2211
          %2407 = vmatmul.mubr.f32.gmra.mrb[0].mxu0 %v2210
          %v2408 = vpop.f32.mrb[0].mxu0
          %v2409 = vadd.f32 %v1367, %v2408
          %v2410 = vpop.f32.mrb[0].mxu0
          %v2411 = vadd.f32 %v1371, %v2410
          %2412 = vmatprep.mubr.f32.mxu0 %v2213
          %2413 = vmatmul.mubr.f32.gmra.mrb[0].mxu0 %v2212
          %v2414 = vpop.f32.mrb[0].mxu0
          %v2415 = vadd.f32 %v1367, %v2414
          %v2416 = vpop.f32.mrb[0].mxu0
          %v2417 = vadd.f32 %v1371, %v2416
          %2418 = vmatprep.mubr.f32.mxu0 %v2215
          %2419 = vmatmul.mubr.f32.gmra.mrb[0].mxu0 %v2214
          %v2420 = vpop.f32.mrb[0].mxu0
          %v2421 = vadd.f32 %v1367, %v2420
          %v2422 = vpop.f32.mrb[0].mxu0
          %v2423 = vadd.f32 %v1371, %v2422
          %2424 = vmatprep.mubr.f32.mxu0 %v2217
          %2425 = vmatmul.mubr.f32.gmra.mrb[0].mxu0 %v2216
          %v2426 = vpop.f32.mrb[0].mxu0
          %v2427 = vadd.f32 %v1367, %v2426
          %v2428 = vpop.f32.mrb[0].mxu0
          %v2429 = vadd.f32 %v1371, %v2428
          %2430 = vmatprep.mubr.f32.mxu0 %v2219
          %2431 = vmatmul.mubr.f32.gmra.mrb[0].mxu0 %v2218
          %v2432 = vpop.f32.mrb[0].mxu0
          %v2433 = vadd.f32 %v1367, %v2432
          %v2434 = vpop.f32.mrb[0].mxu0
          %v2435 = vadd.f32 %v1371, %v2434
          %2436 = vmatprep.mubr.f32.mxu0 %v2221
          %2437 = vmatmul.mubr.f32.gmra.mrb[0].mxu0 %v2220
          %v2438 = vpop.f32.mrb[0].mxu0
          %v2439 = vadd.f32 %v1367, %v2438
          %v2440 = vpop.f32.mrb[0].mxu0
          %v2441 = vadd.f32 %v1371, %v2440
          %2442 = vmatprep.mubr.f32.mxu0 %v2223
          %2443 = vmatmul.mubr.f32.gmra.mrb[0].mxu0 %v2222
          %v2444 = vpop.f32.mrb[0].mxu0
          %v2445 = vadd.f32 %v1367, %v2444
          %v2446 = vpop.f32.mrb[0].mxu0
          %v2447 = vadd.f32 %v1371, %v2446
          %2448 = vmatprep.mubr.f32.mxu0 %v2225
          %2449 = vmatmul.mubr.f32.gmra.mrb[0].mxu0 %v2224
          %v2450 = vpop.f32.mrb[0].mxu0
          %v2451 = vadd.f32 %v1367, %v2450
          %v2452 = vpop.f32.mrb[0].mxu0
          %v2453 = vadd.f32 %v1371, %v2452
          %2454 = vmatprep.mubr.f32.mxu0 %v2227
          %2455 = vmatmul.mubr.f32.gmra.mrb[0].mxu0 %v2226
          %v2456 = vpop.f32.mrb[0].mxu0
          %v2457 = vadd.f32 %v1367, %v2456
          %v2458 = vpop.f32.mrb[0].mxu0
          %v2459 = vadd.f32 %v1371, %v2458
          %2460 = vmatprep.mubr.f32.mxu0 %v2229
          %2461 = vmatmul.mubr.f32.gmra.mrb[0].mxu0 %v2228
          %v2462 = vpop.f32.mrb[0].mxu0
          %v2463 = vadd.f32 %v1367, %v2462
          %v2464 = vpop.f32.mrb[0].mxu0
          %v2465 = vadd.f32 %v1371, %v2464
          %2466 = vmatprep.mubr.f32.mxu0 %v2231
          %2467 = vmatmul.mubr.f32.gmra.mrb[0].mxu0 %v2230
          %v2468 = vpop.f32.mrb[0].mxu0
          %v2469 = vadd.f32 %v1367, %v2468
          %v2470 = vpop.f32.mrb[0].mxu0
          %v2471 = vadd.f32 %v1371, %v2470
          %2472 = vmatprep.mubr.f32.mxu0 %v2233
          %2473 = vmatmul.mubr.f32.gmra.mrb[0].mxu0 %v2232
          %v2474 = vpop.f32.mrb[0].mxu0
          %v2475 = vadd.f32 %v1367, %v2474
          %v2476 = vpop.f32.mrb[0].mxu0
          %v2477 = vadd.f32 %v1371, %v2476
          %2478 = vmatprep.mubr.f32.mxu0 %v2235
          %2479 = vmatmul.mubr.f32.gmra.mrb[0].mxu0 %v2234
          %v2480 = vpop.f32.mrb[0].mxu0
          %v2481 = vadd.f32 %v1367, %v2480
          %v2482 = vpop.f32.mrb[0].mxu0
          %v2483 = vadd.f32 %v1371, %v2482
          %2484 = vmatprep.mubr.f32.mxu0 %v2237
          %2485 = vmatmul.mubr.f32.gmra.mrb[0].mxu0 %v2236
          %v2486 = vpop.f32.mrb[0].mxu0
          %v2487 = vadd.f32 %v1367, %v2486
          %v2488 = vpop.f32.mrb[0].mxu0
          %v2489 = vadd.f32 %v1371, %v2488
          %2490 = vmatprep.mubr.f32.mxu0 %v2239
          %2491 = vmatmul.mubr.f32.gmra.mrb[0].mxu0 %v2238
          %v2492 = vpop.f32.mrb[0].mxu0
          %v2493 = vadd.f32 %v1367, %v2492
          %v2494 = vpop.f32.mrb[0].mxu0
          %v2495 = vadd.f32 %v1371, %v2494
          %2496 = vdwg.mxu0
          %v2497 = vmul.f32 %v2307, %v2307
          %v2498 = vmul.f32 %v2309, %v2309
          %v2499 = vmul.f32 %v2313, %v2313
          %v2500 = vmul.f32 %v2315, %v2315
          %v2501 = vmul.f32 %v2319, %v2319
          %v2502 = vmul.f32 %v2321, %v2321
          %v2503 = vmul.f32 %v2325, %v2325
          %v2504 = vmul.f32 %v2327, %v2327
          %v2505 = vmul.f32 %v2331, %v2331
          %v2506 = vmul.f32 %v2333, %v2333
          %v2507 = vmul.f32 %v2337, %v2337
          %v2508 = vmul.f32 %v2339, %v2339
          %v2509 = vmul.f32 %v2343, %v2343
          %v2510 = vmul.f32 %v2345, %v2345
          %v2511 = vmul.f32 %v2349, %v2349
          %v2512 = vmul.f32 %v2351, %v2351
          %v2513 = vmul.f32 %v2355, %v2355
          %v2514 = vmul.f32 %v2357, %v2357
          %v2515 = vmul.f32 %v2361, %v2361
          %v2516 = vmul.f32 %v2363, %v2363
          %v2517 = vmul.f32 %v2367, %v2367
          %v2518 = vmul.f32 %v2369, %v2369
          %v2519 = vmul.f32 %v2373, %v2373
          %v2520 = vmul.f32 %v2375, %v2375
          %v2521 = vmul.f32 %v2379, %v2379
          %v2522 = vmul.f32 %v2381, %v2381
          %v2523 = vmul.f32 %v2385, %v2385
          %v2524 = vmul.f32 %v2387, %v2387
          %v2525 = vmul.f32 %v2391, %v2391
          %v2526 = vmul.f32 %v2393, %v2393
          %v2527 = vmul.f32 %v2397, %v2397
          %v2528 = vmul.f32 %v2399, %v2399
          %v2529 = vmul.f32 %v2403, %v2403
          %v2530 = vmul.f32 %v2405, %v2405
          %v2531 = vmul.f32 %v2409, %v2409
          %v2532 = vmul.f32 %v2411, %v2411
          %v2533 = vmul.f32 %v2415, %v2415
          %v2534 = vmul.f32 %v2417, %v2417
          %v2535 = vmul.f32 %v2421, %v2421
          %v2536 = vmul.f32 %v2423, %v2423
          %v2537 = vmul.f32 %v2427, %v2427
          %v2538 = vmul.f32 %v2429, %v2429
          %v2539 = vmul.f32 %v2433, %v2433
          %v2540 = vmul.f32 %v2435, %v2435
          %v2541 = vmul.f32 %v2439, %v2439
          %v2542 = vmul.f32 %v2441, %v2441
          %v2543 = vmul.f32 %v2445, %v2445
          %v2544 = vmul.f32 %v2447, %v2447
          %v2545 = vmul.f32 %v2451, %v2451
          %v2546 = vmul.f32 %v2453, %v2453
          %v2547 = vmul.f32 %v2457, %v2457
          %v2548 = vmul.f32 %v2459, %v2459
          %v2549 = vmul.f32 %v2463, %v2463
          %v2550 = vmul.f32 %v2465, %v2465
          %v2551 = vmul.f32 %v2469, %v2469
          %v2552 = vmul.f32 %v2471, %v2471
          %v2553 = vmul.f32 %v2475, %v2475
          %v2554 = vmul.f32 %v2477, %v2477
          %v2555 = vmul.f32 %v2481, %v2481
          %v2556 = vmul.f32 %v2483, %v2483
          %v2557 = vmul.f32 %v2487, %v2487
          %v2558 = vmul.f32 %v2489, %v2489
          %v2559 = vmul.f32 %v2493, %v2493
          %v2560 = vmul.f32 %v2495, %v2495
          %v2561 = vadd.f32 %v2497, %v2498
          %2562 = vadd.xlane.f32.xlu0 %v2561
          %v2563 = vpop.xlane.xlu0 %2562
          %v2564 = vadd.f32 %v2499, %v2500
          %2565 = vadd.xlane.f32.xlu0 %v2564
          %v2566 = vpop.xlane.xlu0 %2565
          %v2567 = vadd.f32 %v2501, %v2502
          %2568 = vadd.xlane.f32.xlu0 %v2567
          %v2569 = vpop.xlane.xlu0 %2568
          %v2570 = vadd.f32 %v2503, %v2504
          %2571 = vadd.xlane.f32.xlu0 %v2570
          %v2572 = vpop.xlane.xlu0 %2571
          %v2573 = vadd.f32 %v2505, %v2506
          %2574 = vadd.xlane.f32.xlu0 %v2573
          %v2575 = vpop.xlane.xlu0 %2574
          %v2576 = vadd.f32 %v2507, %v2508
          %2577 = vadd.xlane.f32.xlu0 %v2576
          %v2578 = vpop.xlane.xlu0 %2577
          %v2579 = vadd.f32 %v2509, %v2510
          %2580 = vadd.xlane.f32.xlu0 %v2579
          %v2581 = vpop.xlane.xlu0 %2580
          %v2582 = vadd.f32 %v2511, %v2512
          %2583 = vadd.xlane.f32.xlu0 %v2582
          %v2584 = vpop.xlane.xlu0 %2583
          %v2585 = vadd.f32 %v2513, %v2514
          %2586 = vadd.xlane.f32.xlu0 %v2585
          %v2587 = vpop.xlane.xlu0 %2586
          %v2588 = vadd.f32 %v2515, %v2516
          %2589 = vadd.xlane.f32.xlu0 %v2588
          %v2590 = vpop.xlane.xlu0 %2589
          %v2591 = vadd.f32 %v2517, %v2518
          %2592 = vadd.xlane.f32.xlu0 %v2591
          %v2593 = vpop.xlane.xlu0 %2592
          %v2594 = vadd.f32 %v2519, %v2520
          %2595 = vadd.xlane.f32.xlu0 %v2594
          %v2596 = vpop.xlane.xlu0 %2595
          %v2597 = vadd.f32 %v2521, %v2522
          %2598 = vadd.xlane.f32.xlu0 %v2597
          %v2599 = vpop.xlane.xlu0 %2598
          %v2600 = vadd.f32 %v2523, %v2524
          %2601 = vadd.xlane.f32.xlu0 %v2600
          %v2602 = vpop.xlane.xlu0 %2601
          %v2603 = vadd.f32 %v2525, %v2526
          %2604 = vadd.xlane.f32.xlu0 %v2603
          %v2605 = vpop.xlane.xlu0 %2604
          %v2606 = vadd.f32 %v2527, %v2528
          %2607 = vadd.xlane.f32.xlu0 %v2606
          %v2608 = vpop.xlane.xlu0 %2607
          %v2609 = vadd.f32 %v2529, %v2530
          %2610 = vadd.xlane.f32.xlu0 %v2609
          %v2611 = vpop.xlane.xlu0 %2610
          %v2612 = vadd.f32 %v2531, %v2532
          %2613 = vadd.xlane.f32.xlu0 %v2612
          %v2614 = vpop.xlane.xlu0 %2613
          %v2615 = vadd.f32 %v2533, %v2534
          %2616 = vadd.xlane.f32.xlu0 %v2615
          %v2617 = vpop.xlane.xlu0 %2616
          %v2618 = vadd.f32 %v2535, %v2536
          %2619 = vadd.xlane.f32.xlu0 %v2618
          %v2620 = vpop.xlane.xlu0 %2619
          %v2621 = vadd.f32 %v2537, %v2538
          %2622 = vadd.xlane.f32.xlu0 %v2621
          %v2623 = vpop.xlane.xlu0 %2622
          %v2624 = vadd.f32 %v2539, %v2540
          %2625 = vadd.xlane.f32.xlu0 %v2624
          %v2626 = vpop.xlane.xlu0 %2625
          %v2627 = vadd.f32 %v2541, %v2542
          %2628 = vadd.xlane.f32.xlu0 %v2627
          %v2629 = vpop.xlane.xlu0 %2628
          %v2630 = vadd.f32 %v2543, %v2544
          %2631 = vadd.xlane.f32.xlu0 %v2630
          %v2632 = vpop.xlane.xlu0 %2631
          %v2633 = vadd.f32 %v2545, %v2546
          %2634 = vadd.xlane.f32.xlu0 %v2633
          %v2635 = vpop.xlane.xlu0 %2634
          %v2636 = vadd.f32 %v2547, %v2548
          %2637 = vadd.xlane.f32.xlu0 %v2636
          %v2638 = vpop.xlane.xlu0 %2637
          %v2639 = vadd.f32 %v2549, %v2550
          %2640 = vadd.xlane.f32.xlu0 %v2639
          %v2641 = vpop.xlane.xlu0 %2640
          %v2642 = vadd.f32 %v2551, %v2552
          %2643 = vadd.xlane.f32.xlu0 %v2642
          %v2644 = vpop.xlane.xlu0 %2643
          %v2645 = vadd.f32 %v2553, %v2554
          %2646 = vadd.xlane.f32.xlu0 %v2645
          %v2647 = vpop.xlane.xlu0 %2646
          %v2648 = vadd.f32 %v2555, %v2556
          %2649 = vadd.xlane.f32.xlu0 %v2648
          %v2650 = vpop.xlane.xlu0 %2649
          %v2651 = vadd.f32 %v2557, %v2558
          %2652 = vadd.xlane.f32.xlu0 %v2651
          %v2653 = vpop.xlane.xlu0 %2652
          %v2654 = vadd.f32 %v2559, %v2560
          %2655 = vadd.xlane.f32.xlu0 %v2654
          %v2656 = vpop.xlane.xlu0 %2655
          %v2657 = vmax.f32 %v2563, 1e-24
          %v2658 = vmax.f32 %v2566, 1e-24
          %v2659 = vmax.f32 %v2569, 1e-24
          %v2660 = vmax.f32 %v2572, 1e-24
          %v2661 = vmax.f32 %v2575, 1e-24
          %v2662 = vmax.f32 %v2578, 1e-24
          %v2663 = vmax.f32 %v2581, 1e-24
          %v2664 = vmax.f32 %v2584, 1e-24
          %v2665 = vmax.f32 %v2587, 1e-24
          %v2666 = vmax.f32 %v2590, 1e-24
          %v2667 = vmax.f32 %v2593, 1e-24
          %v2668 = vmax.f32 %v2596, 1e-24
          %v2669 = vmax.f32 %v2599, 1e-24
          %v2670 = vmax.f32 %v2602, 1e-24
          %v2671 = vmax.f32 %v2605, 1e-24
          %v2672 = vmax.f32 %v2608, 1e-24
          %v2673 = vmax.f32 %v2611, 1e-24
          %v2674 = vmax.f32 %v2614, 1e-24
          %v2675 = vmax.f32 %v2617, 1e-24
          %v2676 = vmax.f32 %v2620, 1e-24
          %v2677 = vmax.f32 %v2623, 1e-24
          %v2678 = vmax.f32 %v2626, 1e-24
          %v2679 = vmax.f32 %v2629, 1e-24
          %v2680 = vmax.f32 %v2632, 1e-24
          %v2681 = vmax.f32 %v2635, 1e-24
          %v2682 = vmax.f32 %v2638, 1e-24
          %v2683 = vmax.f32 %v2641, 1e-24
          %v2684 = vmax.f32 %v2644, 1e-24
          %v2685 = vmax.f32 %v2647, 1e-24
          %v2686 = vmax.f32 %v2650, 1e-24
          %v2687 = vmax.f32 %v2653, 1e-24
          %v2688 = vmax.f32 %v2656, 1e-24
          %v2689 = vrsqrt.pop %v2657
          %v2690 = vrsqrt.pop %v2658
          %v2691 = vrsqrt.pop %v2659
          %v2692 = vrsqrt.pop %v2660
          %v2693 = vrsqrt.pop %v2661
          %v2694 = vrsqrt.pop %v2662
          %v2695 = vrsqrt.pop %v2663
          %v2696 = vrsqrt.pop %v2664
          %v2697 = vrsqrt.pop %v2665
          %v2698 = vrsqrt.pop %v2666
          %v2699 = vrsqrt.pop %v2667
          %v2700 = vrsqrt.pop %v2668
          %v2701 = vrsqrt.pop %v2669
          %v2702 = vrsqrt.pop %v2670
          %v2703 = vrsqrt.pop %v2671
          %v2704 = vrsqrt.pop %v2672
          %v2705 = vrsqrt.pop %v2673
          %v2706 = vrsqrt.pop %v2674
          %v2707 = vrsqrt.pop %v2675
          %v2708 = vrsqrt.pop %v2676
          %v2709 = vrsqrt.pop %v2677
          %v2710 = vrsqrt.pop %v2678
          %v2711 = vrsqrt.pop %v2679
          %v2712 = vrsqrt.pop %v2680
          %v2713 = vrsqrt.pop %v2681
          %v2714 = vrsqrt.pop %v2682
          %v2715 = vrsqrt.pop %v2683
          %v2716 = vrsqrt.pop %v2684
          %v2717 = vrsqrt.pop %v2685
          %v2718 = vrsqrt.pop %v2686
          %v2719 = vrsqrt.pop %v2687
          %v2720 = vrsqrt.pop %v2688
          %v2721 = vmul.f32 %v2307, %v2689
          %v2722 = vmul.f32 %v2309, %v2689
          %v2723 = vmul.f32 %v2313, %v2690
          %v2724 = vmul.f32 %v2315, %v2690
          %v2725 = vmul.f32 %v2319, %v2691
          %v2726 = vmul.f32 %v2321, %v2691
          %v2727 = vmul.f32 %v2325, %v2692
          %v2728 = vmul.f32 %v2327, %v2692
          %v2729 = vmul.f32 %v2331, %v2693
          %v2730 = vmul.f32 %v2333, %v2693
          %v2731 = vmul.f32 %v2337, %v2694
          %v2732 = vmul.f32 %v2339, %v2694
          %v2733 = vmul.f32 %v2343, %v2695
          %v2734 = vmul.f32 %v2345, %v2695
          %v2735 = vmul.f32 %v2349, %v2696
          %v2736 = vmul.f32 %v2351, %v2696
          %v2737 = vmul.f32 %v2355, %v2697
          %v2738 = vmul.f32 %v2357, %v2697
          %v2739 = vmul.f32 %v2361, %v2698
          %v2740 = vmul.f32 %v2363, %v2698
          %v2741 = vmul.f32 %v2367, %v2699
          %v2742 = vmul.f32 %v2369, %v2699
          %v2743 = vmul.f32 %v2373, %v2700
          %v2744 = vmul.f32 %v2375, %v2700
          %v2745 = vmul.f32 %v2379, %v2701
          %v2746 = vmul.f32 %v2381, %v2701
          %v2747 = vmul.f32 %v2385, %v2702
          %v2748 = vmul.f32 %v2387, %v2702
          %v2749 = vmul.f32 %v2391, %v2703
          %v2750 = vmul.f32 %v2393, %v2703
          %v2751 = vmul.f32 %v2397, %v2704
          %v2752 = vmul.f32 %v2399, %v2704
          %v2753 = vmul.f32 %v2403, %v2705
          %v2754 = vmul.f32 %v2405, %v2705
          %v2755 = vmul.f32 %v2409, %v2706
          %v2756 = vmul.f32 %v2411, %v2706
          %v2757 = vmul.f32 %v2415, %v2707
          %v2758 = vmul.f32 %v2417, %v2707
          %v2759 = vmul.f32 %v2421, %v2708
          %v2760 = vmul.f32 %v2423, %v2708
          %v2761 = vmul.f32 %v2427, %v2709
          %v2762 = vmul.f32 %v2429, %v2709
          %v2763 = vmul.f32 %v2433, %v2710
          %v2764 = vmul.f32 %v2435, %v2710
          %v2765 = vmul.f32 %v2439, %v2711
          %v2766 = vmul.f32 %v2441, %v2711
          %v2767 = vmul.f32 %v2445, %v2712
          %v2768 = vmul.f32 %v2447, %v2712
          %v2769 = vmul.f32 %v2451, %v2713
          %v2770 = vmul.f32 %v2453, %v2713
          %v2771 = vmul.f32 %v2457, %v2714
          %v2772 = vmul.f32 %v2459, %v2714
          %v2773 = vmul.f32 %v2463, %v2715
          %v2774 = vmul.f32 %v2465, %v2715
          %v2775 = vmul.f32 %v2469, %v2716
          %v2776 = vmul.f32 %v2471, %v2716
          %v2777 = vmul.f32 %v2475, %v2717
          %v2778 = vmul.f32 %v2477, %v2717
          %v2779 = vmul.f32 %v2481, %v2718
          %v2780 = vmul.f32 %v2483, %v2718
          %v2781 = vmul.f32 %v2487, %v2719
          %v2782 = vmul.f32 %v2489, %v2719
          %v2783 = vmul.f32 %v2493, %v2720
          %v2784 = vmul.f32 %v2495, %v2720
          %2785 = vst [vmem:[%s1983] sm:$0xff] %v2721
          %2786 = vst [vmem:[%s1983 + $0x8] sm:$0xff] %v2722
          %2787 = vst [vmem:[%s1983 + $0x10] sm:$0xff] %v2723
          %2788 = vst [vmem:[%s1983 + $0x18] sm:$0xff] %v2724
          %2789 = vst [vmem:[%s1983 + $0x20] sm:$0xff] %v2725
          %2790 = vst [vmem:[%s1983 + $0x28] sm:$0xff] %v2726
          %2791 = vst [vmem:[%s1983 + $0x30] sm:$0xff] %v2727
          %2792 = vst [vmem:[%s1983 + $0x38] sm:$0xff] %v2728
          %2793 = vst [vmem:[%s1983 + $0x40] sm:$0xff] %v2729
          %2794 = vst [vmem:[%s1983 + $0x48] sm:$0xff] %v2730
          %2795 = vst [vmem:[%s1983 + $0x50] sm:$0xff] %v2731
          %2796 = vst [vmem:[%s1983 + $0x58] sm:$0xff] %v2732
          %2797 = vst [vmem:[%s1983 + $0x60] sm:$0xff] %v2733
          %2798 = vst [vmem:[%s1983 + $0x68] sm:$0xff] %v2734
          %2799 = vst [vmem:[%s1983 + $0x70] sm:$0xff] %v2735
          %2800 = vst [vmem:[%s1983 + $0x78] sm:$0xff] %v2736
          %2801 = vst [vmem:[%s1983 + $0x80] sm:$0xff] %v2737
          %2802 = vst [vmem:[%s1983 + $0x88] sm:$0xff] %v2738
          %2803 = vst [vmem:[%s1983 + $0x90] sm:$0xff] %v2739
          %2804 = vst [vmem:[%s1983 + $0x98] sm:$0xff] %v2740
          %2805 = vst [vmem:[%s1983 + $0xa0] sm:$0xff] %v2741
          %2806 = vst [vmem:[%s1983 + $0xa8] sm:$0xff] %v2742
          %2807 = vst [vmem:[%s1983 + $0xb0] sm:$0xff] %v2743
          %2808 = vst [vmem:[%s1983 + $0xb8] sm:$0xff] %v2744
          %2809 = vst [vmem:[%s1983 + $0xc0] sm:$0xff] %v2745
          %2810 = vst [vmem:[%s1983 + $0xc8] sm:$0xff] %v2746
          %2811 = vst [vmem:[%s1983 + $0xd0] sm:$0xff] %v2747
          %2812 = vst [vmem:[%s1983 + $0xd8] sm:$0xff] %v2748
          %2813 = vst [vmem:[%s1983 + $0xe0] sm:$0xff] %v2749
          %2814 = vst [vmem:[%s1983 + $0xe8] sm:$0xff] %v2750
          %2815 = vst [vmem:[%s1983 + $0xf0] sm:$0xff] %v2751
          %2816 = vst [vmem:[%s1983 + $0xf8] sm:$0xff] %v2752
          %2817 = vst [vmem:[%s1983 + $0x100] sm:$0xff] %v2753
          %2818 = vst [vmem:[%s1983 + $0x108] sm:$0xff] %v2754
          %2819 = vst [vmem:[%s1983 + $0x110] sm:$0xff] %v2755
          %2820 = vst [vmem:[%s1983 + $0x118] sm:$0xff] %v2756
          %2821 = vst [vmem:[%s1983 + $0x120] sm:$0xff] %v2757
          %2822 = vst [vmem:[%s1983 + $0x128] sm:$0xff] %v2758
          %2823 = vst [vmem:[%s1983 + $0x130] sm:$0xff] %v2759
          %2824 = vst [vmem:[%s1983 + $0x138] sm:$0xff] %v2760
          %2825 = vst [vmem:[%s1983 + $0x140] sm:$0xff] %v2761
          %2826 = vst [vmem:[%s1983 + $0x148] sm:$0xff] %v2762
          %2827 = vst [vmem:[%s1983 + $0x150] sm:$0xff] %v2763
          %2828 = vst [vmem:[%s1983 + $0x158] sm:$0xff] %v2764
          %2829 = vst [vmem:[%s1983 + $0x160] sm:$0xff] %v2765
          %2830 = vst [vmem:[%s1983 + $0x168] sm:$0xff] %v2766
          %2831 = vst [vmem:[%s1983 + $0x170] sm:$0xff] %v2767
          %2832 = vst [vmem:[%s1983 + $0x178] sm:$0xff] %v2768
          %2833 = vst [vmem:[%s1983 + $0x180] sm:$0xff] %v2769
          %2834 = vst [vmem:[%s1983 + $0x188] sm:$0xff] %v2770
          %2835 = vst [vmem:[%s1983 + $0x190] sm:$0xff] %v2771
          %2836 = vst [vmem:[%s1983 + $0x198] sm:$0xff] %v2772
          %2837 = vst [vmem:[%s1983 + $0x1a0] sm:$0xff] %v2773
          %2838 = vst [vmem:[%s1983 + $0x1a8] sm:$0xff] %v2774
          %2839 = vst [vmem:[%s1983 + $0x1b0] sm:$0xff] %v2775
          %2840 = vst [vmem:[%s1983 + $0x1b8] sm:$0xff] %v2776
          %2841 = vst [vmem:[%s1983 + $0x1c0] sm:$0xff] %v2777
          %2842 = vst [vmem:[%s1983 + $0x1c8] sm:$0xff] %v2778
          %2843 = vst [vmem:[%s1983 + $0x1d0] sm:$0xff] %v2779
          %2844 = vst [vmem:[%s1983 + $0x1d8] sm:$0xff] %v2780
          %2845 = vst [vmem:[%s1983 + $0x1e0] sm:$0xff] %v2781
          %2846 = vst [vmem:[%s1983 + $0x1e8] sm:$0xff] %v2782
          %2847 = vst [vmem:[%s1983 + $0x1f0] sm:$0xff] %v2783
          %2848 = vst [vmem:[%s1983 + $0x1f8] sm:$0xff] %v2784
        $region64: #{embed_branch.1} parent=43 // pred_fallthru
          _
        // Predicated region
        $region65: #{embed_branch.1} parent=43 // pred_check
          %p2849 = pneg %p166
        $region66: #{embed_branch.1} parent=43 // pred_check_branch
          %2851 = sbr.rel (%p2849) target = $region68
        $region67: #{embed_branch.1} parent=43 // pred_region
          %s2853 = ssub.s32 16384, 16384
          %2854 = vsyncadd [#allocation6], %s2853
          %s2855 = sshll.u32 [#allocation10], 4
          %s2856 = int_to_ptr.vmem [resolvable:$true] %s2855
          %2861 = dma.vmem_to_hbm [thread:$0]  %s2856, 16384, %s6, [#allocation6], 256, 256, 16
        $region68: #{embed_branch.1} parent=43 // pred_fallthru
          _
        // Predicated region
        $region69: #{embed_branch.1} parent=43 // pred_check
          %p2862 = pneg %p166
        $region70: #{embed_branch.1} parent=43 // pred_check_branch
          %2864 = sbr.rel (%p2862) target = $region72
        $region71: #{embed_branch.1} parent=43 // pred_region
          %2865 = dma.done [#allocation6], 16384
        $region72: #{embed_branch.1} parent=43 // pred_fallthru
          _
      $region44: #{embed_branch.1} parent=5 // pred_fallthru
        _
      %p2866 = scmp.le.s32.totalorder 2, %s17
      // Predicated region
      $region73: #{embed_branch.1} parent=5 // pred_check
        %p2867 = pneg %p2866
      $region74: #{embed_branch.1} parent=5 // pred_check_branch
        %2869 = sbr.rel (%p2867) target = $region76
      $region75: #{embed_branch.1} parent=5 // pred_region
        %s2870 = ssub.s32 %s17, 2
      $region76: #{embed_branch.1} parent=5 // pred_fallthru
        _
    $region6: #{embed_branch.1} parent=1 // loop_footer
      %s21 = sadd.s32 1, %s17
    $region7: #{embed_branch.1} parent=1 // loop_footer_branch
      %16 = sbr.rel target = $region3
    $region8: #{embed_branch.1} parent=1 // loop_exit
      _
    %2871 = vsyncpa [#allocation5], 1
    %s2872 = scalar_lea.sflag [#allocation5], 1
    %2873 = vsyncpa %s2872, 1
    %2874 = vsyncpa [#allocation8], 1
    %2875 = vsyncpa [#allocation6], 1
    %s2876 = scalar_lea.sflag [#allocation6], 1
    %2877 = vsyncpa %s2876, 1

</llo_original>
